<compile_context>
chip_gen: v6e
topology: v6e:2x2x1
jax: 0.10.0
libtpu: 0.0.40
codegen_flags: <defaults>
</compile_context>

<pallas_src>
import functools

import jax
import jax.numpy as jnp
from jax import lax
from jax.experimental import pallas as pl
from jax.experimental.pallas import tpu as pltpu


# ----------------------------- in-kernel helpers ---------------------------- #

def _ln(x, g, b, eps=1e-5):
    """Row-wise LayerNorm in f32 (biased variance, like PyTorch)."""
    mu = jnp.mean(x, axis=-1, keepdims=True)
    xc = x - mu
    var = jnp.mean(xc * xc, axis=-1, keepdims=True)
    return xc * lax.rsqrt(var + eps) * g + b


# ------------------------------- fused kernel ------------------------------- #

def _vit_kernel(patches_ref, conv_w_ref, pos_ref, lnpre_g_ref, lnpre_b_ref,
                ln1_g_ref, ln1_b_ref, wqkv_ref, bqkv_ref, wout_ref, bout_ref,
                ln2_g_ref, ln2_b_ref, wfc_ref, bfc_ref, wproj_ref, bproj_ref,
                lnpost_g_ref, lnpost_b_ref, wv_ref, wc_ref, bc_ref,
                logits_ref, *, layers, heads, scale):
    """Entire CLIP visual encoder + classifier for one batch element."""
    # ---- patch embedding (conv as matmul) + class/pos emb + ln_pre ----------
    p = patches_ref[0]                                           # (S, C*P*P) bf16
    tok = jnp.dot(p, conv_w_ref[...], preferred_element_type=jnp.float32)
    h = _ln(tok + pos_ref[...], lnpre_g_ref[...], lnpre_b_ref[...])   # (S, W) f32
    S, W = h.shape
    dh = W // heads

    # ---- transformer blocks (statically unrolled; weights resident in VMEM) -
    for l in range(layers):
        # --- attention sub-block: h += out_proj(MHSA(ln1(h))) ---
        hn = _ln(h, ln1_g_ref[l], ln1_b_ref[l])
        qkv = jnp.dot(hn.astype(jnp.bfloat16), wqkv_ref[l],
                      preferred_element_type=jnp.float32) + bqkv_ref[l]   # (S, 3W)
        q = qkv[:, 0 * W:1 * W].astype(jnp.bfloat16)
        k = qkv[:, 1 * W:2 * W].astype(jnp.bfloat16)
        v = qkv[:, 2 * W:3 * W].astype(jnp.bfloat16)
        wout_l = wout_ref[l]                                     # (W, W) bf16

        acc = jnp.zeros((S, W), jnp.float32)
        for hd in range(heads):                                  # static unroll
            lo, hi = hd * dh, (hd + 1) * dh
            qh, kh, vh = q[:, lo:hi], k[:, lo:hi], v[:, lo:hi]   # (S, dh) bf16
            # scores: contract last dims (no explicit transpose of k)
            s = lax.dot_general(qh, kh, (((1,), (1,)), ((), ())),
                                preferred_element_type=jnp.float32) * scale
            s = s - jnp.max(s, axis=-1, keepdims=True)
            pe = jnp.exp(s)
            pe = pe * pl.reciprocal(jnp.sum(pe, axis=-1, keepdims=True),
                                    approx=True)
            oh = jnp.dot(pe.astype(jnp.bfloat16), vh,
                         preferred_element_type=jnp.float32)     # (S, dh)
            # fold the head output through its 8-row slice of out_proj_w
            acc = acc + jnp.dot(oh.astype(jnp.bfloat16), wout_l[lo:hi, :],
                                preferred_element_type=jnp.float32)
        h = h + acc + bout_ref[l]

        # --- MLP sub-block: h += c_proj(QuickGELU(c_fc(ln2(h)))) ---
        hn = _ln(h, ln2_g_ref[l], ln2_b_ref[l])
        u = jnp.dot(hn.astype(jnp.bfloat16), wfc_ref[l],
                    preferred_element_type=jnp.float32) + bfc_ref[l]      # (S, 4W)
        u = u * jax.nn.sigmoid(1.702 * u)                        # QuickGELU (f32)
        d = jnp.dot(u.astype(jnp.bfloat16), wproj_ref[l],
                    preferred_element_type=jnp.float32) + bproj_ref[l]
        h = h + d

    # ---- head: ln_post(class token) -> visual projection -> classifier ------
    cls = _ln(h[0:1, :], lnpost_g_ref[...], lnpost_b_ref[...])   # (1, W)
    feats = jnp.dot(cls.astype(jnp.bfloat16), wv_ref[...],
                    preferred_element_type=jnp.float32)          # (1, out_dim)
    # torch.no_grad() on the backbone only affects backward; forward identical.
    logits_ref[0] = (jnp.dot(feats.astype(jnp.bfloat16), wc_ref[...],
                             preferred_element_type=jnp.float32)
                     + bc_ref[...])                              # (1, NC)


# --------------------------- parameter construction ------------------------- #

def init_params(key, *, in_ch, patch, img, width, layers, heads, out_dim,
                num_classes):
    num_patches = (img // patch) ** 2
    keys = iter(jax.random.split(key, 16))

    def nrm(shape, std=0.02, dtype=jnp.float32):
        return (std * jax.random.normal(next(keys), shape)).astype(dtype)

    bf16 = jnp.bfloat16  # matmul weights stored bf16 for the MXU; rest f32
    return {
        "conv_w": nrm((in_ch * patch * patch, width), dtype=bf16),  # conv as matmul
        "class_emb": nrm((width,)),
        "pos_emb": nrm((num_patches + 1, width)),
        "ln_pre_g": jnp.ones((1, width), jnp.float32),
        "ln_pre_b": jnp.zeros((1, width), jnp.float32),
        "ln_post_g": jnp.ones((1, width), jnp.float32),
        "ln_post_b": jnp.zeros((1, width), jnp.float32),
        "visual_proj": nrm((width, out_dim), dtype=bf16),            # no bias
        "cls_w": nrm((out_dim, num_classes), dtype=bf16),
        "cls_b": nrm((1, num_classes)),
        # per-layer weights stacked on a leading layer axis (resident in VMEM)
        "ln1_g": jnp.ones((layers, 1, width), jnp.float32),
        "ln1_b": jnp.zeros((layers, 1, width), jnp.float32),
        "wqkv": nrm((layers, width, 3 * width), dtype=bf16),
        "bqkv": nrm((layers, 1, 3 * width)),
        "wout": nrm((layers, width, width), dtype=bf16),
        "bout": nrm((layers, 1, width)),
        "ln2_g": jnp.ones((layers, 1, width), jnp.float32),
        "ln2_b": jnp.zeros((layers, 1, width), jnp.float32),
        "wfc": nrm((layers, width, 4 * width), dtype=bf16),
        "bfc": nrm((layers, 1, 4 * width)),
        "wproj": nrm((layers, 4 * width, width), dtype=bf16),
        "bproj": nrm((layers, 1, width)),
    }


# ---------------------------------- forward --------------------------------- #

def clip_finetuner_forward(params, x, *, patch, heads):
    """Mirrors CLIPFineTuner.forward: logits = Linear(encode_image(x).float())."""
    B, C, Himg, Wimg = x.shape
    gh, gw = Himg // patch, Wimg // patch
    width = params["conv_w"].shape[1]
    Cpp = C * patch * patch
    npatch = gh * gw
    S = npatch + 1
    layers = params["wqkv"].shape[0]
    out_dim = params["visual_proj"].shape[1]
    NC = params["cls_w"].shape[1]
    W3, W4 = 3 * width, 4 * width

    # patchify (plain-JAX layout glue; matches the (c, ph, pw) flatten of conv_w)
    patches = x.reshape(B, C, gh, patch, gw, patch)
    patches = patches.transpose(0, 2, 4, 1, 3, 5).reshape(B, npatch, Cpp)
    patches = patches.astype(jnp.bfloat16)
    # prepend a zero "patch" row for the class token and fold class_emb into
    # pos row 0, so the embed step is a single matmul + add + LayerNorm.
    patches = jnp.concatenate(
        [jnp.zeros((B, 1, Cpp), jnp.bfloat16), patches], axis=1)      # (B, S, Cpp)
    pos_plus_cls = params["pos_emb"].at[0].add(params["class_emb"])   # (S, width)

    dh = width // heads
    scale = 1.0 / float(dh) ** 0.5

    def wspec(shape):  # resident weight: full-array block, constant index_map
        nd = len(shape)
        return pl.BlockSpec(shape, lambda i, _nd=nd: (0,) * _nd)

    in_specs = [
        pl.BlockSpec((1, S, Cpp), lambda i: (i, 0, 0)),   # per-batch activations
        wspec((Cpp, width)),                              # conv_w
        wspec((S, width)),                                # pos(+cls)
        wspec((1, width)), wspec((1, width)),             # ln_pre g/b
        wspec((layers, 1, width)), wspec((layers, 1, width)),   # ln1 g/b
        wspec((layers, width, W3)), wspec((layers, 1, W3)),     # in_proj w/b
        wspec((layers, width, width)), wspec((layers, 1, width)),  # out_proj w/b
        wspec((layers, 1, width)), wspec((layers, 1, width)),   # ln2 g/b
        wspec((layers, width, W4)), wspec((layers, 1, W4)),     # c_fc w/b
        wspec((layers, W4, width)), wspec((layers, 1, width)),  # c_proj w/b
        wspec((1, width)), wspec((1, width)),             # ln_post g/b
        wspec((width, out_dim)),                          # visual projection
        wspec((out_dim, NC)),                             # classifier w
        wspec((1, NC)),                                   # classifier b
    ]

    logits = pl.pallas_call(
        functools.partial(_vit_kernel, layers=layers, heads=heads, scale=scale),
        grid=(B,),
        in_specs=in_specs,
        out_specs=pl.BlockSpec((1, 1, NC), lambda i: (i, 0, 0)),
        out_shape=jax.ShapeDtypeStruct((B, 1, NC), jnp.float32),
        compiler_params=pltpu.CompilerParams(
            dimension_semantics=("parallel",)),
    )(patches, params["conv_w"], pos_plus_cls,
      params["ln_pre_g"], params["ln_pre_b"],
      params["ln1_g"], params["ln1_b"], params["wqkv"], params["bqkv"],
      params["wout"], params["bout"],
      params["ln2_g"], params["ln2_b"], params["wfc"], params["bfc"],
      params["wproj"], params["bproj"],
      params["ln_post_g"], params["ln_post_b"],
      params["visual_proj"], params["cls_w"], params["cls_b"])

    return logits.reshape(B, NC)


# ------------------------------------ main ----------------------------------- #

if __name__ == "__main__":
    # Small, forward-consistent shapes (ViT-B/32 scaled down).
    B, C, IMG, PATCH = 2, 3, 16, 8
    WIDTH, LAYERS, HEADS = 32, 2, 4
    OUT_DIM, NUM_CLASSES = 16, 5

    root = jax.random.PRNGKey(0)
    k_param, k_x = jax.random.split(root)

    params = init_params(k_param, in_ch=C, patch=PATCH, img=IMG, width=WIDTH,
                         layers=LAYERS, heads=HEADS, out_dim=OUT_DIM,
                         num_classes=NUM_CLASSES)
    x = jax.random.normal(k_x, (B, C, IMG, IMG), dtype=jnp.float32)

    fwd = jax.jit(functools.partial(clip_finetuner_forward, patch=PATCH, heads=HEADS))
    logits = fwd(params, x)
    logits = jax.block_until_ready(logits)

    assert logits.shape == (B, NUM_CLASSES)
    assert logits.dtype == jnp.float32
    print("KERNEL_OK")
</pallas_src>

<mosaic_0001>
module attributes {stable_mosaic.version = 11 : i64} {
  func.func @_vit_kernel(%arg0: i32, %arg1: memref<1x5x192xbf16, #tpu.memory_space<vmem>>, %arg2: memref<192x32xbf16, #tpu.memory_space<vmem>>, %arg3: memref<5x32xf32, #tpu.memory_space<vmem>>, %arg4: memref<1x32xf32, #tpu.memory_space<vmem>>, %arg5: memref<1x32xf32, #tpu.memory_space<vmem>>, %arg6: memref<2x1x32xf32, #tpu.memory_space<vmem>>, %arg7: memref<2x1x32xf32, #tpu.memory_space<vmem>>, %arg8: memref<2x32x96xbf16, #tpu.memory_space<vmem>>, %arg9: memref<2x1x96xf32, #tpu.memory_space<vmem>>, %arg10: memref<2x32x32xbf16, #tpu.memory_space<vmem>>, %arg11: memref<2x1x32xf32, #tpu.memory_space<vmem>>, %arg12: memref<2x1x32xf32, #tpu.memory_space<vmem>>, %arg13: memref<2x1x32xf32, #tpu.memory_space<vmem>>, %arg14: memref<2x32x128xbf16, #tpu.memory_space<vmem>>, %arg15: memref<2x1x128xf32, #tpu.memory_space<vmem>>, %arg16: memref<2x128x32xbf16, #tpu.memory_space<vmem>>, %arg17: memref<2x1x32xf32, #tpu.memory_space<vmem>>, %arg18: memref<1x32xf32, #tpu.memory_space<vmem>>, %arg19: memref<1x32xf32, #tpu.memory_space<vmem>>, %arg20: memref<32x16xbf16, #tpu.memory_space<vmem>>, %arg21: memref<16x5xbf16, #tpu.memory_space<vmem>>, %arg22: memref<1x5xf32, #tpu.memory_space<vmem>>, %arg23: memref<1x1x5xf32, #tpu.memory_space<vmem>>) attributes {dimension_semantics = [#tpu.dimension_semantics<parallel>], iteration_bounds = array<i64: 2>, scalar_prefetch = 0 : i64, scratch_operands = 0 : i64, tpu.core_type = #tpu.core_type<tc>, window_params = [{transform_indices = @transform_0, window_bounds = array<i64: 1, 5, 192>}, {pipeline_mode = #tpu.pipeline_mode<synchronous>, transform_indices = @transform_1, window_bounds = array<i64: 192, 32>}, {pipeline_mode = #tpu.pipeline_mode<synchronous>, transform_indices = @transform_2, window_bounds = array<i64: 5, 32>}, {pipeline_mode = #tpu.pipeline_mode<synchronous>, transform_indices = @transform_3, window_bounds = array<i64: 1, 32>}, {pipeline_mode = #tpu.pipeline_mode<synchronous>, transform_indices = @transform_4, window_bounds = array<i64: 1, 32>}, {pipeline_mode = #tpu.pipeline_mode<synchronous>, transform_indices = @transform_5, window_bounds = array<i64: 2, 1, 32>}, {pipeline_mode = #tpu.pipeline_mode<synchronous>, transform_indices = @transform_6, window_bounds = array<i64: 2, 1, 32>}, {pipeline_mode = #tpu.pipeline_mode<synchronous>, transform_indices = @transform_7, window_bounds = array<i64: 2, 32, 96>}, {pipeline_mode = #tpu.pipeline_mode<synchronous>, transform_indices = @transform_8, window_bounds = array<i64: 2, 1, 96>}, {pipeline_mode = #tpu.pipeline_mode<synchronous>, transform_indices = @transform_9, window_bounds = array<i64: 2, 32, 32>}, {pipeline_mode = #tpu.pipeline_mode<synchronous>, transform_indices = @transform_10, window_bounds = array<i64: 2, 1, 32>}, {pipeline_mode = #tpu.pipeline_mode<synchronous>, transform_indices = @transform_11, window_bounds = array<i64: 2, 1, 32>}, {pipeline_mode = #tpu.pipeline_mode<synchronous>, transform_indices = @transform_12, window_bounds = array<i64: 2, 1, 32>}, {pipeline_mode = #tpu.pipeline_mode<synchronous>, transform_indices = @transform_13, window_bounds = array<i64: 2, 32, 128>}, {pipeline_mode = #tpu.pipeline_mode<synchronous>, transform_indices = @transform_14, window_bounds = array<i64: 2, 1, 128>}, {pipeline_mode = #tpu.pipeline_mode<synchronous>, transform_indices = @transform_15, window_bounds = array<i64: 2, 128, 32>}, {pipeline_mode = #tpu.pipeline_mode<synchronous>, transform_indices = @transform_16, window_bounds = array<i64: 2, 1, 32>}, {pipeline_mode = #tpu.pipeline_mode<synchronous>, transform_indices = @transform_17, window_bounds = array<i64: 1, 32>}, {pipeline_mode = #tpu.pipeline_mode<synchronous>, transform_indices = @transform_18, window_bounds = array<i64: 1, 32>}, {pipeline_mode = #tpu.pipeline_mode<synchronous>, transform_indices = @transform_19, window_bounds = array<i64: 32, 16>}, {pipeline_mode = #tpu.pipeline_mode<synchronous>, transform_indices = @transform_20, window_bounds = array<i64: 16, 5>}, {pipeline_mode = #tpu.pipeline_mode<synchronous>, transform_indices = @transform_21, window_bounds = array<i64: 1, 5>}, {transform_indices = @transform_22, window_bounds = array<i64: 1, 1, 5>}]} {
    %c0 = arith.constant 0 : index
    %c0_0 = arith.constant 0 : index
    %c0_1 = arith.constant 0 : index
    %0 = vector.load %arg1[%c0, %c0_0, %c0_1] : memref<1x5x192xbf16, #tpu.memory_space<vmem>>, vector<1x5x192xbf16>
    %1 = vector.shape_cast %0 : vector<1x5x192xbf16> to vector<5x192xbf16>
    %c0_2 = arith.constant 0 : index
    %c0_3 = arith.constant 0 : index
    %2 = vector.load %arg2[%c0_2, %c0_3] : memref<192x32xbf16, #tpu.memory_space<vmem>>, vector<192x32xbf16>
    %cst = arith.constant dense<0.000000e+00> : vector<5x32xf32>
    %3 = tpu.matmul %1, %2, %cst {dimension_numbers = #tpu.dot_dimension_numbers<[1], [0], [0], [1], [0, 0, 1, 1], [], []>} : vector<5x192xbf16>, vector<192x32xbf16>, vector<5x32xf32> -> vector<5x32xf32>
    %c0_4 = arith.constant 0 : index
    %c0_5 = arith.constant 0 : index
    %4 = vector.load %arg3[%c0_4, %c0_5] : memref<5x32xf32, #tpu.memory_space<vmem>>, vector<5x32xf32>
    %5 = arith.addf %3, %4 : vector<5x32xf32>
    %c0_6 = arith.constant 0 : index
    %c0_7 = arith.constant 0 : index
    %6 = vector.load %arg4[%c0_6, %c0_7] : memref<1x32xf32, #tpu.memory_space<vmem>>, vector<1x32xf32>
    %c0_8 = arith.constant 0 : index
    %c0_9 = arith.constant 0 : index
    %7 = vector.load %arg5[%c0_8, %c0_9] : memref<1x32xf32, #tpu.memory_space<vmem>>, vector<1x32xf32>
    %cst_10 = arith.constant dense<0.000000e+00> : vector<5xf32>
    %8 = vector.multi_reduction <add>, %5, %cst_10 [1] : vector<5x32xf32> to vector<5xf32>
    %9 = vector.shape_cast %8 : vector<5xf32> to vector<5x1xf32>
    %cst_11 = arith.constant 3.200000e+01 : f32
    %10 = vector.broadcast %cst_11 : f32 to vector<5x1xf32>
    %11 = arith.divf %9, %10 : vector<5x1xf32>
    %12 = vector.broadcast %11 : vector<5x1xf32> to vector<5x32xf32>
    %13 = arith.subf %5, %12 : vector<5x32xf32>
    %14 = arith.mulf %13, %13 : vector<5x32xf32>
    %cst_12 = arith.constant dense<0.000000e+00> : vector<5xf32>
    %15 = vector.multi_reduction <add>, %14, %cst_12 [1] : vector<5x32xf32> to vector<5xf32>
    %16 = vector.shape_cast %15 : vector<5xf32> to vector<5x1xf32>
    %cst_13 = arith.constant 3.200000e+01 : f32
    %17 = vector.broadcast %cst_13 : f32 to vector<5x1xf32>
    %18 = arith.divf %16, %17 : vector<5x1xf32>
    %cst_14 = arith.constant 9.99999974E-6 : f32
    %19 = vector.broadcast %cst_14 : f32 to vector<5x1xf32>
    %20 = arith.addf %18, %19 : vector<5x1xf32>
    %21 = math.rsqrt %20 : vector<5x1xf32>
    %22 = vector.broadcast %21 : vector<5x1xf32> to vector<5x32xf32>
    %23 = arith.mulf %13, %22 : vector<5x32xf32>
    %24 = vector.broadcast %6 : vector<1x32xf32> to vector<5x32xf32>
    %25 = arith.mulf %23, %24 : vector<5x32xf32>
    %26 = vector.broadcast %7 : vector<1x32xf32> to vector<5x32xf32>
    %27 = arith.addf %25, %26 : vector<5x32xf32>
    %c0_15 = arith.constant 0 : index
    %c0_16 = arith.constant 0 : index
    %c0_17 = arith.constant 0 : index
    %28 = vector.load %arg6[%c0_15, %c0_16, %c0_17] : memref<2x1x32xf32, #tpu.memory_space<vmem>>, vector<1x1x32xf32>
    %29 = vector.shape_cast %28 : vector<1x1x32xf32> to vector<1x32xf32>
    %c0_18 = arith.constant 0 : index
    %c0_19 = arith.constant 0 : index
    %c0_20 = arith.constant 0 : index
    %30 = vector.load %arg7[%c0_18, %c0_19, %c0_20] : memref<2x1x32xf32, #tpu.memory_space<vmem>>, vector<1x1x32xf32>
    %31 = vector.shape_cast %30 : vector<1x1x32xf32> to vector<1x32xf32>
    %cst_21 = arith.constant dense<0.000000e+00> : vector<5xf32>
    %32 = vector.multi_reduction <add>, %27, %cst_21 [1] : vector<5x32xf32> to vector<5xf32>
    %33 = vector.shape_cast %32 : vector<5xf32> to vector<5x1xf32>
    %cst_22 = arith.constant 3.200000e+01 : f32
    %34 = vector.broadcast %cst_22 : f32 to vector<5x1xf32>
    %35 = arith.divf %33, %34 : vector<5x1xf32>
    %36 = vector.broadcast %35 : vector<5x1xf32> to vector<5x32xf32>
    %37 = arith.subf %27, %36 : vector<5x32xf32>
    %38 = arith.mulf %37, %37 : vector<5x32xf32>
    %cst_23 = arith.constant dense<0.000000e+00> : vector<5xf32>
    %39 = vector.multi_reduction <add>, %38, %cst_23 [1] : vector<5x32xf32> to vector<5xf32>
    %40 = vector.shape_cast %39 : vector<5xf32> to vector<5x1xf32>
    %cst_24 = arith.constant 3.200000e+01 : f32
    %41 = vector.broadcast %cst_24 : f32 to vector<5x1xf32>
    %42 = arith.divf %40, %41 : vector<5x1xf32>
    %cst_25 = arith.constant 9.99999974E-6 : f32
    %43 = vector.broadcast %cst_25 : f32 to vector<5x1xf32>
    %44 = arith.addf %42, %43 : vector<5x1xf32>
    %45 = math.rsqrt %44 : vector<5x1xf32>
    %46 = vector.broadcast %45 : vector<5x1xf32> to vector<5x32xf32>
    %47 = arith.mulf %37, %46 : vector<5x32xf32>
    %48 = vector.broadcast %29 : vector<1x32xf32> to vector<5x32xf32>
    %49 = arith.mulf %47, %48 : vector<5x32xf32>
    %50 = vector.broadcast %31 : vector<1x32xf32> to vector<5x32xf32>
    %51 = arith.addf %49, %50 : vector<5x32xf32>
    %52 = arith.truncf %51 : vector<5x32xf32> to vector<5x32xbf16>
    %c0_26 = arith.constant 0 : index
    %c0_27 = arith.constant 0 : index
    %c0_28 = arith.constant 0 : index
    %53 = vector.load %arg8[%c0_26, %c0_27, %c0_28] : memref<2x32x96xbf16, #tpu.memory_space<vmem>>, vector<1x32x96xbf16>
    %54 = vector.shape_cast %53 : vector<1x32x96xbf16> to vector<32x96xbf16>
    %cst_29 = arith.constant dense<0.000000e+00> : vector<5x96xf32>
    %55 = tpu.matmul %52, %54, %cst_29 {dimension_numbers = #tpu.dot_dimension_numbers<[1], [0], [0], [1], [0, 0, 1, 1], [], []>} : vector<5x32xbf16>, vector<32x96xbf16>, vector<5x96xf32> -> vector<5x96xf32>
    %c0_30 = arith.constant 0 : index
    %c0_31 = arith.constant 0 : index
    %c0_32 = arith.constant 0 : index
    %56 = vector.load %arg9[%c0_30, %c0_31, %c0_32] : memref<2x1x96xf32, #tpu.memory_space<vmem>>, vector<1x1x96xf32>
    %57 = vector.shape_cast %56 : vector<1x1x96xf32> to vector<1x96xf32>
    %58 = vector.broadcast %57 : vector<1x96xf32> to vector<5x96xf32>
    %59 = arith.addf %55, %58 : vector<5x96xf32>
    %60 = vector.extract_strided_slice %59 {offsets = [0, 0], sizes = [5, 32], strides = [1, 1]} : vector<5x96xf32> to vector<5x32xf32>
    %61 = arith.truncf %60 : vector<5x32xf32> to vector<5x32xbf16>
    %62 = vector.extract_strided_slice %59 {offsets = [0, 32], sizes = [5, 32], strides = [1, 1]} : vector<5x96xf32> to vector<5x32xf32>
    %63 = arith.truncf %62 : vector<5x32xf32> to vector<5x32xbf16>
    %64 = vector.extract_strided_slice %59 {offsets = [0, 64], sizes = [5, 32], strides = [1, 1]} : vector<5x96xf32> to vector<5x32xf32>
    %65 = arith.truncf %64 : vector<5x32xf32> to vector<5x32xbf16>
    %c0_33 = arith.constant 0 : index
    %c0_34 = arith.constant 0 : index
    %c0_35 = arith.constant 0 : index
    %66 = vector.load %arg10[%c0_33, %c0_34, %c0_35] : memref<2x32x32xbf16, #tpu.memory_space<vmem>>, vector<1x32x32xbf16>
    %67 = vector.shape_cast %66 : vector<1x32x32xbf16> to vector<32x32xbf16>
    %cst_36 = arith.constant 0.000000e+00 : f32
    %68 = vector.broadcast %cst_36 : f32 to vector<5x32xf32>
    %69 = vector.extract_strided_slice %61 {offsets = [0, 0], sizes = [5, 8], strides = [1, 1]} : vector<5x32xbf16> to vector<5x8xbf16>
    %70 = vector.extract_strided_slice %63 {offsets = [0, 0], sizes = [5, 8], strides = [1, 1]} : vector<5x32xbf16> to vector<5x8xbf16>
    %71 = vector.extract_strided_slice %65 {offsets = [0, 0], sizes = [5, 8], strides = [1, 1]} : vector<5x32xbf16> to vector<5x8xbf16>
    %cst_37 = arith.constant dense<0.000000e+00> : vector<5x5xf32>
    %72 = tpu.matmul %69, %70, %cst_37 {dimension_numbers = #tpu.dot_dimension_numbers<[1], [1], [0], [0], [0, 0, 1, 0], [], []>} : vector<5x8xbf16>, vector<5x8xbf16>, vector<5x5xf32> -> vector<5x5xf32>
    %cst_38 = arith.constant 0.353553385 : f32
    %73 = vector.broadcast %cst_38 : f32 to vector<5x5xf32>
    %74 = arith.mulf %72, %73 : vector<5x5xf32>
    %cst_39 = arith.constant dense<0xFF800000> : vector<5xf32>
    %75 = vector.multi_reduction <maximumf>, %74, %cst_39 [1] : vector<5x5xf32> to vector<5xf32>
    %76 = vector.shape_cast %75 : vector<5xf32> to vector<5x1xf32>
    %77 = vector.broadcast %76 : vector<5x1xf32> to vector<5x5xf32>
    %78 = arith.subf %74, %77 : vector<5x5xf32>
    %79 = math.exp %78 : vector<5x5xf32>
    %cst_40 = arith.constant dense<0.000000e+00> : vector<5xf32>
    %80 = vector.multi_reduction <add>, %79, %cst_40 [1] : vector<5x5xf32> to vector<5xf32>
    %81 = vector.shape_cast %80 : vector<5xf32> to vector<5x1xf32>
    %82 = tpu.reciprocal %81 {approx = true} : vector<5x1xf32> -> vector<5x1xf32>
    %83 = vector.broadcast %82 : vector<5x1xf32> to vector<5x5xf32>
    %84 = arith.mulf %79, %83 : vector<5x5xf32>
    %85 = arith.truncf %84 : vector<5x5xf32> to vector<5x5xbf16>
    %cst_41 = arith.constant dense<0.000000e+00> : vector<5x8xf32>
    %86 = tpu.matmul %85, %71, %cst_41 {dimension_numbers = #tpu.dot_dimension_numbers<[1], [0], [0], [1], [0, 0, 1, 1], [], []>} : vector<5x5xbf16>, vector<5x8xbf16>, vector<5x8xf32> -> vector<5x8xf32>
    %87 = arith.truncf %86 : vector<5x8xf32> to vector<5x8xbf16>
    %88 = vector.extract_strided_slice %67 {offsets = [0, 0], sizes = [8, 32], strides = [1, 1]} : vector<32x32xbf16> to vector<8x32xbf16>
    %cst_42 = arith.constant dense<0.000000e+00> : vector<5x32xf32>
    %89 = tpu.matmul %87, %88, %cst_42 {dimension_numbers = #tpu.dot_dimension_numbers<[1], [0], [0], [1], [0, 0, 1, 1], [], []>} : vector<5x8xbf16>, vector<8x32xbf16>, vector<5x32xf32> -> vector<5x32xf32>
    %90 = arith.addf %68, %89 : vector<5x32xf32>
    %91 = vector.extract_strided_slice %61 {offsets = [0, 8], sizes = [5, 8], strides = [1, 1]} : vector<5x32xbf16> to vector<5x8xbf16>
    %92 = vector.extract_strided_slice %63 {offsets = [0, 8], sizes = [5, 8], strides = [1, 1]} : vector<5x32xbf16> to vector<5x8xbf16>
    %93 = vector.extract_strided_slice %65 {offsets = [0, 8], sizes = [5, 8], strides = [1, 1]} : vector<5x32xbf16> to vector<5x8xbf16>
    %cst_43 = arith.constant dense<0.000000e+00> : vector<5x5xf32>
    %94 = tpu.matmul %91, %92, %cst_43 {dimension_numbers = #tpu.dot_dimension_numbers<[1], [1], [0], [0], [0, 0, 1, 0], [], []>} : vector<5x8xbf16>, vector<5x8xbf16>, vector<5x5xf32> -> vector<5x5xf32>
    %cst_44 = arith.constant 0.353553385 : f32
    %95 = vector.broadcast %cst_44 : f32 to vector<5x5xf32>
    %96 = arith.mulf %94, %95 : vector<5x5xf32>
    %cst_45 = arith.constant dense<0xFF800000> : vector<5xf32>
    %97 = vector.multi_reduction <maximumf>, %96, %cst_45 [1] : vector<5x5xf32> to vector<5xf32>
    %98 = vector.shape_cast %97 : vector<5xf32> to vector<5x1xf32>
    %99 = vector.broadcast %98 : vector<5x1xf32> to vector<5x5xf32>
    %100 = arith.subf %96, %99 : vector<5x5xf32>
    %101 = math.exp %100 : vector<5x5xf32>
    %cst_46 = arith.constant dense<0.000000e+00> : vector<5xf32>
    %102 = vector.multi_reduction <add>, %101, %cst_46 [1] : vector<5x5xf32> to vector<5xf32>
    %103 = vector.shape_cast %102 : vector<5xf32> to vector<5x1xf32>
    %104 = tpu.reciprocal %103 {approx = true} : vector<5x1xf32> -> vector<5x1xf32>
    %105 = vector.broadcast %104 : vector<5x1xf32> to vector<5x5xf32>
    %106 = arith.mulf %101, %105 : vector<5x5xf32>
    %107 = arith.truncf %106 : vector<5x5xf32> to vector<5x5xbf16>
    %cst_47 = arith.constant dense<0.000000e+00> : vector<5x8xf32>
    %108 = tpu.matmul %107, %93, %cst_47 {dimension_numbers = #tpu.dot_dimension_numbers<[1], [0], [0], [1], [0, 0, 1, 1], [], []>} : vector<5x5xbf16>, vector<5x8xbf16>, vector<5x8xf32> -> vector<5x8xf32>
    %109 = arith.truncf %108 : vector<5x8xf32> to vector<5x8xbf16>
    %110 = vector.extract_strided_slice %67 {offsets = [8, 0], sizes = [8, 32], strides = [1, 1]} : vector<32x32xbf16> to vector<8x32xbf16>
    %cst_48 = arith.constant dense<0.000000e+00> : vector<5x32xf32>
    %111 = tpu.matmul %109, %110, %cst_48 {dimension_numbers = #tpu.dot_dimension_numbers<[1], [0], [0], [1], [0, 0, 1, 1], [], []>} : vector<5x8xbf16>, vector<8x32xbf16>, vector<5x32xf32> -> vector<5x32xf32>
    %112 = arith.addf %90, %111 : vector<5x32xf32>
    %113 = vector.extract_strided_slice %61 {offsets = [0, 16], sizes = [5, 8], strides = [1, 1]} : vector<5x32xbf16> to vector<5x8xbf16>
    %114 = vector.extract_strided_slice %63 {offsets = [0, 16], sizes = [5, 8], strides = [1, 1]} : vector<5x32xbf16> to vector<5x8xbf16>
    %115 = vector.extract_strided_slice %65 {offsets = [0, 16], sizes = [5, 8], strides = [1, 1]} : vector<5x32xbf16> to vector<5x8xbf16>
    %cst_49 = arith.constant dense<0.000000e+00> : vector<5x5xf32>
    %116 = tpu.matmul %113, %114, %cst_49 {dimension_numbers = #tpu.dot_dimension_numbers<[1], [1], [0], [0], [0, 0, 1, 0], [], []>} : vector<5x8xbf16>, vector<5x8xbf16>, vector<5x5xf32> -> vector<5x5xf32>
    %cst_50 = arith.constant 0.353553385 : f32
    %117 = vector.broadcast %cst_50 : f32 to vector<5x5xf32>
    %118 = arith.mulf %116, %117 : vector<5x5xf32>
    %cst_51 = arith.constant dense<0xFF800000> : vector<5xf32>
    %119 = vector.multi_reduction <maximumf>, %118, %cst_51 [1] : vector<5x5xf32> to vector<5xf32>
    %120 = vector.shape_cast %119 : vector<5xf32> to vector<5x1xf32>
    %121 = vector.broadcast %120 : vector<5x1xf32> to vector<5x5xf32>
    %122 = arith.subf %118, %121 : vector<5x5xf32>
    %123 = math.exp %122 : vector<5x5xf32>
    %cst_52 = arith.constant dense<0.000000e+00> : vector<5xf32>
    %124 = vector.multi_reduction <add>, %123, %cst_52 [1] : vector<5x5xf32> to vector<5xf32>
    %125 = vector.shape_cast %124 : vector<5xf32> to vector<5x1xf32>
    %126 = tpu.reciprocal %125 {approx = true} : vector<5x1xf32> -> vector<5x1xf32>
    %127 = vector.broadcast %126 : vector<5x1xf32> to vector<5x5xf32>
    %128 = arith.mulf %123, %127 : vector<5x5xf32>
    %129 = arith.truncf %128 : vector<5x5xf32> to vector<5x5xbf16>
    %cst_53 = arith.constant dense<0.000000e+00> : vector<5x8xf32>
    %130 = tpu.matmul %129, %115, %cst_53 {dimension_numbers = #tpu.dot_dimension_numbers<[1], [0], [0], [1], [0, 0, 1, 1], [], []>} : vector<5x5xbf16>, vector<5x8xbf16>, vector<5x8xf32> -> vector<5x8xf32>
    %131 = arith.truncf %130 : vector<5x8xf32> to vector<5x8xbf16>
    %132 = vector.extract_strided_slice %67 {offsets = [16, 0], sizes = [8, 32], strides = [1, 1]} : vector<32x32xbf16> to vector<8x32xbf16>
    %cst_54 = arith.constant dense<0.000000e+00> : vector<5x32xf32>
    %133 = tpu.matmul %131, %132, %cst_54 {dimension_numbers = #tpu.dot_dimension_numbers<[1], [0], [0], [1], [0, 0, 1, 1], [], []>} : vector<5x8xbf16>, vector<8x32xbf16>, vector<5x32xf32> -> vector<5x32xf32>
    %134 = arith.addf %112, %133 : vector<5x32xf32>
    %135 = vector.extract_strided_slice %61 {offsets = [0, 24], sizes = [5, 8], strides = [1, 1]} : vector<5x32xbf16> to vector<5x8xbf16>
    %136 = vector.extract_strided_slice %63 {offsets = [0, 24], sizes = [5, 8], strides = [1, 1]} : vector<5x32xbf16> to vector<5x8xbf16>
    %137 = vector.extract_strided_slice %65 {offsets = [0, 24], sizes = [5, 8], strides = [1, 1]} : vector<5x32xbf16> to vector<5x8xbf16>
    %cst_55 = arith.constant dense<0.000000e+00> : vector<5x5xf32>
    %138 = tpu.matmul %135, %136, %cst_55 {dimension_numbers = #tpu.dot_dimension_numbers<[1], [1], [0], [0], [0, 0, 1, 0], [], []>} : vector<5x8xbf16>, vector<5x8xbf16>, vector<5x5xf32> -> vector<5x5xf32>
    %cst_56 = arith.constant 0.353553385 : f32
    %139 = vector.broadcast %cst_56 : f32 to vector<5x5xf32>
    %140 = arith.mulf %138, %139 : vector<5x5xf32>
    %cst_57 = arith.constant dense<0xFF800000> : vector<5xf32>
    %141 = vector.multi_reduction <maximumf>, %140, %cst_57 [1] : vector<5x5xf32> to vector<5xf32>
    %142 = vector.shape_cast %141 : vector<5xf32> to vector<5x1xf32>
    %143 = vector.broadcast %142 : vector<5x1xf32> to vector<5x5xf32>
    %144 = arith.subf %140, %143 : vector<5x5xf32>
    %145 = math.exp %144 : vector<5x5xf32>
    %cst_58 = arith.constant dense<0.000000e+00> : vector<5xf32>
    %146 = vector.multi_reduction <add>, %145, %cst_58 [1] : vector<5x5xf32> to vector<5xf32>
    %147 = vector.shape_cast %146 : vector<5xf32> to vector<5x1xf32>
    %148 = tpu.reciprocal %147 {approx = true} : vector<5x1xf32> -> vector<5x1xf32>
    %149 = vector.broadcast %148 : vector<5x1xf32> to vector<5x5xf32>
    %150 = arith.mulf %145, %149 : vector<5x5xf32>
    %151 = arith.truncf %150 : vector<5x5xf32> to vector<5x5xbf16>
    %cst_59 = arith.constant dense<0.000000e+00> : vector<5x8xf32>
    %152 = tpu.matmul %151, %137, %cst_59 {dimension_numbers = #tpu.dot_dimension_numbers<[1], [0], [0], [1], [0, 0, 1, 1], [], []>} : vector<5x5xbf16>, vector<5x8xbf16>, vector<5x8xf32> -> vector<5x8xf32>
    %153 = arith.truncf %152 : vector<5x8xf32> to vector<5x8xbf16>
    %154 = vector.extract_strided_slice %67 {offsets = [24, 0], sizes = [8, 32], strides = [1, 1]} : vector<32x32xbf16> to vector<8x32xbf16>
    %cst_60 = arith.constant dense<0.000000e+00> : vector<5x32xf32>
    %155 = tpu.matmul %153, %154, %cst_60 {dimension_numbers = #tpu.dot_dimension_numbers<[1], [0], [0], [1], [0, 0, 1, 1], [], []>} : vector<5x8xbf16>, vector<8x32xbf16>, vector<5x32xf32> -> vector<5x32xf32>
    %156 = arith.addf %134, %155 : vector<5x32xf32>
    %157 = arith.addf %27, %156 : vector<5x32xf32>
    %c0_61 = arith.constant 0 : index
    %c0_62 = arith.constant 0 : index
    %c0_63 = arith.constant 0 : index
    %158 = vector.load %arg11[%c0_61, %c0_62, %c0_63] : memref<2x1x32xf32, #tpu.memory_space<vmem>>, vector<1x1x32xf32>
    %159 = vector.shape_cast %158 : vector<1x1x32xf32> to vector<1x32xf32>
    %160 = vector.broadcast %159 : vector<1x32xf32> to vector<5x32xf32>
    %161 = arith.addf %157, %160 : vector<5x32xf32>
    %c0_64 = arith.constant 0 : index
    %c0_65 = arith.constant 0 : index
    %c0_66 = arith.constant 0 : index
    %162 = vector.load %arg12[%c0_64, %c0_65, %c0_66] : memref<2x1x32xf32, #tpu.memory_space<vmem>>, vector<1x1x32xf32>
    %163 = vector.shape_cast %162 : vector<1x1x32xf32> to vector<1x32xf32>
    %c0_67 = arith.constant 0 : index
    %c0_68 = arith.constant 0 : index
    %c0_69 = arith.constant 0 : index
    %164 = vector.load %arg13[%c0_67, %c0_68, %c0_69] : memref<2x1x32xf32, #tpu.memory_space<vmem>>, vector<1x1x32xf32>
    %165 = vector.shape_cast %164 : vector<1x1x32xf32> to vector<1x32xf32>
    %cst_70 = arith.constant dense<0.000000e+00> : vector<5xf32>
    %166 = vector.multi_reduction <add>, %161, %cst_70 [1] : vector<5x32xf32> to vector<5xf32>
    %167 = vector.shape_cast %166 : vector<5xf32> to vector<5x1xf32>
    %cst_71 = arith.constant 3.200000e+01 : f32
    %168 = vector.broadcast %cst_71 : f32 to vector<5x1xf32>
    %169 = arith.divf %167, %168 : vector<5x1xf32>
    %170 = vector.broadcast %169 : vector<5x1xf32> to vector<5x32xf32>
    %171 = arith.subf %161, %170 : vector<5x32xf32>
    %172 = arith.mulf %171, %171 : vector<5x32xf32>
    %cst_72 = arith.constant dense<0.000000e+00> : vector<5xf32>
    %173 = vector.multi_reduction <add>, %172, %cst_72 [1] : vector<5x32xf32> to vector<5xf32>
    %174 = vector.shape_cast %173 : vector<5xf32> to vector<5x1xf32>
    %cst_73 = arith.constant 3.200000e+01 : f32
    %175 = vector.broadcast %cst_73 : f32 to vector<5x1xf32>
    %176 = arith.divf %174, %175 : vector<5x1xf32>
    %cst_74 = arith.constant 9.99999974E-6 : f32
    %177 = vector.broadcast %cst_74 : f32 to vector<5x1xf32>
    %178 = arith.addf %176, %177 : vector<5x1xf32>
    %179 = math.rsqrt %178 : vector<5x1xf32>
    %180 = vector.broadcast %179 : vector<5x1xf32> to vector<5x32xf32>
    %181 = arith.mulf %171, %180 : vector<5x32xf32>
    %182 = vector.broadcast %163 : vector<1x32xf32> to vector<5x32xf32>
    %183 = arith.mulf %181, %182 : vector<5x32xf32>
    %184 = vector.broadcast %165 : vector<1x32xf32> to vector<5x32xf32>
    %185 = arith.addf %183, %184 : vector<5x32xf32>
    %186 = arith.truncf %185 : vector<5x32xf32> to vector<5x32xbf16>
    %c0_75 = arith.constant 0 : index
    %c0_76 = arith.constant 0 : index
    %c0_77 = arith.constant 0 : index
    %187 = vector.load %arg14[%c0_75, %c0_76, %c0_77] : memref<2x32x128xbf16, #tpu.memory_space<vmem>>, vector<1x32x128xbf16>
    %188 = vector.shape_cast %187 : vector<1x32x128xbf16> to vector<32x128xbf16>
    %cst_78 = arith.constant dense<0.000000e+00> : vector<5x128xf32>
    %189 = tpu.matmul %186, %188, %cst_78 {dimension_numbers = #tpu.dot_dimension_numbers<[1], [0], [0], [1], [0, 0, 1, 1], [], []>} : vector<5x32xbf16>, vector<32x128xbf16>, vector<5x128xf32> -> vector<5x128xf32>
    %c0_79 = arith.constant 0 : index
    %c0_80 = arith.constant 0 : index
    %c0_81 = arith.constant 0 : index
    %190 = vector.load %arg15[%c0_79, %c0_80, %c0_81] : memref<2x1x128xf32, #tpu.memory_space<vmem>>, vector<1x1x128xf32>
    %191 = vector.shape_cast %190 : vector<1x1x128xf32> to vector<1x128xf32>
    %192 = vector.broadcast %191 : vector<1x128xf32> to vector<5x128xf32>
    %193 = arith.addf %189, %192 : vector<5x128xf32>
    %cst_82 = arith.constant 1.702000e+00 : f32
    %194 = vector.broadcast %cst_82 : f32 to vector<5x128xf32>
    %195 = arith.mulf %194, %193 : vector<5x128xf32>
    %196 = arith.negf %195 : vector<5x128xf32>
    %197 = math.exp %196 : vector<5x128xf32>
    %cst_83 = arith.constant 1.000000e+00 : f32
    %198 = vector.broadcast %cst_83 : f32 to vector<5x128xf32>
    %199 = arith.addf %198, %197 : vector<5x128xf32>
    %200 = arith.divf %198, %199 : vector<5x128xf32>
    %201 = arith.mulf %193, %200 : vector<5x128xf32>
    %202 = arith.truncf %201 : vector<5x128xf32> to vector<5x128xbf16>
    %c0_84 = arith.constant 0 : index
    %c0_85 = arith.constant 0 : index
    %c0_86 = arith.constant 0 : index
    %203 = vector.load %arg16[%c0_84, %c0_85, %c0_86] : memref<2x128x32xbf16, #tpu.memory_space<vmem>>, vector<1x128x32xbf16>
    %204 = vector.shape_cast %203 : vector<1x128x32xbf16> to vector<128x32xbf16>
    %cst_87 = arith.constant dense<0.000000e+00> : vector<5x32xf32>
    %205 = tpu.matmul %202, %204, %cst_87 {dimension_numbers = #tpu.dot_dimension_numbers<[1], [0], [0], [1], [0, 0, 1, 1], [], []>} : vector<5x128xbf16>, vector<128x32xbf16>, vector<5x32xf32> -> vector<5x32xf32>
    %c0_88 = arith.constant 0 : index
    %c0_89 = arith.constant 0 : index
    %c0_90 = arith.constant 0 : index
    %206 = vector.load %arg17[%c0_88, %c0_89, %c0_90] : memref<2x1x32xf32, #tpu.memory_space<vmem>>, vector<1x1x32xf32>
    %207 = vector.shape_cast %206 : vector<1x1x32xf32> to vector<1x32xf32>
    %208 = vector.broadcast %207 : vector<1x32xf32> to vector<5x32xf32>
    %209 = arith.addf %205, %208 : vector<5x32xf32>
    %210 = arith.addf %161, %209 : vector<5x32xf32>
    %c1 = arith.constant 1 : index
    %c0_91 = arith.constant 0 : index
    %c0_92 = arith.constant 0 : index
    %211 = vector.load %arg6[%c1, %c0_91, %c0_92] : memref<2x1x32xf32, #tpu.memory_space<vmem>>, vector<1x1x32xf32>
    %212 = vector.shape_cast %211 : vector<1x1x32xf32> to vector<1x32xf32>
    %c1_93 = arith.constant 1 : index
    %c0_94 = arith.constant 0 : index
    %c0_95 = arith.constant 0 : index
    %213 = vector.load %arg7[%c1_93, %c0_94, %c0_95] : memref<2x1x32xf32, #tpu.memory_space<vmem>>, vector<1x1x32xf32>
    %214 = vector.shape_cast %213 : vector<1x1x32xf32> to vector<1x32xf32>
    %cst_96 = arith.constant dense<0.000000e+00> : vector<5xf32>
    %215 = vector.multi_reduction <add>, %210, %cst_96 [1] : vector<5x32xf32> to vector<5xf32>
    %216 = vector.shape_cast %215 : vector<5xf32> to vector<5x1xf32>
    %cst_97 = arith.constant 3.200000e+01 : f32
    %217 = vector.broadcast %cst_97 : f32 to vector<5x1xf32>
    %218 = arith.divf %216, %217 : vector<5x1xf32>
    %219 = vector.broadcast %218 : vector<5x1xf32> to vector<5x32xf32>
    %220 = arith.subf %210, %219 : vector<5x32xf32>
    %221 = arith.mulf %220, %220 : vector<5x32xf32>
    %cst_98 = arith.constant dense<0.000000e+00> : vector<5xf32>
    %222 = vector.multi_reduction <add>, %221, %cst_98 [1] : vector<5x32xf32> to vector<5xf32>
    %223 = vector.shape_cast %222 : vector<5xf32> to vector<5x1xf32>
    %cst_99 = arith.constant 3.200000e+01 : f32
    %224 = vector.broadcast %cst_99 : f32 to vector<5x1xf32>
    %225 = arith.divf %223, %224 : vector<5x1xf32>
    %cst_100 = arith.constant 9.99999974E-6 : f32
    %226 = vector.broadcast %cst_100 : f32 to vector<5x1xf32>
    %227 = arith.addf %225, %226 : vector<5x1xf32>
    %228 = math.rsqrt %227 : vector<5x1xf32>
    %229 = vector.broadcast %228 : vector<5x1xf32> to vector<5x32xf32>
    %230 = arith.mulf %220, %229 : vector<5x32xf32>
    %231 = vector.broadcast %212 : vector<1x32xf32> to vector<5x32xf32>
    %232 = arith.mulf %230, %231 : vector<5x32xf32>
    %233 = vector.broadcast %214 : vector<1x32xf32> to vector<5x32xf32>
    %234 = arith.addf %232, %233 : vector<5x32xf32>
    %235 = arith.truncf %234 : vector<5x32xf32> to vector<5x32xbf16>
    %c1_101 = arith.constant 1 : index
    %c0_102 = arith.constant 0 : index
    %c0_103 = arith.constant 0 : index
    %236 = vector.load %arg8[%c1_101, %c0_102, %c0_103] : memref<2x32x96xbf16, #tpu.memory_space<vmem>>, vector<1x32x96xbf16>
    %237 = vector.shape_cast %236 : vector<1x32x96xbf16> to vector<32x96xbf16>
    %cst_104 = arith.constant dense<0.000000e+00> : vector<5x96xf32>
    %238 = tpu.matmul %235, %237, %cst_104 {dimension_numbers = #tpu.dot_dimension_numbers<[1], [0], [0], [1], [0, 0, 1, 1], [], []>} : vector<5x32xbf16>, vector<32x96xbf16>, vector<5x96xf32> -> vector<5x96xf32>
    %c1_105 = arith.constant 1 : index
    %c0_106 = arith.constant 0 : index
    %c0_107 = arith.constant 0 : index
    %239 = vector.load %arg9[%c1_105, %c0_106, %c0_107] : memref<2x1x96xf32, #tpu.memory_space<vmem>>, vector<1x1x96xf32>
    %240 = vector.shape_cast %239 : vector<1x1x96xf32> to vector<1x96xf32>
    %241 = vector.broadcast %240 : vector<1x96xf32> to vector<5x96xf32>
    %242 = arith.addf %238, %241 : vector<5x96xf32>
    %243 = vector.extract_strided_slice %242 {offsets = [0, 0], sizes = [5, 32], strides = [1, 1]} : vector<5x96xf32> to vector<5x32xf32>
    %244 = arith.truncf %243 : vector<5x32xf32> to vector<5x32xbf16>
    %245 = vector.extract_strided_slice %242 {offsets = [0, 32], sizes = [5, 32], strides = [1, 1]} : vector<5x96xf32> to vector<5x32xf32>
    %246 = arith.truncf %245 : vector<5x32xf32> to vector<5x32xbf16>
    %247 = vector.extract_strided_slice %242 {offsets = [0, 64], sizes = [5, 32], strides = [1, 1]} : vector<5x96xf32> to vector<5x32xf32>
    %248 = arith.truncf %247 : vector<5x32xf32> to vector<5x32xbf16>
    %c1_108 = arith.constant 1 : index
    %c0_109 = arith.constant 0 : index
    %c0_110 = arith.constant 0 : index
    %249 = vector.load %arg10[%c1_108, %c0_109, %c0_110] : memref<2x32x32xbf16, #tpu.memory_space<vmem>>, vector<1x32x32xbf16>
    %250 = vector.shape_cast %249 : vector<1x32x32xbf16> to vector<32x32xbf16>
    %cst_111 = arith.constant 0.000000e+00 : f32
    %251 = vector.broadcast %cst_111 : f32 to vector<5x32xf32>
    %252 = vector.extract_strided_slice %244 {offsets = [0, 0], sizes = [5, 8], strides = [1, 1]} : vector<5x32xbf16> to vector<5x8xbf16>
    %253 = vector.extract_strided_slice %246 {offsets = [0, 0], sizes = [5, 8], strides = [1, 1]} : vector<5x32xbf16> to vector<5x8xbf16>
    %254 = vector.extract_strided_slice %248 {offsets = [0, 0], sizes = [5, 8], strides = [1, 1]} : vector<5x32xbf16> to vector<5x8xbf16>
    %cst_112 = arith.constant dense<0.000000e+00> : vector<5x5xf32>
    %255 = tpu.matmul %252, %253, %cst_112 {dimension_numbers = #tpu.dot_dimension_numbers<[1], [1], [0], [0], [0, 0, 1, 0], [], []>} : vector<5x8xbf16>, vector<5x8xbf16>, vector<5x5xf32> -> vector<5x5xf32>
    %cst_113 = arith.constant 0.353553385 : f32
    %256 = vector.broadcast %cst_113 : f32 to vector<5x5xf32>
    %257 = arith.mulf %255, %256 : vector<5x5xf32>
    %cst_114 = arith.constant dense<0xFF800000> : vector<5xf32>
    %258 = vector.multi_reduction <maximumf>, %257, %cst_114 [1] : vector<5x5xf32> to vector<5xf32>
    %259 = vector.shape_cast %258 : vector<5xf32> to vector<5x1xf32>
    %260 = vector.broadcast %259 : vector<5x1xf32> to vector<5x5xf32>
    %261 = arith.subf %257, %260 : vector<5x5xf32>
    %262 = math.exp %261 : vector<5x5xf32>
    %cst_115 = arith.constant dense<0.000000e+00> : vector<5xf32>
    %263 = vector.multi_reduction <add>, %262, %cst_115 [1] : vector<5x5xf32> to vector<5xf32>
    %264 = vector.shape_cast %263 : vector<5xf32> to vector<5x1xf32>
    %265 = tpu.reciprocal %264 {approx = true} : vector<5x1xf32> -> vector<5x1xf32>
    %266 = vector.broadcast %265 : vector<5x1xf32> to vector<5x5xf32>
    %267 = arith.mulf %262, %266 : vector<5x5xf32>
    %268 = arith.truncf %267 : vector<5x5xf32> to vector<5x5xbf16>
    %cst_116 = arith.constant dense<0.000000e+00> : vector<5x8xf32>
    %269 = tpu.matmul %268, %254, %cst_116 {dimension_numbers = #tpu.dot_dimension_numbers<[1], [0], [0], [1], [0, 0, 1, 1], [], []>} : vector<5x5xbf16>, vector<5x8xbf16>, vector<5x8xf32> -> vector<5x8xf32>
    %270 = arith.truncf %269 : vector<5x8xf32> to vector<5x8xbf16>
    %271 = vector.extract_strided_slice %250 {offsets = [0, 0], sizes = [8, 32], strides = [1, 1]} : vector<32x32xbf16> to vector<8x32xbf16>
    %cst_117 = arith.constant dense<0.000000e+00> : vector<5x32xf32>
    %272 = tpu.matmul %270, %271, %cst_117 {dimension_numbers = #tpu.dot_dimension_numbers<[1], [0], [0], [1], [0, 0, 1, 1], [], []>} : vector<5x8xbf16>, vector<8x32xbf16>, vector<5x32xf32> -> vector<5x32xf32>
    %273 = arith.addf %251, %272 : vector<5x32xf32>
    %274 = vector.extract_strided_slice %244 {offsets = [0, 8], sizes = [5, 8], strides = [1, 1]} : vector<5x32xbf16> to vector<5x8xbf16>
    %275 = vector.extract_strided_slice %246 {offsets = [0, 8], sizes = [5, 8], strides = [1, 1]} : vector<5x32xbf16> to vector<5x8xbf16>
    %276 = vector.extract_strided_slice %248 {offsets = [0, 8], sizes = [5, 8], strides = [1, 1]} : vector<5x32xbf16> to vector<5x8xbf16>
    %cst_118 = arith.constant dense<0.000000e+00> : vector<5x5xf32>
    %277 = tpu.matmul %274, %275, %cst_118 {dimension_numbers = #tpu.dot_dimension_numbers<[1], [1], [0], [0], [0, 0, 1, 0], [], []>} : vector<5x8xbf16>, vector<5x8xbf16>, vector<5x5xf32> -> vector<5x5xf32>
    %cst_119 = arith.constant 0.353553385 : f32
    %278 = vector.broadcast %cst_119 : f32 to vector<5x5xf32>
    %279 = arith.mulf %277, %278 : vector<5x5xf32>
    %cst_120 = arith.constant dense<0xFF800000> : vector<5xf32>
    %280 = vector.multi_reduction <maximumf>, %279, %cst_120 [1] : vector<5x5xf32> to vector<5xf32>
    %281 = vector.shape_cast %280 : vector<5xf32> to vector<5x1xf32>
    %282 = vector.broadcast %281 : vector<5x1xf32> to vector<5x5xf32>
    %283 = arith.subf %279, %282 : vector<5x5xf32>
    %284 = math.exp %283 : vector<5x5xf32>
    %cst_121 = arith.constant dense<0.000000e+00> : vector<5xf32>
    %285 = vector.multi_reduction <add>, %284, %cst_121 [1] : vector<5x5xf32> to vector<5xf32>
    %286 = vector.shape_cast %285 : vector<5xf32> to vector<5x1xf32>
    %287 = tpu.reciprocal %286 {approx = true} : vector<5x1xf32> -> vector<5x1xf32>
    %288 = vector.broadcast %287 : vector<5x1xf32> to vector<5x5xf32>
    %289 = arith.mulf %284, %288 : vector<5x5xf32>
    %290 = arith.truncf %289 : vector<5x5xf32> to vector<5x5xbf16>
    %cst_122 = arith.constant dense<0.000000e+00> : vector<5x8xf32>
    %291 = tpu.matmul %290, %276, %cst_122 {dimension_numbers = #tpu.dot_dimension_numbers<[1], [0], [0], [1], [0, 0, 1, 1], [], []>} : vector<5x5xbf16>, vector<5x8xbf16>, vector<5x8xf32> -> vector<5x8xf32>
    %292 = arith.truncf %291 : vector<5x8xf32> to vector<5x8xbf16>
    %293 = vector.extract_strided_slice %250 {offsets = [8, 0], sizes = [8, 32], strides = [1, 1]} : vector<32x32xbf16> to vector<8x32xbf16>
    %cst_123 = arith.constant dense<0.000000e+00> : vector<5x32xf32>
    %294 = tpu.matmul %292, %293, %cst_123 {dimension_numbers = #tpu.dot_dimension_numbers<[1], [0], [0], [1], [0, 0, 1, 1], [], []>} : vector<5x8xbf16>, vector<8x32xbf16>, vector<5x32xf32> -> vector<5x32xf32>
    %295 = arith.addf %273, %294 : vector<5x32xf32>
    %296 = vector.extract_strided_slice %244 {offsets = [0, 16], sizes = [5, 8], strides = [1, 1]} : vector<5x32xbf16> to vector<5x8xbf16>
    %297 = vector.extract_strided_slice %246 {offsets = [0, 16], sizes = [5, 8], strides = [1, 1]} : vector<5x32xbf16> to vector<5x8xbf16>
    %298 = vector.extract_strided_slice %248 {offsets = [0, 16], sizes = [5, 8], strides = [1, 1]} : vector<5x32xbf16> to vector<5x8xbf16>
    %cst_124 = arith.constant dense<0.000000e+00> : vector<5x5xf32>
    %299 = tpu.matmul %296, %297, %cst_124 {dimension_numbers = #tpu.dot_dimension_numbers<[1], [1], [0], [0], [0, 0, 1, 0], [], []>} : vector<5x8xbf16>, vector<5x8xbf16>, vector<5x5xf32> -> vector<5x5xf32>
    %cst_125 = arith.constant 0.353553385 : f32
    %300 = vector.broadcast %cst_125 : f32 to vector<5x5xf32>
    %301 = arith.mulf %299, %300 : vector<5x5xf32>
    %cst_126 = arith.constant dense<0xFF800000> : vector<5xf32>
    %302 = vector.multi_reduction <maximumf>, %301, %cst_126 [1] : vector<5x5xf32> to vector<5xf32>
    %303 = vector.shape_cast %302 : vector<5xf32> to vector<5x1xf32>
    %304 = vector.broadcast %303 : vector<5x1xf32> to vector<5x5xf32>
    %305 = arith.subf %301, %304 : vector<5x5xf32>
    %306 = math.exp %305 : vector<5x5xf32>
    %cst_127 = arith.constant dense<0.000000e+00> : vector<5xf32>
    %307 = vector.multi_reduction <add>, %306, %cst_127 [1] : vector<5x5xf32> to vector<5xf32>
    %308 = vector.shape_cast %307 : vector<5xf32> to vector<5x1xf32>
    %309 = tpu.reciprocal %308 {approx = true} : vector<5x1xf32> -> vector<5x1xf32>
    %310 = vector.broadcast %309 : vector<5x1xf32> to vector<5x5xf32>
    %311 = arith.mulf %306, %310 : vector<5x5xf32>
    %312 = arith.truncf %311 : vector<5x5xf32> to vector<5x5xbf16>
    %cst_128 = arith.constant dense<0.000000e+00> : vector<5x8xf32>
    %313 = tpu.matmul %312, %298, %cst_128 {dimension_numbers = #tpu.dot_dimension_numbers<[1], [0], [0], [1], [0, 0, 1, 1], [], []>} : vector<5x5xbf16>, vector<5x8xbf16>, vector<5x8xf32> -> vector<5x8xf32>
    %314 = arith.truncf %313 : vector<5x8xf32> to vector<5x8xbf16>
    %315 = vector.extract_strided_slice %250 {offsets = [16, 0], sizes = [8, 32], strides = [1, 1]} : vector<32x32xbf16> to vector<8x32xbf16>
    %cst_129 = arith.constant dense<0.000000e+00> : vector<5x32xf32>
    %316 = tpu.matmul %314, %315, %cst_129 {dimension_numbers = #tpu.dot_dimension_numbers<[1], [0], [0], [1], [0, 0, 1, 1], [], []>} : vector<5x8xbf16>, vector<8x32xbf16>, vector<5x32xf32> -> vector<5x32xf32>
    %317 = arith.addf %295, %316 : vector<5x32xf32>
    %318 = vector.extract_strided_slice %244 {offsets = [0, 24], sizes = [5, 8], strides = [1, 1]} : vector<5x32xbf16> to vector<5x8xbf16>
    %319 = vector.extract_strided_slice %246 {offsets = [0, 24], sizes = [5, 8], strides = [1, 1]} : vector<5x32xbf16> to vector<5x8xbf16>
    %320 = vector.extract_strided_slice %248 {offsets = [0, 24], sizes = [5, 8], strides = [1, 1]} : vector<5x32xbf16> to vector<5x8xbf16>
    %cst_130 = arith.constant dense<0.000000e+00> : vector<5x5xf32>
    %321 = tpu.matmul %318, %319, %cst_130 {dimension_numbers = #tpu.dot_dimension_numbers<[1], [1], [0], [0], [0, 0, 1, 0], [], []>} : vector<5x8xbf16>, vector<5x8xbf16>, vector<5x5xf32> -> vector<5x5xf32>
    %cst_131 = arith.constant 0.353553385 : f32
    %322 = vector.broadcast %cst_131 : f32 to vector<5x5xf32>
    %323 = arith.mulf %321, %322 : vector<5x5xf32>
    %cst_132 = arith.constant dense<0xFF800000> : vector<5xf32>
    %324 = vector.multi_reduction <maximumf>, %323, %cst_132 [1] : vector<5x5xf32> to vector<5xf32>
    %325 = vector.shape_cast %324 : vector<5xf32> to vector<5x1xf32>
    %326 = vector.broadcast %325 : vector<5x1xf32> to vector<5x5xf32>
    %327 = arith.subf %323, %326 : vector<5x5xf32>
    %328 = math.exp %327 : vector<5x5xf32>
    %cst_133 = arith.constant dense<0.000000e+00> : vector<5xf32>
    %329 = vector.multi_reduction <add>, %328, %cst_133 [1] : vector<5x5xf32> to vector<5xf32>
    %330 = vector.shape_cast %329 : vector<5xf32> to vector<5x1xf32>
    %331 = tpu.reciprocal %330 {approx = true} : vector<5x1xf32> -> vector<5x1xf32>
    %332 = vector.broadcast %331 : vector<5x1xf32> to vector<5x5xf32>
    %333 = arith.mulf %328, %332 : vector<5x5xf32>
    %334 = arith.truncf %333 : vector<5x5xf32> to vector<5x5xbf16>
    %cst_134 = arith.constant dense<0.000000e+00> : vector<5x8xf32>
    %335 = tpu.matmul %334, %320, %cst_134 {dimension_numbers = #tpu.dot_dimension_numbers<[1], [0], [0], [1], [0, 0, 1, 1], [], []>} : vector<5x5xbf16>, vector<5x8xbf16>, vector<5x8xf32> -> vector<5x8xf32>
    %336 = arith.truncf %335 : vector<5x8xf32> to vector<5x8xbf16>
    %337 = vector.extract_strided_slice %250 {offsets = [24, 0], sizes = [8, 32], strides = [1, 1]} : vector<32x32xbf16> to vector<8x32xbf16>
    %cst_135 = arith.constant dense<0.000000e+00> : vector<5x32xf32>
    %338 = tpu.matmul %336, %337, %cst_135 {dimension_numbers = #tpu.dot_dimension_numbers<[1], [0], [0], [1], [0, 0, 1, 1], [], []>} : vector<5x8xbf16>, vector<8x32xbf16>, vector<5x32xf32> -> vector<5x32xf32>
    %339 = arith.addf %317, %338 : vector<5x32xf32>
    %340 = arith.addf %210, %339 : vector<5x32xf32>
    %c1_136 = arith.constant 1 : index
    %c0_137 = arith.constant 0 : index
    %c0_138 = arith.constant 0 : index
    %341 = vector.load %arg11[%c1_136, %c0_137, %c0_138] : memref<2x1x32xf32, #tpu.memory_space<vmem>>, vector<1x1x32xf32>
    %342 = vector.shape_cast %341 : vector<1x1x32xf32> to vector<1x32xf32>
    %343 = vector.broadcast %342 : vector<1x32xf32> to vector<5x32xf32>
    %344 = arith.addf %340, %343 : vector<5x32xf32>
    %c1_139 = arith.constant 1 : index
    %c0_140 = arith.constant 0 : index
    %c0_141 = arith.constant 0 : index
    %345 = vector.load %arg12[%c1_139, %c0_140, %c0_141] : memref<2x1x32xf32, #tpu.memory_space<vmem>>, vector<1x1x32xf32>
    %346 = vector.shape_cast %345 : vector<1x1x32xf32> to vector<1x32xf32>
    %c1_142 = arith.constant 1 : index
    %c0_143 = arith.constant 0 : index
    %c0_144 = arith.constant 0 : index
    %347 = vector.load %arg13[%c1_142, %c0_143, %c0_144] : memref<2x1x32xf32, #tpu.memory_space<vmem>>, vector<1x1x32xf32>
    %348 = vector.shape_cast %347 : vector<1x1x32xf32> to vector<1x32xf32>
    %cst_145 = arith.constant dense<0.000000e+00> : vector<5xf32>
    %349 = vector.multi_reduction <add>, %344, %cst_145 [1] : vector<5x32xf32> to vector<5xf32>
    %350 = vector.shape_cast %349 : vector<5xf32> to vector<5x1xf32>
    %cst_146 = arith.constant 3.200000e+01 : f32
    %351 = vector.broadcast %cst_146 : f32 to vector<5x1xf32>
    %352 = arith.divf %350, %351 : vector<5x1xf32>
    %353 = vector.broadcast %352 : vector<5x1xf32> to vector<5x32xf32>
    %354 = arith.subf %344, %353 : vector<5x32xf32>
    %355 = arith.mulf %354, %354 : vector<5x32xf32>
    %cst_147 = arith.constant dense<0.000000e+00> : vector<5xf32>
    %356 = vector.multi_reduction <add>, %355, %cst_147 [1] : vector<5x32xf32> to vector<5xf32>
    %357 = vector.shape_cast %356 : vector<5xf32> to vector<5x1xf32>
    %cst_148 = arith.constant 3.200000e+01 : f32
    %358 = vector.broadcast %cst_148 : f32 to vector<5x1xf32>
    %359 = arith.divf %357, %358 : vector<5x1xf32>
    %cst_149 = arith.constant 9.99999974E-6 : f32
    %360 = vector.broadcast %cst_149 : f32 to vector<5x1xf32>
    %361 = arith.addf %359, %360 : vector<5x1xf32>
    %362 = math.rsqrt %361 : vector<5x1xf32>
    %363 = vector.broadcast %362 : vector<5x1xf32> to vector<5x32xf32>
    %364 = arith.mulf %354, %363 : vector<5x32xf32>
    %365 = vector.broadcast %346 : vector<1x32xf32> to vector<5x32xf32>
    %366 = arith.mulf %364, %365 : vector<5x32xf32>
    %367 = vector.broadcast %348 : vector<1x32xf32> to vector<5x32xf32>
    %368 = arith.addf %366, %367 : vector<5x32xf32>
    %369 = arith.truncf %368 : vector<5x32xf32> to vector<5x32xbf16>
    %c1_150 = arith.constant 1 : index
    %c0_151 = arith.constant 0 : index
    %c0_152 = arith.constant 0 : index
    %370 = vector.load %arg14[%c1_150, %c0_151, %c0_152] : memref<2x32x128xbf16, #tpu.memory_space<vmem>>, vector<1x32x128xbf16>
    %371 = vector.shape_cast %370 : vector<1x32x128xbf16> to vector<32x128xbf16>
    %cst_153 = arith.constant dense<0.000000e+00> : vector<5x128xf32>
    %372 = tpu.matmul %369, %371, %cst_153 {dimension_numbers = #tpu.dot_dimension_numbers<[1], [0], [0], [1], [0, 0, 1, 1], [], []>} : vector<5x32xbf16>, vector<32x128xbf16>, vector<5x128xf32> -> vector<5x128xf32>
    %c1_154 = arith.constant 1 : index
    %c0_155 = arith.constant 0 : index
    %c0_156 = arith.constant 0 : index
    %373 = vector.load %arg15[%c1_154, %c0_155, %c0_156] : memref<2x1x128xf32, #tpu.memory_space<vmem>>, vector<1x1x128xf32>
    %374 = vector.shape_cast %373 : vector<1x1x128xf32> to vector<1x128xf32>
    %375 = vector.broadcast %374 : vector<1x128xf32> to vector<5x128xf32>
    %376 = arith.addf %372, %375 : vector<5x128xf32>
    %cst_157 = arith.constant 1.702000e+00 : f32
    %377 = vector.broadcast %cst_157 : f32 to vector<5x128xf32>
    %378 = arith.mulf %377, %376 : vector<5x128xf32>
    %379 = arith.negf %378 : vector<5x128xf32>
    %380 = math.exp %379 : vector<5x128xf32>
    %cst_158 = arith.constant 1.000000e+00 : f32
    %381 = vector.broadcast %cst_158 : f32 to vector<5x128xf32>
    %382 = arith.addf %381, %380 : vector<5x128xf32>
    %383 = arith.divf %381, %382 : vector<5x128xf32>
    %384 = arith.mulf %376, %383 : vector<5x128xf32>
    %385 = arith.truncf %384 : vector<5x128xf32> to vector<5x128xbf16>
    %c1_159 = arith.constant 1 : index
    %c0_160 = arith.constant 0 : index
    %c0_161 = arith.constant 0 : index
    %386 = vector.load %arg16[%c1_159, %c0_160, %c0_161] : memref<2x128x32xbf16, #tpu.memory_space<vmem>>, vector<1x128x32xbf16>
    %387 = vector.shape_cast %386 : vector<1x128x32xbf16> to vector<128x32xbf16>
    %cst_162 = arith.constant dense<0.000000e+00> : vector<5x32xf32>
    %388 = tpu.matmul %385, %387, %cst_162 {dimension_numbers = #tpu.dot_dimension_numbers<[1], [0], [0], [1], [0, 0, 1, 1], [], []>} : vector<5x128xbf16>, vector<128x32xbf16>, vector<5x32xf32> -> vector<5x32xf32>
    %c1_163 = arith.constant 1 : index
    %c0_164 = arith.constant 0 : index
    %c0_165 = arith.constant 0 : index
    %389 = vector.load %arg17[%c1_163, %c0_164, %c0_165] : memref<2x1x32xf32, #tpu.memory_space<vmem>>, vector<1x1x32xf32>
    %390 = vector.shape_cast %389 : vector<1x1x32xf32> to vector<1x32xf32>
    %391 = vector.broadcast %390 : vector<1x32xf32> to vector<5x32xf32>
    %392 = arith.addf %388, %391 : vector<5x32xf32>
    %393 = arith.addf %344, %392 : vector<5x32xf32>
    %394 = vector.extract_strided_slice %393 {offsets = [0, 0], sizes = [1, 32], strides = [1, 1]} : vector<5x32xf32> to vector<1x32xf32>
    %c0_166 = arith.constant 0 : index
    %c0_167 = arith.constant 0 : index
    %395 = vector.load %arg18[%c0_166, %c0_167] : memref<1x32xf32, #tpu.memory_space<vmem>>, vector<1x32xf32>
    %c0_168 = arith.constant 0 : index
    %c0_169 = arith.constant 0 : index
    %396 = vector.load %arg19[%c0_168, %c0_169] : memref<1x32xf32, #tpu.memory_space<vmem>>, vector<1x32xf32>
    %cst_170 = arith.constant dense<0.000000e+00> : vector<1xf32>
    %397 = vector.multi_reduction <add>, %394, %cst_170 [1] : vector<1x32xf32> to vector<1xf32>
    %398 = vector.shape_cast %397 : vector<1xf32> to vector<1x1xf32>
    %cst_171 = arith.constant 3.200000e+01 : f32
    %399 = vector.broadcast %cst_171 : f32 to vector<1x1xf32>
    %400 = arith.divf %398, %399 : vector<1x1xf32>
    %401 = vector.broadcast %400 : vector<1x1xf32> to vector<1x32xf32>
    %402 = arith.subf %394, %401 : vector<1x32xf32>
    %403 = arith.mulf %402, %402 : vector<1x32xf32>
    %cst_172 = arith.constant dense<0.000000e+00> : vector<1xf32>
    %404 = vector.multi_reduction <add>, %403, %cst_172 [1] : vector<1x32xf32> to vector<1xf32>
    %405 = vector.shape_cast %404 : vector<1xf32> to vector<1x1xf32>
    %cst_173 = arith.constant 3.200000e+01 : f32
    %406 = vector.broadcast %cst_173 : f32 to vector<1x1xf32>
    %407 = arith.divf %405, %406 : vector<1x1xf32>
    %cst_174 = arith.constant 9.99999974E-6 : f32
    %408 = vector.broadcast %cst_174 : f32 to vector<1x1xf32>
    %409 = arith.addf %407, %408 : vector<1x1xf32>
    %410 = math.rsqrt %409 : vector<1x1xf32>
    %411 = vector.broadcast %410 : vector<1x1xf32> to vector<1x32xf32>
    %412 = arith.mulf %402, %411 : vector<1x32xf32>
    %413 = arith.mulf %412, %395 : vector<1x32xf32>
    %414 = arith.addf %413, %396 : vector<1x32xf32>
    %415 = arith.truncf %414 : vector<1x32xf32> to vector<1x32xbf16>
    %c0_175 = arith.constant 0 : index
    %c0_176 = arith.constant 0 : index
    %416 = vector.load %arg20[%c0_175, %c0_176] : memref<32x16xbf16, #tpu.memory_space<vmem>>, vector<32x16xbf16>
    %cst_177 = arith.constant dense<0.000000e+00> : vector<1x16xf32>
    %417 = tpu.matmul %415, %416, %cst_177 {dimension_numbers = #tpu.dot_dimension_numbers<[1], [0], [0], [1], [0, 0, 1, 1], [], []>} : vector<1x32xbf16>, vector<32x16xbf16>, vector<1x16xf32> -> vector<1x16xf32>
    %418 = arith.truncf %417 : vector<1x16xf32> to vector<1x16xbf16>
    %c0_178 = arith.constant 0 : index
    %c0_179 = arith.constant 0 : index
    %419 = vector.load %arg21[%c0_178, %c0_179] : memref<16x5xbf16, #tpu.memory_space<vmem>>, vector<16x5xbf16>
    %cst_180 = arith.constant dense<0.000000e+00> : vector<1x5xf32>
    %420 = tpu.matmul %418, %419, %cst_180 {dimension_numbers = #tpu.dot_dimension_numbers<[1], [0], [0], [1], [0, 0, 1, 1], [], []>} : vector<1x16xbf16>, vector<16x5xbf16>, vector<1x5xf32> -> vector<1x5xf32>
    %c0_181 = arith.constant 0 : index
    %c0_182 = arith.constant 0 : index
    %421 = vector.load %arg22[%c0_181, %c0_182] : memref<1x5xf32, #tpu.memory_space<vmem>>, vector<1x5xf32>
    %422 = arith.addf %420, %421 : vector<1x5xf32>
    %c0_183 = arith.constant 0 : index
    %c0_184 = arith.constant 0 : index
    %c0_185 = arith.constant 0 : index
    %423 = vector.load %arg23[%c0_183, %c0_184, %c0_185] : memref<1x1x5xf32, #tpu.memory_space<vmem>>, vector<1x1x5xf32>
    %424 = vector.shape_cast %423 : vector<1x1x5xf32> to vector<1x5xf32>
    %425 = vector.shape_cast %422 : vector<1x5xf32> to vector<1x1x5xf32>
    tpu.vector_store %arg23[%c0_183, %c0_184, %c0_185], %425 {strides = array<i32>} : memref<1x1x5xf32, #tpu.memory_space<vmem>>, vector<1x1x5xf32>,
    return
  }
  func.func @transform_0(%arg0: i32) -> (i32, i32, i32) {
    %c0_i32 = arith.constant 0 : i32
    %c0_i32_0 = arith.constant 0 : i32
    %c0_i32_1 = arith.constant 0 : i32
    return %arg0, %c0_i32, %c0_i32_0 : i32, i32, i32
  }
  func.func @transform_1(%arg0: i32) -> (i32, i32) {
    %c0_i32 = arith.constant 0 : i32
    %c0_i32_0 = arith.constant 0 : i32
    %c0_i32_1 = arith.constant 0 : i32
    return %c0_i32, %c0_i32_0 : i32, i32
  }
  func.func @transform_2(%arg0: i32) -> (i32, i32) {
    %c0_i32 = arith.constant 0 : i32
    %c0_i32_0 = arith.constant 0 : i32
    %c0_i32_1 = arith.constant 0 : i32
    return %c0_i32, %c0_i32_0 : i32, i32
  }
  func.func @transform_3(%arg0: i32) -> (i32, i32) {
    %c0_i32 = arith.constant 0 : i32
    %c0_i32_0 = arith.constant 0 : i32
    %c0_i32_1 = arith.constant 0 : i32
    return %c0_i32, %c0_i32_0 : i32, i32
  }
  func.func @transform_4(%arg0: i32) -> (i32, i32) {
    %c0_i32 = arith.constant 0 : i32
    %c0_i32_0 = arith.constant 0 : i32
    %c0_i32_1 = arith.constant 0 : i32
    return %c0_i32, %c0_i32_0 : i32, i32
  }
  func.func @transform_5(%arg0: i32) -> (i32, i32, i32) {
    %c0_i32 = arith.constant 0 : i32
    %c0_i32_0 = arith.constant 0 : i32
    %c0_i32_1 = arith.constant 0 : i32
    %c0_i32_2 = arith.constant 0 : i32
    return %c0_i32, %c0_i32_0, %c0_i32_1 : i32, i32, i32
  }
  func.func @transform_6(%arg0: i32) -> (i32, i32, i32) {
    %c0_i32 = arith.constant 0 : i32
    %c0_i32_0 = arith.constant 0 : i32
    %c0_i32_1 = arith.constant 0 : i32
    %c0_i32_2 = arith.constant 0 : i32
    return %c0_i32, %c0_i32_0, %c0_i32_1 : i32, i32, i32
  }
  func.func @transform_7(%arg0: i32) -> (i32, i32, i32) {
    %c0_i32 = arith.constant 0 : i32
    %c0_i32_0 = arith.constant 0 : i32
    %c0_i32_1 = arith.constant 0 : i32
    %c0_i32_2 = arith.constant 0 : i32
    return %c0_i32, %c0_i32_0, %c0_i32_1 : i32, i32, i32
  }
  func.func @transform_8(%arg0: i32) -> (i32, i32, i32) {
    %c0_i32 = arith.constant 0 : i32
    %c0_i32_0 = arith.constant 0 : i32
    %c0_i32_1 = arith.constant 0 : i32
    %c0_i32_2 = arith.constant 0 : i32
    return %c0_i32, %c0_i32_0, %c0_i32_1 : i32, i32, i32
  }
  func.func @transform_9(%arg0: i32) -> (i32, i32, i32) {
    %c0_i32 = arith.constant 0 : i32
    %c0_i32_0 = arith.constant 0 : i32
    %c0_i32_1 = arith.constant 0 : i32
    %c0_i32_2 = arith.constant 0 : i32
    return %c0_i32, %c0_i32_0, %c0_i32_1 : i32, i32, i32
  }
  func.func @transform_10(%arg0: i32) -> (i32, i32, i32) {
    %c0_i32 = arith.constant 0 : i32
    %c0_i32_0 = arith.constant 0 : i32
    %c0_i32_1 = arith.constant 0 : i32
    %c0_i32_2 = arith.constant 0 : i32
    return %c0_i32, %c0_i32_0, %c0_i32_1 : i32, i32, i32
  }
  func.func @transform_11(%arg0: i32) -> (i32, i32, i32) {
    %c0_i32 = arith.constant 0 : i32
    %c0_i32_0 = arith.constant 0 : i32
    %c0_i32_1 = arith.constant 0 : i32
    %c0_i32_2 = arith.constant 0 : i32
    return %c0_i32, %c0_i32_0, %c0_i32_1 : i32, i32, i32
  }
  func.func @transform_12(%arg0: i32) -> (i32, i32, i32) {
    %c0_i32 = arith.constant 0 : i32
    %c0_i32_0 = arith.constant 0 : i32
    %c0_i32_1 = arith.constant 0 : i32
    %c0_i32_2 = arith.constant 0 : i32
    return %c0_i32, %c0_i32_0, %c0_i32_1 : i32, i32, i32
  }
  func.func @transform_13(%arg0: i32) -> (i32, i32, i32) {
    %c0_i32 = arith.constant 0 : i32
    %c0_i32_0 = arith.constant 0 : i32
    %c0_i32_1 = arith.constant 0 : i32
    %c0_i32_2 = arith.constant 0 : i32
    return %c0_i32, %c0_i32_0, %c0_i32_1 : i32, i32, i32
  }
  func.func @transform_14(%arg0: i32) -> (i32, i32, i32) {
    %c0_i32 = arith.constant 0 : i32
    %c0_i32_0 = arith.constant 0 : i32
    %c0_i32_1 = arith.constant 0 : i32
    %c0_i32_2 = arith.constant 0 : i32
    return %c0_i32, %c0_i32_0, %c0_i32_1 : i32, i32, i32
  }
  func.func @transform_15(%arg0: i32) -> (i32, i32, i32) {
    %c0_i32 = arith.constant 0 : i32
    %c0_i32_0 = arith.constant 0 : i32
    %c0_i32_1 = arith.constant 0 : i32
    %c0_i32_2 = arith.constant 0 : i32
    return %c0_i32, %c0_i32_0, %c0_i32_1 : i32, i32, i32
  }
  func.func @transform_16(%arg0: i32) -> (i32, i32, i32) {
    %c0_i32 = arith.constant 0 : i32
    %c0_i32_0 = arith.constant 0 : i32
    %c0_i32_1 = arith.constant 0 : i32
    %c0_i32_2 = arith.constant 0 : i32
    return %c0_i32, %c0_i32_0, %c0_i32_1 : i32, i32, i32
  }
  func.func @transform_17(%arg0: i32) -> (i32, i32) {
    %c0_i32 = arith.constant 0 : i32
    %c0_i32_0 = arith.constant 0 : i32
    %c0_i32_1 = arith.constant 0 : i32
    return %c0_i32, %c0_i32_0 : i32, i32
  }
  func.func @transform_18(%arg0: i32) -> (i32, i32) {
    %c0_i32 = arith.constant 0 : i32
    %c0_i32_0 = arith.constant 0 : i32
    %c0_i32_1 = arith.constant 0 : i32
    return %c0_i32, %c0_i32_0 : i32, i32
  }
  func.func @transform_19(%arg0: i32) -> (i32, i32) {
    %c0_i32 = arith.constant 0 : i32
    %c0_i32_0 = arith.constant 0 : i32
    %c0_i32_1 = arith.constant 0 : i32
    return %c0_i32, %c0_i32_0 : i32, i32
  }
  func.func @transform_20(%arg0: i32) -> (i32, i32) {
    %c0_i32 = arith.constant 0 : i32
    %c0_i32_0 = arith.constant 0 : i32
    %c0_i32_1 = arith.constant 0 : i32
    return %c0_i32, %c0_i32_0 : i32, i32
  }
  func.func @transform_21(%arg0: i32) -> (i32, i32) {
    %c0_i32 = arith.constant 0 : i32
    %c0_i32_0 = arith.constant 0 : i32
    %c0_i32_1 = arith.constant 0 : i32
    return %c0_i32, %c0_i32_0 : i32, i32
  }
  func.func @transform_22(%arg0: i32) -> (i32, i32, i32) {
    %c0_i32 = arith.constant 0 : i32
    %c0_i32_0 = arith.constant 0 : i32
    %c0_i32_1 = arith.constant 0 : i32
    return %arg0, %c0_i32, %c0_i32_0 : i32, i32, i32
  }
}

</mosaic_0001>

<llo_original>
// kernel: clip_finetuner_forward.1
$region0: #{clip_finetuner_forward.1}
  #allocation0 [shape = 'u32[]', space=smem, size = 0x4, offset = 0x4, fixed_abs, tag = 'smem constant byte address 0x4 - core index']
  #allocation1 [shape = 'u32[144,128]{1,0:T(1,128)}', space=vmem, size = 0x12000, scoped, tag = 'internal scratch']
  %s0 = inlined_call_operand.vmem [shape: bf16[2,5,192], index: 0, kind: input, shape index: {}]
  %s1 = inlined_call_operand.vmem [shape: bf16[192,32], index: 1, kind: input, shape index: {}]
  %s2 = inlined_call_operand.vmem [shape: f32[5,32], index: 2, kind: input, shape index: {}]
  %s3 = inlined_call_operand.vmem [shape: f32[1,32], index: 3, kind: input, shape index: {}]
  %s4 = inlined_call_operand.vmem [shape: f32[1,32], index: 4, kind: input, shape index: {}]
  %s5 = inlined_call_operand.vmem [shape: f32[2,1,32], index: 5, kind: input, shape index: {}]
  %s6 = inlined_call_operand.vmem [shape: f32[2,1,32], index: 6, kind: input, shape index: {}]
  %s7 = inlined_call_operand.vmem [shape: bf16[2,32,96], index: 7, kind: input, shape index: {}]
  %s8 = inlined_call_operand.vmem [shape: f32[2,1,96], index: 8, kind: input, shape index: {}]
  %s9 = inlined_call_operand.vmem [shape: bf16[2,32,32], index: 9, kind: input, shape index: {}]
  %s10 = inlined_call_operand.vmem [shape: f32[2,1,32], index: 10, kind: input, shape index: {}]
  %s11 = inlined_call_operand.vmem [shape: f32[2,1,32], index: 11, kind: input, shape index: {}]
  %s12 = inlined_call_operand.vmem [shape: f32[2,1,32], index: 12, kind: input, shape index: {}]
  %s13 = inlined_call_operand.vmem [shape: bf16[2,32,128], index: 13, kind: input, shape index: {}]
  %s14 = inlined_call_operand.vmem [shape: f32[2,1,128], index: 14, kind: input, shape index: {}]
  %s15 = inlined_call_operand.vmem [shape: bf16[2,128,32], index: 15, kind: input, shape index: {}]
  %s16 = inlined_call_operand.vmem [shape: f32[2,1,32], index: 16, kind: input, shape index: {}]
  %s17 = inlined_call_operand.vmem [shape: f32[1,32], index: 17, kind: input, shape index: {}]
  %s18 = inlined_call_operand.vmem [shape: f32[1,32], index: 18, kind: input, shape index: {}]
  %s19 = inlined_call_operand.vmem [shape: bf16[32,16], index: 19, kind: input, shape index: {}]
  %s20 = inlined_call_operand.vmem [shape: bf16[16,5], index: 20, kind: input, shape index: {}]
  %s21 = inlined_call_operand.vmem [shape: f32[1,5], index: 21, kind: input, shape index: {}]
  %s22 = inlined_call_operand.hbm [shape: f32[2,1,5], index: 22, kind: output, shape index: {}]
  %s23 = sld [smem:[#allocation0]]
  $region121: #{clip_finetuner_forward.1} parent=0
    _
  %s25 = ssub.s32 1, %s23
  %s26 = scalar_select 0, %s25, %s23
  $region1: #{clip_finetuner_forward.1} parent=0
    #allocation2 [shape = 'u8[1024]{0}', space=vmem, size = 0x400, scoped, tag = 'output window, operand 0']
    #allocation3 [shape = 's32[2]{0}', space=sflag, size = 0x8, scoped, tag = 'scoped memory for clip_finetuner_forward.1']
    %27 = vsyncpa [#allocation3], 0
    %s28 = scalar_lea.sflag [#allocation3], 1
    %29 = vsyncpa %s28, 0
    loop: start=0, step=1, limit=4
    $region2: #{clip_finetuner_forward.1} parent=1 // loop_pre_header
      _
    $region3: #{clip_finetuner_forward.1} parent=1 // loop_header
      %s31 = sphi 0, %s35
      %p32 = scmp.ge.s32.totalorder %s31, 4
      %s41 = sphi 0, %s43
      %s44 = sphi 0, %s41
      %s45 = sphi 0, %s44
      %s61 = sphi 0, %s45
      %s65 = sphi 0, %s65
      %s67 = sphi 0, %s65
      %s68 = sphi 0, %s67
      %s82 = sphi 0, %s68
      %s86 = sphi 0, %s86
      %s88 = sphi 0, %s86
      %s89 = sphi 0, %s88
      %s103 = sphi 0, %s89
      %s107 = sphi 0, %s107
      %s109 = sphi 0, %s107
      %s110 = sphi 0, %s109
      %s124 = sphi 0, %s110
      %s128 = sphi 0, %s128
      %s130 = sphi 0, %s128
      %s131 = sphi 0, %s130
      %s145 = sphi 0, %s131
      %s149 = sphi 0, %s149
      %s151 = sphi 0, %s149
      %s152 = sphi 0, %s151
      %s166 = sphi 0, %s152
      %s170 = sphi 0, %s170
      %s172 = sphi 0, %s170
      %s173 = sphi 0, %s172
      %s187 = sphi 0, %s173
      %s191 = sphi 0, %s191
      %s193 = sphi 0, %s191
      %s194 = sphi 0, %s193
      %s208 = sphi 0, %s194
      %s212 = sphi 0, %s212
      %s214 = sphi 0, %s212
      %s215 = sphi 0, %s214
      %s229 = sphi 0, %s215
      %s233 = sphi 0, %s233
      %s235 = sphi 0, %s233
      %s236 = sphi 0, %s235
      %s250 = sphi 0, %s236
      %s254 = sphi 0, %s254
      %s256 = sphi 0, %s254
      %s257 = sphi 0, %s256
      %s271 = sphi 0, %s257
      %s275 = sphi 0, %s275
      %s277 = sphi 0, %s275
      %s278 = sphi 0, %s277
      %s292 = sphi 0, %s278
      %s296 = sphi 0, %s296
      %s298 = sphi 0, %s296
      %s299 = sphi 0, %s298
      %s313 = sphi 0, %s299
      %s317 = sphi 0, %s317
      %s319 = sphi 0, %s317
      %s320 = sphi 0, %s319
      %s334 = sphi 0, %s320
      %s338 = sphi 0, %s338
      %s340 = sphi 0, %s338
      %s341 = sphi 0, %s340
      %s355 = sphi 0, %s341
      %s359 = sphi 0, %s359
      %s361 = sphi 0, %s359
      %s362 = sphi 0, %s361
      %s376 = sphi 0, %s362
      %s380 = sphi 0, %s380
      %s382 = sphi 0, %s380
      %s383 = sphi 0, %s382
      %s397 = sphi 0, %s383
      %s401 = sphi 0, %s401
      %s403 = sphi 0, %s401
      %s404 = sphi 0, %s403
      %s418 = sphi 0, %s404
      %s422 = sphi 0, %s422
      %s424 = sphi 0, %s422
      %s425 = sphi 0, %s424
      %s439 = sphi 0, %s425
      %s443 = sphi 0, %s443
      %s445 = sphi 0, %s443
      %s446 = sphi 0, %s445
      %s460 = sphi 0, %s446
      %s464 = sphi 0, %s464
      %s466 = sphi 0, %s464
      %s467 = sphi 0, %s466
      %s481 = sphi 0, %s467
      %s485 = sphi 0, %s485
      %s487 = sphi 0, %s485
      %s488 = sphi 0, %s487
      %s502 = sphi 0, %s488
      %s508 = sphi 0, %s510
      %s511 = sphi 0, %s508
      %s512 = sphi 0, %s511
      %s528 = sphi 0, %s512
    $region4: #{clip_finetuner_forward.1} parent=1 // loop_header_branch
      %34 = sbr.rel (%p32) target = $region8
    $region5: #{clip_finetuner_forward.1} parent=1 // loop_body
      %s36 = ssub.s32 %s31, 1
      %s37 = ssub.s32 %s31, 2
      %s38 = sadd.s32 %s31, 1
      %s39 = ssub.s32 %s31, %s38
      %p40 = scmp.eq.s32.totalorder %s39, 0
      %s42 = sadd.s32 %s41, 1
      %s43 = scalar_select %p40, %s41, %s42
      %p46 = pneg %p40
      %p47 = scmp.eq.s32.totalorder %s31, 1
      %p48 = por %p46, %p47
      %p49 = scmp.ne.s32.totalorder %s41, %s44
      %p50 = scmp.eq.s32.totalorder %s31, 0
      %p51 = por %p49, %p50
      %p52 = scmp.ne.s32.totalorder %s41, %s44
      %p53 = scmp.eq.s32.totalorder %s36, 1
      %p54 = por %p52, %p53
      %p55 = scmp.ne.s32.totalorder %s44, %s45
      %p56 = scmp.eq.s32.totalorder %s36, 0
      %p57 = por %p55, %p56
      %p58 = scmp.ne.s32.totalorder %s44, %s45
      %p59 = scmp.eq.s32.totalorder %s37, 1
      %p60 = por %p58, %p59
      %p62 = scmp.ne.s32.totalorder %s45, %s61
      %p63 = scmp.eq.s32.totalorder %s37, 0
      %p64 = por %p62, %p63
      %s66 = sadd.s32 %s65, 1
      %p69 = scmp.eq.s32.totalorder %s31, 1
      %p70 = scmp.ne.s32.totalorder %s65, %s67
      %p71 = scmp.eq.s32.totalorder %s31, 0
      %p72 = por %p70, %p71
      %p73 = scmp.ne.s32.totalorder %s65, %s67
      %p74 = scmp.eq.s32.totalorder %s36, 1
      %p75 = por %p73, %p74
      %p76 = scmp.ne.s32.totalorder %s67, %s68
      %p77 = scmp.eq.s32.totalorder %s36, 0
      %p78 = por %p76, %p77
      %p79 = scmp.ne.s32.totalorder %s67, %s68
      %p80 = scmp.eq.s32.totalorder %s37, 1
      %p81 = por %p79, %p80
      %p83 = scmp.ne.s32.totalorder %s68, %s82
      %p84 = scmp.eq.s32.totalorder %s37, 0
      %p85 = por %p83, %p84
      %s87 = sadd.s32 %s86, 1
      %p90 = scmp.eq.s32.totalorder %s31, 1
      %p91 = scmp.ne.s32.totalorder %s86, %s88
      %p92 = scmp.eq.s32.totalorder %s31, 0
      %p93 = por %p91, %p92
      %p94 = scmp.ne.s32.totalorder %s86, %s88
      %p95 = scmp.eq.s32.totalorder %s36, 1
      %p96 = por %p94, %p95
      %p97 = scmp.ne.s32.totalorder %s88, %s89
      %p98 = scmp.eq.s32.totalorder %s36, 0
      %p99 = por %p97, %p98
      %p100 = scmp.ne.s32.totalorder %s88, %s89
      %p101 = scmp.eq.s32.totalorder %s37, 1
      %p102 = por %p100, %p101
      %p104 = scmp.ne.s32.totalorder %s89, %s103
      %p105 = scmp.eq.s32.totalorder %s37, 0
      %p106 = por %p104, %p105
      %s108 = sadd.s32 %s107, 1
      %p111 = scmp.eq.s32.totalorder %s31, 1
      %p112 = scmp.ne.s32.totalorder %s107, %s109
      %p113 = scmp.eq.s32.totalorder %s31, 0
      %p114 = por %p112, %p113
      %p115 = scmp.ne.s32.totalorder %s107, %s109
      %p116 = scmp.eq.s32.totalorder %s36, 1
      %p117 = por %p115, %p116
      %p118 = scmp.ne.s32.totalorder %s109, %s110
      %p119 = scmp.eq.s32.totalorder %s36, 0
      %p120 = por %p118, %p119
      %p121 = scmp.ne.s32.totalorder %s109, %s110
      %p122 = scmp.eq.s32.totalorder %s37, 1
      %p123 = por %p121, %p122
      %p125 = scmp.ne.s32.totalorder %s110, %s124
      %p126 = scmp.eq.s32.totalorder %s37, 0
      %p127 = por %p125, %p126
      %s129 = sadd.s32 %s128, 1
      %p132 = scmp.eq.s32.totalorder %s31, 1
      %p133 = scmp.ne.s32.totalorder %s128, %s130
      %p134 = scmp.eq.s32.totalorder %s31, 0
      %p135 = por %p133, %p134
      %p136 = scmp.ne.s32.totalorder %s128, %s130
      %p137 = scmp.eq.s32.totalorder %s36, 1
      %p138 = por %p136, %p137
      %p139 = scmp.ne.s32.totalorder %s130, %s131
      %p140 = scmp.eq.s32.totalorder %s36, 0
      %p141 = por %p139, %p140
      %p142 = scmp.ne.s32.totalorder %s130, %s131
      %p143 = scmp.eq.s32.totalorder %s37, 1
      %p144 = por %p142, %p143
      %p146 = scmp.ne.s32.totalorder %s131, %s145
      %p147 = scmp.eq.s32.totalorder %s37, 0
      %p148 = por %p146, %p147
      %s150 = sadd.s32 %s149, 1
      %p153 = scmp.eq.s32.totalorder %s31, 1
      %p154 = scmp.ne.s32.totalorder %s149, %s151
      %p155 = scmp.eq.s32.totalorder %s31, 0
      %p156 = por %p154, %p155
      %p157 = scmp.ne.s32.totalorder %s149, %s151
      %p158 = scmp.eq.s32.totalorder %s36, 1
      %p159 = por %p157, %p158
      %p160 = scmp.ne.s32.totalorder %s151, %s152
      %p161 = scmp.eq.s32.totalorder %s36, 0
      %p162 = por %p160, %p161
      %p163 = scmp.ne.s32.totalorder %s151, %s152
      %p164 = scmp.eq.s32.totalorder %s37, 1
      %p165 = por %p163, %p164
      %p167 = scmp.ne.s32.totalorder %s152, %s166
      %p168 = scmp.eq.s32.totalorder %s37, 0
      %p169 = por %p167, %p168
      %s171 = sadd.s32 %s170, 1
      %p174 = scmp.eq.s32.totalorder %s31, 1
      %p175 = scmp.ne.s32.totalorder %s170, %s172
      %p176 = scmp.eq.s32.totalorder %s31, 0
      %p177 = por %p175, %p176
      %p178 = scmp.ne.s32.totalorder %s170, %s172
      %p179 = scmp.eq.s32.totalorder %s36, 1
      %p180 = por %p178, %p179
      %p181 = scmp.ne.s32.totalorder %s172, %s173
      %p182 = scmp.eq.s32.totalorder %s36, 0
      %p183 = por %p181, %p182
      %p184 = scmp.ne.s32.totalorder %s172, %s173
      %p185 = scmp.eq.s32.totalorder %s37, 1
      %p186 = por %p184, %p185
      %p188 = scmp.ne.s32.totalorder %s173, %s187
      %p189 = scmp.eq.s32.totalorder %s37, 0
      %p190 = por %p188, %p189
      %s192 = sadd.s32 %s191, 1
      %p195 = scmp.eq.s32.totalorder %s31, 1
      %p196 = scmp.ne.s32.totalorder %s191, %s193
      %p197 = scmp.eq.s32.totalorder %s31, 0
      %p198 = por %p196, %p197
      %p199 = scmp.ne.s32.totalorder %s191, %s193
      %p200 = scmp.eq.s32.totalorder %s36, 1
      %p201 = por %p199, %p200
      %p202 = scmp.ne.s32.totalorder %s193, %s194
      %p203 = scmp.eq.s32.totalorder %s36, 0
      %p204 = por %p202, %p203
      %p205 = scmp.ne.s32.totalorder %s193, %s194
      %p206 = scmp.eq.s32.totalorder %s37, 1
      %p207 = por %p205, %p206
      %p209 = scmp.ne.s32.totalorder %s194, %s208
      %p210 = scmp.eq.s32.totalorder %s37, 0
      %p211 = por %p209, %p210
      %s213 = sadd.s32 %s212, 1
      %p216 = scmp.eq.s32.totalorder %s31, 1
      %p217 = scmp.ne.s32.totalorder %s212, %s214
      %p218 = scmp.eq.s32.totalorder %s31, 0
      %p219 = por %p217, %p218
      %p220 = scmp.ne.s32.totalorder %s212, %s214
      %p221 = scmp.eq.s32.totalorder %s36, 1
      %p222 = por %p220, %p221
      %p223 = scmp.ne.s32.totalorder %s214, %s215
      %p224 = scmp.eq.s32.totalorder %s36, 0
      %p225 = por %p223, %p224
      %p226 = scmp.ne.s32.totalorder %s214, %s215
      %p227 = scmp.eq.s32.totalorder %s37, 1
      %p228 = por %p226, %p227
      %p230 = scmp.ne.s32.totalorder %s215, %s229
      %p231 = scmp.eq.s32.totalorder %s37, 0
      %p232 = por %p230, %p231
      %s234 = sadd.s32 %s233, 1
      %p237 = scmp.eq.s32.totalorder %s31, 1
      %p238 = scmp.ne.s32.totalorder %s233, %s235
      %p239 = scmp.eq.s32.totalorder %s31, 0
      %p240 = por %p238, %p239
      %p241 = scmp.ne.s32.totalorder %s233, %s235
      %p242 = scmp.eq.s32.totalorder %s36, 1
      %p243 = por %p241, %p242
      %p244 = scmp.ne.s32.totalorder %s235, %s236
      %p245 = scmp.eq.s32.totalorder %s36, 0
      %p246 = por %p244, %p245
      %p247 = scmp.ne.s32.totalorder %s235, %s236
      %p248 = scmp.eq.s32.totalorder %s37, 1
      %p249 = por %p247, %p248
      %p251 = scmp.ne.s32.totalorder %s236, %s250
      %p252 = scmp.eq.s32.totalorder %s37, 0
      %p253 = por %p251, %p252
      %s255 = sadd.s32 %s254, 1
      %p258 = scmp.eq.s32.totalorder %s31, 1
      %p259 = scmp.ne.s32.totalorder %s254, %s256
      %p260 = scmp.eq.s32.totalorder %s31, 0
      %p261 = por %p259, %p260
      %p262 = scmp.ne.s32.totalorder %s254, %s256
      %p263 = scmp.eq.s32.totalorder %s36, 1
      %p264 = por %p262, %p263
      %p265 = scmp.ne.s32.totalorder %s256, %s257
      %p266 = scmp.eq.s32.totalorder %s36, 0
      %p267 = por %p265, %p266
      %p268 = scmp.ne.s32.totalorder %s256, %s257
      %p269 = scmp.eq.s32.totalorder %s37, 1
      %p270 = por %p268, %p269
      %p272 = scmp.ne.s32.totalorder %s257, %s271
      %p273 = scmp.eq.s32.totalorder %s37, 0
      %p274 = por %p272, %p273
      %s276 = sadd.s32 %s275, 1
      %p279 = scmp.eq.s32.totalorder %s31, 1
      %p280 = scmp.ne.s32.totalorder %s275, %s277
      %p281 = scmp.eq.s32.totalorder %s31, 0
      %p282 = por %p280, %p281
      %p283 = scmp.ne.s32.totalorder %s275, %s277
      %p284 = scmp.eq.s32.totalorder %s36, 1
      %p285 = por %p283, %p284
      %p286 = scmp.ne.s32.totalorder %s277, %s278
      %p287 = scmp.eq.s32.totalorder %s36, 0
      %p288 = por %p286, %p287
      %p289 = scmp.ne.s32.totalorder %s277, %s278
      %p290 = scmp.eq.s32.totalorder %s37, 1
      %p291 = por %p289, %p290
      %p293 = scmp.ne.s32.totalorder %s278, %s292
      %p294 = scmp.eq.s32.totalorder %s37, 0
      %p295 = por %p293, %p294
      %s297 = sadd.s32 %s296, 1
      %p300 = scmp.eq.s32.totalorder %s31, 1
      %p301 = scmp.ne.s32.totalorder %s296, %s298
      %p302 = scmp.eq.s32.totalorder %s31, 0
      %p303 = por %p301, %p302
      %p304 = scmp.ne.s32.totalorder %s296, %s298
      %p305 = scmp.eq.s32.totalorder %s36, 1
      %p306 = por %p304, %p305
      %p307 = scmp.ne.s32.totalorder %s298, %s299
      %p308 = scmp.eq.s32.totalorder %s36, 0
      %p309 = por %p307, %p308
      %p310 = scmp.ne.s32.totalorder %s298, %s299
      %p311 = scmp.eq.s32.totalorder %s37, 1
      %p312 = por %p310, %p311
      %p314 = scmp.ne.s32.totalorder %s299, %s313
      %p315 = scmp.eq.s32.totalorder %s37, 0
      %p316 = por %p314, %p315
      %s318 = sadd.s32 %s317, 1
      %p321 = scmp.eq.s32.totalorder %s31, 1
      %p322 = scmp.ne.s32.totalorder %s317, %s319
      %p323 = scmp.eq.s32.totalorder %s31, 0
      %p324 = por %p322, %p323
      %p325 = scmp.ne.s32.totalorder %s317, %s319
      %p326 = scmp.eq.s32.totalorder %s36, 1
      %p327 = por %p325, %p326
      %p328 = scmp.ne.s32.totalorder %s319, %s320
      %p329 = scmp.eq.s32.totalorder %s36, 0
      %p330 = por %p328, %p329
      %p331 = scmp.ne.s32.totalorder %s319, %s320
      %p332 = scmp.eq.s32.totalorder %s37, 1
      %p333 = por %p331, %p332
      %p335 = scmp.ne.s32.totalorder %s320, %s334
      %p336 = scmp.eq.s32.totalorder %s37, 0
      %p337 = por %p335, %p336
      %s339 = sadd.s32 %s338, 1
      %p342 = scmp.eq.s32.totalorder %s31, 1
      %p343 = scmp.ne.s32.totalorder %s338, %s340
      %p344 = scmp.eq.s32.totalorder %s31, 0
      %p345 = por %p343, %p344
      %p346 = scmp.ne.s32.totalorder %s338, %s340
      %p347 = scmp.eq.s32.totalorder %s36, 1
      %p348 = por %p346, %p347
      %p349 = scmp.ne.s32.totalorder %s340, %s341
      %p350 = scmp.eq.s32.totalorder %s36, 0
      %p351 = por %p349, %p350
      %p352 = scmp.ne.s32.totalorder %s340, %s341
      %p353 = scmp.eq.s32.totalorder %s37, 1
      %p354 = por %p352, %p353
      %p356 = scmp.ne.s32.totalorder %s341, %s355
      %p357 = scmp.eq.s32.totalorder %s37, 0
      %p358 = por %p356, %p357
      %s360 = sadd.s32 %s359, 1
      %p363 = scmp.eq.s32.totalorder %s31, 1
      %p364 = scmp.ne.s32.totalorder %s359, %s361
      %p365 = scmp.eq.s32.totalorder %s31, 0
      %p366 = por %p364, %p365
      %p367 = scmp.ne.s32.totalorder %s359, %s361
      %p368 = scmp.eq.s32.totalorder %s36, 1
      %p369 = por %p367, %p368
      %p370 = scmp.ne.s32.totalorder %s361, %s362
      %p371 = scmp.eq.s32.totalorder %s36, 0
      %p372 = por %p370, %p371
      %p373 = scmp.ne.s32.totalorder %s361, %s362
      %p374 = scmp.eq.s32.totalorder %s37, 1
      %p375 = por %p373, %p374
      %p377 = scmp.ne.s32.totalorder %s362, %s376
      %p378 = scmp.eq.s32.totalorder %s37, 0
      %p379 = por %p377, %p378
      %s381 = sadd.s32 %s380, 1
      %p384 = scmp.eq.s32.totalorder %s31, 1
      %p385 = scmp.ne.s32.totalorder %s380, %s382
      %p386 = scmp.eq.s32.totalorder %s31, 0
      %p387 = por %p385, %p386
      %p388 = scmp.ne.s32.totalorder %s380, %s382
      %p389 = scmp.eq.s32.totalorder %s36, 1
      %p390 = por %p388, %p389
      %p391 = scmp.ne.s32.totalorder %s382, %s383
      %p392 = scmp.eq.s32.totalorder %s36, 0
      %p393 = por %p391, %p392
      %p394 = scmp.ne.s32.totalorder %s382, %s383
      %p395 = scmp.eq.s32.totalorder %s37, 1
      %p396 = por %p394, %p395
      %p398 = scmp.ne.s32.totalorder %s383, %s397
      %p399 = scmp.eq.s32.totalorder %s37, 0
      %p400 = por %p398, %p399
      %s402 = sadd.s32 %s401, 1
      %p405 = scmp.eq.s32.totalorder %s31, 1
      %p406 = scmp.ne.s32.totalorder %s401, %s403
      %p407 = scmp.eq.s32.totalorder %s31, 0
      %p408 = por %p406, %p407
      %p409 = scmp.ne.s32.totalorder %s401, %s403
      %p410 = scmp.eq.s32.totalorder %s36, 1
      %p411 = por %p409, %p410
      %p412 = scmp.ne.s32.totalorder %s403, %s404
      %p413 = scmp.eq.s32.totalorder %s36, 0
      %p414 = por %p412, %p413
      %p415 = scmp.ne.s32.totalorder %s403, %s404
      %p416 = scmp.eq.s32.totalorder %s37, 1
      %p417 = por %p415, %p416
      %p419 = scmp.ne.s32.totalorder %s404, %s418
      %p420 = scmp.eq.s32.totalorder %s37, 0
      %p421 = por %p419, %p420
      %s423 = sadd.s32 %s422, 1
      %p426 = scmp.eq.s32.totalorder %s31, 1
      %p427 = scmp.ne.s32.totalorder %s422, %s424
      %p428 = scmp.eq.s32.totalorder %s31, 0
      %p429 = por %p427, %p428
      %p430 = scmp.ne.s32.totalorder %s422, %s424
      %p431 = scmp.eq.s32.totalorder %s36, 1
      %p432 = por %p430, %p431
      %p433 = scmp.ne.s32.totalorder %s424, %s425
      %p434 = scmp.eq.s32.totalorder %s36, 0
      %p435 = por %p433, %p434
      %p436 = scmp.ne.s32.totalorder %s424, %s425
      %p437 = scmp.eq.s32.totalorder %s37, 1
      %p438 = por %p436, %p437
      %p440 = scmp.ne.s32.totalorder %s425, %s439
      %p441 = scmp.eq.s32.totalorder %s37, 0
      %p442 = por %p440, %p441
      %s444 = sadd.s32 %s443, 1
      %p447 = scmp.eq.s32.totalorder %s31, 1
      %p448 = scmp.ne.s32.totalorder %s443, %s445
      %p449 = scmp.eq.s32.totalorder %s31, 0
      %p450 = por %p448, %p449
      %p451 = scmp.ne.s32.totalorder %s443, %s445
      %p452 = scmp.eq.s32.totalorder %s36, 1
      %p453 = por %p451, %p452
      %p454 = scmp.ne.s32.totalorder %s445, %s446
      %p455 = scmp.eq.s32.totalorder %s36, 0
      %p456 = por %p454, %p455
      %p457 = scmp.ne.s32.totalorder %s445, %s446
      %p458 = scmp.eq.s32.totalorder %s37, 1
      %p459 = por %p457, %p458
      %p461 = scmp.ne.s32.totalorder %s446, %s460
      %p462 = scmp.eq.s32.totalorder %s37, 0
      %p463 = por %p461, %p462
      %s465 = sadd.s32 %s464, 1
      %p468 = scmp.eq.s32.totalorder %s31, 1
      %p469 = scmp.ne.s32.totalorder %s464, %s466
      %p470 = scmp.eq.s32.totalorder %s31, 0
      %p471 = por %p469, %p470
      %p472 = scmp.ne.s32.totalorder %s464, %s466
      %p473 = scmp.eq.s32.totalorder %s36, 1
      %p474 = por %p472, %p473
      %p475 = scmp.ne.s32.totalorder %s466, %s467
      %p476 = scmp.eq.s32.totalorder %s36, 0
      %p477 = por %p475, %p476
      %p478 = scmp.ne.s32.totalorder %s466, %s467
      %p479 = scmp.eq.s32.totalorder %s37, 1
      %p480 = por %p478, %p479
      %p482 = scmp.ne.s32.totalorder %s467, %s481
      %p483 = scmp.eq.s32.totalorder %s37, 0
      %p484 = por %p482, %p483
      %s486 = sadd.s32 %s485, 1
      %p489 = scmp.eq.s32.totalorder %s31, 1
      %p490 = scmp.ne.s32.totalorder %s485, %s487
      %p491 = scmp.eq.s32.totalorder %s31, 0
      %p492 = por %p490, %p491
      %p493 = scmp.ne.s32.totalorder %s485, %s487
      %p494 = scmp.eq.s32.totalorder %s36, 1
      %p495 = por %p493, %p494
      %p496 = scmp.ne.s32.totalorder %s487, %s488
      %p497 = scmp.eq.s32.totalorder %s36, 0
      %p498 = por %p496, %p497
      %p499 = scmp.ne.s32.totalorder %s487, %s488
      %p500 = scmp.eq.s32.totalorder %s37, 1
      %p501 = por %p499, %p500
      %p503 = scmp.ne.s32.totalorder %s488, %s502
      %p504 = scmp.eq.s32.totalorder %s37, 0
      %p505 = por %p503, %p504
      %s506 = ssub.s32 %s31, %s38
      %p507 = scmp.eq.s32.totalorder %s506, 0
      %s509 = sadd.s32 %s508, 1
      %s510 = scalar_select %p507, %s508, %s509
      %p513 = pneg %p507
      %p514 = scmp.eq.s32.totalorder %s31, 1
      %p515 = por %p513, %p514
      %p516 = scmp.ne.s32.totalorder %s508, %s511
      %p517 = scmp.eq.s32.totalorder %s31, 0
      %p518 = por %p516, %p517
      %p519 = scmp.ne.s32.totalorder %s508, %s511
      %p520 = scmp.eq.s32.totalorder %s36, 1
      %p521 = por %p519, %p520
      %p522 = scmp.ne.s32.totalorder %s511, %s512
      %p523 = scmp.eq.s32.totalorder %s36, 0
      %p524 = por %p522, %p523
      %p525 = scmp.ne.s32.totalorder %s511, %s512
      %p526 = scmp.eq.s32.totalorder %s37, 1
      %p527 = por %p525, %p526
      %p529 = scmp.ne.s32.totalorder %s512, %s528
      %p530 = scmp.eq.s32.totalorder %s37, 0
      %p531 = por %p529, %p530
      %p532 = scmp.le.s32.totalorder 1, %s31
      %p533 = scmp.lt.s32.totalorder %s31, 3
      %p534 = pnand %p532, %p533
      %p535 = pneg %p534
      // Predicated region
      $region9: #{clip_finetuner_forward.1} parent=5 // pred_check
        _
      $region10: #{clip_finetuner_forward.1} parent=5 // pred_check_branch
        %537 = sbr.rel (%p534) target = $region12
      $region11: #{clip_finetuner_forward.1} parent=5 // pred_region
        %s538 = ssub.s32 %s31, 1
        // Predicated region
        $region13: #{clip_finetuner_forward.1} parent=11 // pred_check
          %p539 = pneg %p78
        $region14: #{clip_finetuner_forward.1} parent=11 // pred_check_branch
          %541 = sbr.rel (%p539) target = $region16
        $region15: #{clip_finetuner_forward.1} parent=11 // pred_region
          _
        $region16: #{clip_finetuner_forward.1} parent=11 // pred_fallthru
          _
        // Predicated region
        $region17: #{clip_finetuner_forward.1} parent=11 // pred_check
          %p542 = pneg %p99
        $region18: #{clip_finetuner_forward.1} parent=11 // pred_check_branch
          %544 = sbr.rel (%p542) target = $region20
        $region19: #{clip_finetuner_forward.1} parent=11 // pred_region
          _
        $region20: #{clip_finetuner_forward.1} parent=11 // pred_fallthru
          _
        // Predicated region
        $region21: #{clip_finetuner_forward.1} parent=11 // pred_check
          %p545 = pneg %p120
        $region22: #{clip_finetuner_forward.1} parent=11 // pred_check_branch
          %547 = sbr.rel (%p545) target = $region24
        $region23: #{clip_finetuner_forward.1} parent=11 // pred_region
          _
        $region24: #{clip_finetuner_forward.1} parent=11 // pred_fallthru
          _
        // Predicated region
        $region25: #{clip_finetuner_forward.1} parent=11 // pred_check
          %p548 = pneg %p141
        $region26: #{clip_finetuner_forward.1} parent=11 // pred_check_branch
          %550 = sbr.rel (%p548) target = $region28
        $region27: #{clip_finetuner_forward.1} parent=11 // pred_region
          _
        $region28: #{clip_finetuner_forward.1} parent=11 // pred_fallthru
          _
        // Predicated region
        $region29: #{clip_finetuner_forward.1} parent=11 // pred_check
          %p551 = pneg %p162
        $region30: #{clip_finetuner_forward.1} parent=11 // pred_check_branch
          %553 = sbr.rel (%p551) target = $region32
        $region31: #{clip_finetuner_forward.1} parent=11 // pred_region
          _
        $region32: #{clip_finetuner_forward.1} parent=11 // pred_fallthru
          _
        // Predicated region
        $region33: #{clip_finetuner_forward.1} parent=11 // pred_check
          %p554 = pneg %p183
        $region34: #{clip_finetuner_forward.1} parent=11 // pred_check_branch
          %556 = sbr.rel (%p554) target = $region36
        $region35: #{clip_finetuner_forward.1} parent=11 // pred_region
          _
        $region36: #{clip_finetuner_forward.1} parent=11 // pred_fallthru
          _
        // Predicated region
        $region37: #{clip_finetuner_forward.1} parent=11 // pred_check
          %p557 = pneg %p204
        $region38: #{clip_finetuner_forward.1} parent=11 // pred_check_branch
          %559 = sbr.rel (%p557) target = $region40
        $region39: #{clip_finetuner_forward.1} parent=11 // pred_region
          _
        $region40: #{clip_finetuner_forward.1} parent=11 // pred_fallthru
          _
        // Predicated region
        $region41: #{clip_finetuner_forward.1} parent=11 // pred_check
          %p560 = pneg %p225
        $region42: #{clip_finetuner_forward.1} parent=11 // pred_check_branch
          %562 = sbr.rel (%p560) target = $region44
        $region43: #{clip_finetuner_forward.1} parent=11 // pred_region
          _
        $region44: #{clip_finetuner_forward.1} parent=11 // pred_fallthru
          _
        // Predicated region
        $region45: #{clip_finetuner_forward.1} parent=11 // pred_check
          %p563 = pneg %p246
        $region46: #{clip_finetuner_forward.1} parent=11 // pred_check_branch
          %565 = sbr.rel (%p563) target = $region48
        $region47: #{clip_finetuner_forward.1} parent=11 // pred_region
          _
        $region48: #{clip_finetuner_forward.1} parent=11 // pred_fallthru
          _
        // Predicated region
        $region49: #{clip_finetuner_forward.1} parent=11 // pred_check
          %p566 = pneg %p267
        $region50: #{clip_finetuner_forward.1} parent=11 // pred_check_branch
          %568 = sbr.rel (%p566) target = $region52
        $region51: #{clip_finetuner_forward.1} parent=11 // pred_region
          _
        $region52: #{clip_finetuner_forward.1} parent=11 // pred_fallthru
          _
        // Predicated region
        $region53: #{clip_finetuner_forward.1} parent=11 // pred_check
          %p569 = pneg %p288
        $region54: #{clip_finetuner_forward.1} parent=11 // pred_check_branch
          %571 = sbr.rel (%p569) target = $region56
        $region55: #{clip_finetuner_forward.1} parent=11 // pred_region
          _
        $region56: #{clip_finetuner_forward.1} parent=11 // pred_fallthru
          _
        // Predicated region
        $region57: #{clip_finetuner_forward.1} parent=11 // pred_check
          %p572 = pneg %p309
        $region58: #{clip_finetuner_forward.1} parent=11 // pred_check_branch
          %574 = sbr.rel (%p572) target = $region60
        $region59: #{clip_finetuner_forward.1} parent=11 // pred_region
          _
        $region60: #{clip_finetuner_forward.1} parent=11 // pred_fallthru
          _
        // Predicated region
        $region61: #{clip_finetuner_forward.1} parent=11 // pred_check
          %p575 = pneg %p330
        $region62: #{clip_finetuner_forward.1} parent=11 // pred_check_branch
          %577 = sbr.rel (%p575) target = $region64
        $region63: #{clip_finetuner_forward.1} parent=11 // pred_region
          _
        $region64: #{clip_finetuner_forward.1} parent=11 // pred_fallthru
          _
        // Predicated region
        $region65: #{clip_finetuner_forward.1} parent=11 // pred_check
          %p578 = pneg %p351
        $region66: #{clip_finetuner_forward.1} parent=11 // pred_check_branch
          %580 = sbr.rel (%p578) target = $region68
        $region67: #{clip_finetuner_forward.1} parent=11 // pred_region
          _
        $region68: #{clip_finetuner_forward.1} parent=11 // pred_fallthru
          _
        // Predicated region
        $region69: #{clip_finetuner_forward.1} parent=11 // pred_check
          %p581 = pneg %p372
        $region70: #{clip_finetuner_forward.1} parent=11 // pred_check_branch
          %583 = sbr.rel (%p581) target = $region72
        $region71: #{clip_finetuner_forward.1} parent=11 // pred_region
          _
        $region72: #{clip_finetuner_forward.1} parent=11 // pred_fallthru
          _
        // Predicated region
        $region73: #{clip_finetuner_forward.1} parent=11 // pred_check
          %p584 = pneg %p393
        $region74: #{clip_finetuner_forward.1} parent=11 // pred_check_branch
          %586 = sbr.rel (%p584) target = $region76
        $region75: #{clip_finetuner_forward.1} parent=11 // pred_region
          _
        $region76: #{clip_finetuner_forward.1} parent=11 // pred_fallthru
          _
        // Predicated region
        $region77: #{clip_finetuner_forward.1} parent=11 // pred_check
          %p587 = pneg %p414
        $region78: #{clip_finetuner_forward.1} parent=11 // pred_check_branch
          %589 = sbr.rel (%p587) target = $region80
        $region79: #{clip_finetuner_forward.1} parent=11 // pred_region
          _
        $region80: #{clip_finetuner_forward.1} parent=11 // pred_fallthru
          _
        // Predicated region
        $region81: #{clip_finetuner_forward.1} parent=11 // pred_check
          %p590 = pneg %p435
        $region82: #{clip_finetuner_forward.1} parent=11 // pred_check_branch
          %592 = sbr.rel (%p590) target = $region84
        $region83: #{clip_finetuner_forward.1} parent=11 // pred_region
          _
        $region84: #{clip_finetuner_forward.1} parent=11 // pred_fallthru
          _
        // Predicated region
        $region85: #{clip_finetuner_forward.1} parent=11 // pred_check
          %p593 = pneg %p456
        $region86: #{clip_finetuner_forward.1} parent=11 // pred_check_branch
          %595 = sbr.rel (%p593) target = $region88
        $region87: #{clip_finetuner_forward.1} parent=11 // pred_region
          _
        $region88: #{clip_finetuner_forward.1} parent=11 // pred_fallthru
          _
        // Predicated region
        $region89: #{clip_finetuner_forward.1} parent=11 // pred_check
          %p596 = pneg %p477
        $region90: #{clip_finetuner_forward.1} parent=11 // pred_check_branch
          %598 = sbr.rel (%p596) target = $region92
        $region91: #{clip_finetuner_forward.1} parent=11 // pred_region
          _
        $region92: #{clip_finetuner_forward.1} parent=11 // pred_fallthru
          _
        // Predicated region
        $region93: #{clip_finetuner_forward.1} parent=11 // pred_check
          %p599 = pneg %p498
        $region94: #{clip_finetuner_forward.1} parent=11 // pred_check_branch
          %601 = sbr.rel (%p599) target = $region96
        $region95: #{clip_finetuner_forward.1} parent=11 // pred_region
          _
        $region96: #{clip_finetuner_forward.1} parent=11 // pred_fallthru
          _
      $region12: #{clip_finetuner_forward.1} parent=5 // pred_fallthru
        _
      %p602 = scmp.lt.s32.totalorder %s31, 2
      // Predicated region
      $region97: #{clip_finetuner_forward.1} parent=5 // pred_check
        %p603 = pneg %p602
      $region98: #{clip_finetuner_forward.1} parent=5 // pred_check_branch
        %605 = sbr.rel (%p603) target = $region100
      $region99: #{clip_finetuner_forward.1} parent=5 // pred_region
        // Predicated region
        $region101: #{clip_finetuner_forward.1} parent=99 // pred_check
          %p606 = pneg %p51
        $region102: #{clip_finetuner_forward.1} parent=99 // pred_check_branch
          %608 = sbr.rel (%p606) target = $region104
        $region103: #{clip_finetuner_forward.1} parent=99 // pred_region
          %p609 = scmp.lt.s32.totalorder %s31, 1
          %s610 = scalar_select %p609, %s31, 1
          %s611 = smul.addr %s610, 2
          %s612 = smul.addr %s611, 4
          %s613 = scalar_lea.vmem %s0, %s612
        $region104: #{clip_finetuner_forward.1} parent=99 // pred_fallthru
          _
      $region100: #{clip_finetuner_forward.1} parent=5 // pred_fallthru
        _
      %p614 = scmp.le.s32.totalorder 1, %s31
      %p615 = scmp.lt.s32.totalorder %s31, 3
      %p616 = pnand %p614, %p615
      %p617 = pneg %p616
      // Predicated region
      $region105: #{clip_finetuner_forward.1} parent=5 // pred_check
        _
      $region106: #{clip_finetuner_forward.1} parent=5 // pred_check_branch
        %619 = sbr.rel (%p616) target = $region108
      $region107: #{clip_finetuner_forward.1} parent=5 // pred_region
        %s620 = ssub.s32 %s31, 1
        %p621 = scmp.lt.s32.totalorder %s36, 1
        %s622 = scalar_select %p621, %s36, 1
        %s623 = smul.addr %s622, 2
        %s624 = smul.addr %s623, 4
        %s625 = scalar_lea.vmem %s0, %s624
        %p626 = pneg %p57
        %p627 = pneg %p54
        %p628 = pneg %p78
        %p629 = pneg %p75
        %p630 = pneg %p99
        %p631 = pneg %p96
        %p632 = pneg %p120
        %p633 = pneg %p117
        %p634 = pneg %p141
        %p635 = pneg %p138
        %p636 = pneg %p162
        %p637 = pneg %p159
        %p638 = pneg %p183
        %p639 = pneg %p180
        %p640 = pneg %p204
        %p641 = pneg %p201
        %p642 = pneg %p225
        %p643 = pneg %p222
        %p644 = pneg %p246
        %p645 = pneg %p243
        %p646 = pneg %p267
        %p647 = pneg %p264
        %p648 = pneg %p288
        %p649 = pneg %p285
        %p650 = pneg %p309
        %p651 = pneg %p306
        %p652 = pneg %p330
        %p653 = pneg %p327
        %p654 = pneg %p351
        %p655 = pneg %p348
        %p656 = pneg %p372
        %p657 = pneg %p369
        %p658 = pneg %p393
        %p659 = pneg %p390
        %p660 = pneg %p414
        %p661 = pneg %p411
        %p662 = pneg %p435
        %p663 = pneg %p432
        %p664 = pneg %p456
        %p665 = pneg %p453
        %p666 = pneg %p477
        %p667 = pneg %p474
        %p668 = pneg %p498
        %p669 = pneg %p495
        %p670 = pneg %p524
        %p671 = pneg %p521
        %s672 = sand.u32 %s511, 1
        %s673 = scalar_lea.sflag [#allocation3], %s672
        %s674 = sand.u32 %s511, 1
        %s675 = scalar_lea.vmem [#allocation2], %s674
        %p676 = scmp.lt.s32.totalorder %s36, 1
        %s677 = scalar_select %p676, %s36, 1
        %s678 = smul.addr %s677, 2
        %s679 = smul.addr %s678, 4
        %s680 = scalar_lea.vmem %s0, %s679
        %v682 = vld [vmem:[%s680] sm:$0x77]
        %v683 = vld [vmem:[%s1] sm:$0xf]
        %v684 = vld [vmem:[%s1 + $0x4] sm:$0xf]
        %v685 = vld [vmem:[%s1 + $0x8] sm:$0xf]
        %v686 = vld [vmem:[%s1 + $0xc] sm:$0xf]
        %v687 = vld [vmem:[%s1 + $0x10] sm:$0xf]
        %v688 = vld [vmem:[%s1 + $0x14] sm:$0xf]
        %v689 = vld [vmem:[%s1 + $0x18] sm:$0xf]
        %v690 = vld [vmem:[%s1 + $0x1c] sm:$0xf]
        %v691 = vld [vmem:[%s1 + $0x20] sm:$0xf]
        %v692 = vld [vmem:[%s1 + $0x24] sm:$0xf]
        %v693 = vld [vmem:[%s1 + $0x28] sm:$0xf]
        %v694 = vld [vmem:[%s1 + $0x2c] sm:$0xf]
        %v695 = vld [vmem:[%s1 + $0x30] sm:$0xf]
        %v696 = vld [vmem:[%s1 + $0x34] sm:$0xf]
        %v697 = vld [vmem:[%s1 + $0x38] sm:$0xf]
        %v698 = vld [vmem:[%s1 + $0x3c] sm:$0xf]
        %v699 = vld [vmem:[%s1 + $0x40] sm:$0xf]
        %v700 = vld [vmem:[%s1 + $0x44] sm:$0xf]
        %v701 = vld [vmem:[%s1 + $0x48] sm:$0xf]
        %v702 = vld [vmem:[%s1 + $0x4c] sm:$0xf]
        %v703 = vld [vmem:[%s1 + $0x50] sm:$0xf]
        %v704 = vld [vmem:[%s1 + $0x54] sm:$0xf]
        %v705 = vld [vmem:[%s1 + $0x58] sm:$0xf]
        %v706 = vld [vmem:[%s1 + $0x5c] sm:$0xf]
        %v707 = vld [vmem:[%s2] sm:$0x1f]
        %v709 = vunpack.c.l.b16 %v682
        %v710 = vunpack.c.h.b16 %v682
        %v711 = vpack.c.b16 %v709, %v709
        %v712 = vpack.c.b16 %v710, %v710
        %v738 = vunpack.c.l.b16 %v683
        %v739 = vunpack.c.l.b16 %v684
        %v740 = vunpack.c.l.b16 %v685
        %v741 = vunpack.c.l.b16 %v686
        %v742 = vunpack.c.l.b16 %v687
        %v743 = vunpack.c.l.b16 %v688
        %v744 = vunpack.c.l.b16 %v689
        %v745 = vunpack.c.l.b16 %v690
        %v746 = vunpack.c.l.b16 %v691
        %v747 = vunpack.c.l.b16 %v692
        %v748 = vunpack.c.l.b16 %v693
        %v749 = vunpack.c.l.b16 %v694
        %v750 = vunpack.c.l.b16 %v695
        %v751 = vunpack.c.l.b16 %v696
        %v752 = vunpack.c.l.b16 %v697
        %v753 = vunpack.c.l.b16 %v698
        %v754 = vunpack.c.l.b16 %v699
        %v755 = vunpack.c.l.b16 %v700
        %v756 = vunpack.c.l.b16 %v701
        %v757 = vunpack.c.l.b16 %v702
        %v758 = vunpack.c.l.b16 %v703
        %v759 = vunpack.c.l.b16 %v704
        %v760 = vunpack.c.l.b16 %v705
        %v761 = vunpack.c.l.b16 %v706
        %v762 = vpack.c.b16 %v739, %v738
        %v763 = vpack.c.b16 %v741, %v740
        %v764 = vpack.c.b16 %v743, %v742
        %v765 = vpack.c.b16 %v745, %v744
        %v766 = vpack.c.b16 %v747, %v746
        %v767 = vpack.c.b16 %v749, %v748
        %v768 = vpack.c.b16 %v751, %v750
        %v769 = vpack.c.b16 %v753, %v752
        %v770 = vpack.c.b16 %v755, %v754
        %v771 = vpack.c.b16 %v757, %v756
        %v772 = vpack.c.b16 %v759, %v758
        %v773 = vpack.c.b16 %v761, %v760
        %vm786 = vcmask 523264
        %v788 = vsel %vm786, %v712, 0
        %790 = vmatprep.subr.bf16.mxu0 0
        %791 = vmatpush1.bf16.msra.mxu0 %v769
        %792 = vmatprep.subr.bf16.mxu0 0
        %793 = vmatpush1.bf16.msra.mxu0 %v768
        %794 = vmatprep.subr.bf16.mxu0 0
        %795 = vmatpush1.bf16.msra.mxu0 %v767
        %796 = vmatprep.subr.bf16.mxu0 0
        %797 = vmatpush1.bf16.msra.mxu0 %v766
        %798 = vmatprep.subr.bf16.mxu0 0
        %799 = vmatpush1.bf16.msra.mxu0 %v765
        %800 = vmatprep.subr.bf16.mxu0 0
        %801 = vmatpush1.bf16.msra.mxu0 %v764
        %802 = vmatprep.subr.bf16.mxu0 0
        %803 = vmatpush1.bf16.msra.mxu0 %v763
        %804 = vmatprep.subr.bf16.mxu0 0
        %805 = vmatpush1.bf16.msra.mxu0 %v762
        %806 = vmatprep.subr.bf16.mxu0 0
        %807 = vmatpush2.bf16.msra.mxu0 0
        %808 = vmatprep.subr.bf16.mxu0 0
        %809 = vmatpush2.bf16.msra.mxu0 0
        %810 = vmatprep.subr.bf16.mxu0 0
        %811 = vmatpush2.bf16.msra.mxu0 0
        %812 = vmatprep.subr.bf16.mxu0 0
        %813 = vmatpush2.bf16.msra.mxu0 0
        %814 = vmatprep.subr.bf16.mxu0 0
        %815 = vmatpush2.bf16.msra.mxu0 %v773
        %816 = vmatprep.subr.bf16.mxu0 0
        %817 = vmatpush2.bf16.msra.mxu0 %v772
        %818 = vmatprep.subr.bf16.mxu0 0
        %819 = vmatpush2.bf16.msra.mxu0 %v771
        %820 = vmatprep.subr.bf16.mxu0 0
        %821 = vmatpush2.bf16.msra.mxu0 %v770
        %822 = vmatprep.mubr.bf16.mxu0 %v788
        %823 = vmatmul.mubr.bf16.gmra.mxu0 %v711
        %v824 = vpop.f32.mrf.mxu0
        %v825 = vadd.f32 %v707, %v824
        %v826 = vpop.f32.mrf.mxu0
        %v827 = vpop.f32.mrf.mxu0
        %v828 = vpop.f32.mrf.mxu0
        %829 = vdwg.mxu0
        %v830 = vld [vmem:[%s3] sm:$0x1]
        %v831 = vld [vmem:[%s4] sm:$0x1]
        %vm832 = vcmask 258048
        %v833 = vsel %vm832, %v825, 0.0
        %834 = vadd.xlane.f32.xlu0 %v833
        %v835 = vpop.xlane.xlu0 %834
        %v836 = vrcp.pop 32.0
        %v837 = vmul.f32 %v835, %v836
        %v838 = vsub.f32 %v825, %v837
        %v839 = vmul.f32 %v838, %v838
        %v840 = vsel %vm832, %v839, 0.0
        %841 = vadd.xlane.f32.xlu0 %v840
        %v842 = vpop.xlane.xlu0 %841
        %v843 = vmul.f32 %v842, %v836
        %v844 = vadd.f32 %v843, 1e-05
        %v845 = vrsqrt.pop %v844
        %v846 = vmul.f32 %v838, %v845
        %v848 = vlaneseq
        %v849 = vshrl.u32 %v848, 7
        %v850 = vsub.s32 0, %v849
        %v851 = vrot.slane %v830, %v850
        %v853 = vmul.f32 %v846, %v851
        %v855 = vlaneseq
        %v856 = vshrl.u32 %v855, 7
        %v857 = vsub.s32 0, %v856
        %v858 = vrot.slane %v831, %v857
        %v860 = vadd.f32 %v853, %v858
        %v861 = vld [vmem:[%s5] sm:$0x1]
        %v862 = vld [vmem:[%s6] sm:$0x1]
        %v863 = vsel %vm832, %v860, 0.0
        %864 = vadd.xlane.f32.xlu0 %v863
        %v865 = vpop.xlane.xlu0 %864
        %v866 = vmul.f32 %v865, %v836
        %v867 = vsub.f32 %v860, %v866
        %v868 = vmul.f32 %v867, %v867
        %v869 = vsel %vm832, %v868, 0.0
        %870 = vadd.xlane.f32.xlu0 %v869
        %v871 = vpop.xlane.xlu0 %870
        %v872 = vmul.f32 %v871, %v836
        %v873 = vadd.f32 %v872, 1e-05
        %v874 = vrsqrt.pop %v873
        %v875 = vmul.f32 %v867, %v874
        %v877 = vlaneseq
        %v878 = vshrl.u32 %v877, 7
        %v879 = vsub.s32 0, %v878
        %v880 = vrot.slane %v861, %v879
        %v882 = vmul.f32 %v875, %v880
        %v884 = vlaneseq
        %v885 = vshrl.u32 %v884, 7
        %v886 = vsub.s32 0, %v885
        %v887 = vrot.slane %v862, %v886
        %v889 = vadd.f32 %v882, %v887
        %v890 = vpack.c.bf16 %v889, %v889
        %v891 = vld [vmem:[%s7] sm:$0xf]
        %v892 = vld [vmem:[%s7 + $0x4] sm:$0xf]
        %v893 = vld [vmem:[%s7 + $0x8] sm:$0xf]
        %v894 = vld [vmem:[%s7 + $0xc] sm:$0xf]
        %v895 = vld [vmem:[%s8] sm:$0x1]
        %v897 = vlaneseq
        %v898 = vshrl.u32 %v897, 7
        %v899 = vsub.s32 0, %v898
        %v900 = vrot.slane %v895, %v899
        %v906 = vunpack.c.l.b16 %v891
        %v907 = vunpack.c.l.b16 %v892
        %v908 = vunpack.c.l.b16 %v893
        %v909 = vunpack.c.l.b16 %v894
        %v910 = vpack.c.b16 %v907, %v906
        %v911 = vpack.c.b16 %v909, %v908
        %vm914 = vcmask 261120
        %v916 = vsel %vm914, %v890, 0
        %918 = vmatprep.subr.bf16.mxu0 0
        %919 = vmatpush1.bf16.msra.mxu0 0
        %920 = vmatprep.subr.bf16.mxu0 0
        %921 = vmatpush1.bf16.msra.mxu0 0
        %922 = vmatprep.subr.bf16.mxu0 0
        %923 = vmatpush1.bf16.msra.mxu0 0
        %924 = vmatprep.subr.bf16.mxu0 0
        %925 = vmatpush1.bf16.msra.mxu0 0
        %926 = vmatprep.subr.bf16.mxu0 0
        %927 = vmatpush1.bf16.msra.mxu0 0
        %928 = vmatprep.subr.bf16.mxu0 0
        %929 = vmatpush1.bf16.msra.mxu0 0
        %930 = vmatprep.subr.bf16.mxu0 0
        %931 = vmatpush1.bf16.msra.mxu0 %v911
        %932 = vmatprep.subr.bf16.mxu0 0
        %933 = vmatpush1.bf16.msra.mxu0 %v910
        %934 = vmatprep.subr.bf16.mxu0 0
        %935 = vmatpush2.bf16.msra.mxu0 0
        %936 = vmatprep.subr.bf16.mxu0 0
        %937 = vmatpush2.bf16.msra.mxu0 0
        %938 = vmatprep.subr.bf16.mxu0 0
        %939 = vmatpush2.bf16.msra.mxu0 0
        %940 = vmatprep.subr.bf16.mxu0 0
        %941 = vmatpush2.bf16.msra.mxu0 0
        %942 = vmatprep.subr.bf16.mxu0 0
        %943 = vmatpush2.bf16.msra.mxu0 0
        %944 = vmatprep.subr.bf16.mxu0 0
        %945 = vmatpush2.bf16.msra.mxu0 0
        %946 = vmatprep.subr.bf16.mxu0 0
        %947 = vmatpush2.bf16.msra.mxu0 0
        %948 = vmatprep.subr.bf16.mxu0 0
        %949 = vmatpush2.bf16.msra.mxu0 0
        %950 = vmatprep.mubr.bf16.mxu0 0
        %951 = vmatmul.mubr.bf16.gmra.mxu0 %v916
        %v952 = vpop.f32.mrf.mxu0
        %v953 = vadd.f32 %v900, %v952
        %v954 = vpop.f32.mrf.mxu0
        %v955 = vpop.f32.mrf.mxu0
        %v956 = vpop.f32.mrf.mxu0
        %957 = vdwg.mxu0
        %v958 = vpack.c.bf16 %v953, %v953
        %v959 = vld [vmem:[%s9] sm:$0xf]
        %v960 = vld [vmem:[%s9 + $0x4] sm:$0xf]
        %v961 = vld [vmem:[%s9 + $0x8] sm:$0xf]
        %v962 = vld [vmem:[%s9 + $0xc] sm:$0xf]
        %964 = vrot.lane.b32.xlu0 %v958, 96
        %v965 = vpop.permute.xlu0 %964
        %vm966 = vcmask 64512
        %v968 = vsel %vm966, %v958, 0
        %v971 = vsel %vm966, %v965, 0
        %973 = vmatprep.subr.bf16.mxu0 0
        %974 = vmatpush1.bf16.xpose.msra.mxu0 0
        %975 = vmatprep.subr.bf16.mxu0 0
        %976 = vmatpush1.bf16.xpose.msra.mxu0 0
        %977 = vmatprep.subr.bf16.mxu0 0
        %978 = vmatpush1.bf16.xpose.msra.mxu0 0
        %979 = vmatprep.subr.bf16.mxu0 0
        %980 = vmatpush1.bf16.xpose.msra.mxu0 0
        %981 = vmatprep.subr.bf16.mxu0 0
        %982 = vmatpush1.bf16.xpose.msra.mxu0 0
        %983 = vmatprep.subr.bf16.mxu0 0
        %984 = vmatpush1.bf16.xpose.msra.mxu0 0
        %985 = vmatprep.subr.bf16.mxu0 0
        %986 = vmatpush1.bf16.xpose.msra.mxu0 0
        %987 = vmatprep.subr.bf16.mxu0 0
        %988 = vmatpush1.bf16.xpose.msra.mxu0 %v971
        %989 = vmatprep.subr.bf16.mxu0 0
        %990 = vmatpush2.bf16.xpose.msra.mxu0 0
        %991 = vmatprep.subr.bf16.mxu0 0
        %992 = vmatpush2.bf16.xpose.msra.mxu0 0
        %993 = vmatprep.subr.bf16.mxu0 0
        %994 = vmatpush2.bf16.xpose.msra.mxu0 0
        %995 = vmatprep.subr.bf16.mxu0 0
        %996 = vmatpush2.bf16.xpose.msra.mxu0 0
        %997 = vmatprep.subr.bf16.mxu0 0
        %998 = vmatpush2.bf16.xpose.msra.mxu0 0
        %999 = vmatprep.subr.bf16.mxu0 0
        %1000 = vmatpush2.bf16.xpose.msra.mxu0 0
        %1001 = vmatprep.subr.bf16.mxu0 0
        %1002 = vmatpush2.bf16.xpose.msra.mxu0 0
        %1003 = vmatprep.subr.bf16.mxu0 0
        %1004 = vmatpush2.bf16.xpose.msra.mxu0 0
        %1005 = vmatprep.mubr.bf16.mxu0 0
        %1006 = vmatmul.mubr.bf16.gmra.mxu0 %v968
        %v1007 = vpop.f32.mrf.mxu0
        %v1008 = vadd.f32 0.0, %v1007
        %v1009 = vpop.f32.mrf.mxu0
        %v1010 = vpop.f32.mrf.mxu0
        %v1011 = vpop.f32.mrf.mxu0
        %1012 = vdwg.mxu0
        %v1013 = vmul.f32 %v1008, 0.35355338
        %vm1014 = vcmask 36864
        %v1015 = vsel %vm1014, %v1013, -inf
        %1016 = vmax.xlane.f32.xlu0 %v1015
        %v1017 = vpop.xlane.xlu0 %1016
        %v1018 = vsub.f32 %v1013, %v1017
        %v1019 = vmul.f32 %v1018, 1.442695
        %v1020 = vpow.pop %v1019
        %v1021 = vsel %vm1014, %v1020, 0.0
        %1022 = vadd.xlane.f32.xlu0 %v1021
        %v1023 = vpop.xlane.xlu0 %1022
        %v1024 = vrcp.pop %v1023
        %v1025 = vmul.f32 %v1020, %v1024
        %v1026 = vpack.c.bf16 %v1025, %v1025
        %1027 = vrot.lane.b32.xlu0 %v958, 64
        %v1028 = vpop.permute.xlu0 %1027
        %vm1029 = vcmask 39936
        %v1031 = vsel %vm1029, %v1026, 0
        %vm1033 = vcmask 1041408
        %vm1034 = vcmask 1042432
        %v1035 = vsel %vm1033, 4294967295, 65535
        %v1036 = vsel %vm1034, %v1035, 0
        %v1038 = vand.u32 %v1028, %v1036
        %1040 = vmatprep.subr.bf16.mxu0 0
        %1041 = vmatpush1.bf16.msra.mxu0 0
        %1042 = vmatprep.subr.bf16.mxu0 0
        %1043 = vmatpush1.bf16.msra.mxu0 0
        %1044 = vmatprep.subr.bf16.mxu0 0
        %1045 = vmatpush1.bf16.msra.mxu0 0
        %1046 = vmatprep.subr.bf16.mxu0 0
        %1047 = vmatpush1.bf16.msra.mxu0 0
        %1048 = vmatprep.subr.bf16.mxu0 0
        %1049 = vmatpush1.bf16.msra.mxu0 0
        %1050 = vmatprep.subr.bf16.mxu0 0
        %1051 = vmatpush1.bf16.msra.mxu0 0
        %1052 = vmatprep.subr.bf16.mxu0 0
        %1053 = vmatpush1.bf16.msra.mxu0 0
        %1054 = vmatprep.subr.bf16.mxu0 0
        %1055 = vmatpush1.bf16.msra.mxu0 %v1038
        %1056 = vmatprep.subr.bf16.mxu0 0
        %1057 = vmatpush2.bf16.msra.mxu0 0
        %1058 = vmatprep.subr.bf16.mxu0 0
        %1059 = vmatpush2.bf16.msra.mxu0 0
        %1060 = vmatprep.subr.bf16.mxu0 0
        %1061 = vmatpush2.bf16.msra.mxu0 0
        %1062 = vmatprep.subr.bf16.mxu0 0
        %1063 = vmatpush2.bf16.msra.mxu0 0
        %1064 = vmatprep.subr.bf16.mxu0 0
        %1065 = vmatpush2.bf16.msra.mxu0 0
        %1066 = vmatprep.subr.bf16.mxu0 0
        %1067 = vmatpush2.bf16.msra.mxu0 0
        %1068 = vmatprep.subr.bf16.mxu0 0
        %1069 = vmatpush2.bf16.msra.mxu0 0
        %1070 = vmatprep.subr.bf16.mxu0 0
        %1071 = vmatpush2.bf16.msra.mxu0 0
        %1072 = vmatprep.mubr.bf16.mxu0 0
        %1073 = vmatmul.mubr.bf16.gmra.mxu0 %v1031
        %v1074 = vpop.f32.mrf.mxu0
        %v1075 = vadd.f32 0.0, %v1074
        %v1076 = vpop.f32.mrf.mxu0
        %v1077 = vpop.f32.mrf.mxu0
        %v1078 = vpop.f32.mrf.mxu0
        %1079 = vdwg.mxu0
        %v1080 = vpack.c.bf16 %v1075, %v1075
        %1081 = vrot.lane.b32.xlu0 %v958, 120
        %v1082 = vpop.permute.xlu0 %1081
        %1083 = vrot.lane.b32.xlu0 %v958, 88
        %v1084 = vpop.permute.xlu0 %1083
        %v1086 = vsel %vm966, %v1082, 0
        %v1089 = vsel %vm966, %v1084, 0
        %1091 = vmatprep.subr.bf16.mxu0 0
        %1092 = vmatpush1.bf16.xpose.msra.mxu0 0
        %1093 = vmatprep.subr.bf16.mxu0 0
        %1094 = vmatpush1.bf16.xpose.msra.mxu0 0
        %1095 = vmatprep.subr.bf16.mxu0 0
        %1096 = vmatpush1.bf16.xpose.msra.mxu0 0
        %1097 = vmatprep.subr.bf16.mxu0 0
        %1098 = vmatpush1.bf16.xpose.msra.mxu0 0
        %1099 = vmatprep.subr.bf16.mxu0 0
        %1100 = vmatpush1.bf16.xpose.msra.mxu0 0
        %1101 = vmatprep.subr.bf16.mxu0 0
        %1102 = vmatpush1.bf16.xpose.msra.mxu0 0
        %1103 = vmatprep.subr.bf16.mxu0 0
        %1104 = vmatpush1.bf16.xpose.msra.mxu0 0
        %1105 = vmatprep.subr.bf16.mxu0 0
        %1106 = vmatpush1.bf16.xpose.msra.mxu0 %v1089
        %1107 = vmatprep.subr.bf16.mxu0 0
        %1108 = vmatpush2.bf16.xpose.msra.mxu0 0
        %1109 = vmatprep.subr.bf16.mxu0 0
        %1110 = vmatpush2.bf16.xpose.msra.mxu0 0
        %1111 = vmatprep.subr.bf16.mxu0 0
        %1112 = vmatpush2.bf16.xpose.msra.mxu0 0
        %1113 = vmatprep.subr.bf16.mxu0 0
        %1114 = vmatpush2.bf16.xpose.msra.mxu0 0
        %1115 = vmatprep.subr.bf16.mxu0 0
        %1116 = vmatpush2.bf16.xpose.msra.mxu0 0
        %1117 = vmatprep.subr.bf16.mxu0 0
        %1118 = vmatpush2.bf16.xpose.msra.mxu0 0
        %1119 = vmatprep.subr.bf16.mxu0 0
        %1120 = vmatpush2.bf16.xpose.msra.mxu0 0
        %1121 = vmatprep.subr.bf16.mxu0 0
        %1122 = vmatpush2.bf16.xpose.msra.mxu0 0
        %1123 = vmatprep.mubr.bf16.mxu0 0
        %1124 = vmatmul.mubr.bf16.gmra.mxu0 %v1086
        %v1125 = vpop.f32.mrf.mxu0
        %v1126 = vadd.f32 0.0, %v1125
        %v1127 = vpop.f32.mrf.mxu0
        %v1128 = vpop.f32.mrf.mxu0
        %v1129 = vpop.f32.mrf.mxu0
        %1130 = vdwg.mxu0
        %v1131 = vmul.f32 %v1126, 0.35355338
        %v1132 = vsel %vm1014, %v1131, -inf
        %1133 = vmax.xlane.f32.xlu0 %v1132
        %v1134 = vpop.xlane.xlu0 %1133
        %v1135 = vsub.f32 %v1131, %v1134
        %v1136 = vmul.f32 %v1135, 1.442695
        %v1137 = vpow.pop %v1136
        %v1138 = vsel %vm1014, %v1137, 0.0
        %1139 = vadd.xlane.f32.xlu0 %v1138
        %v1140 = vpop.xlane.xlu0 %1139
        %v1141 = vrcp.pop %v1140
        %v1142 = vmul.f32 %v1137, %v1141
        %v1143 = vpack.c.bf16 %v1142, %v1142
        %1144 = vrot.lane.b32.xlu0 %v958, 56
        %v1145 = vpop.permute.xlu0 %1144
        %v1147 = vsel %vm1029, %v1143, 0
        %v1150 = vand.u32 %v1145, %v1036
        %1152 = vmatprep.subr.bf16.mxu0 0
        %1153 = vmatpush1.bf16.msra.mxu0 0
        %1154 = vmatprep.subr.bf16.mxu0 0
        %1155 = vmatpush1.bf16.msra.mxu0 0
        %1156 = vmatprep.subr.bf16.mxu0 0
        %1157 = vmatpush1.bf16.msra.mxu0 0
        %1158 = vmatprep.subr.bf16.mxu0 0
        %1159 = vmatpush1.bf16.msra.mxu0 0
        %1160 = vmatprep.subr.bf16.mxu0 0
        %1161 = vmatpush1.bf16.msra.mxu0 0
        %1162 = vmatprep.subr.bf16.mxu0 0
        %1163 = vmatpush1.bf16.msra.mxu0 0
        %1164 = vmatprep.subr.bf16.mxu0 0
        %1165 = vmatpush1.bf16.msra.mxu0 0
        %1166 = vmatprep.subr.bf16.mxu0 0
        %1167 = vmatpush1.bf16.msra.mxu0 %v1150
        %1168 = vmatprep.subr.bf16.mxu0 0
        %1169 = vmatpush2.bf16.msra.mxu0 0
        %1170 = vmatprep.subr.bf16.mxu0 0
        %1171 = vmatpush2.bf16.msra.mxu0 0
        %1172 = vmatprep.subr.bf16.mxu0 0
        %1173 = vmatpush2.bf16.msra.mxu0 0
        %1174 = vmatprep.subr.bf16.mxu0 0
        %1175 = vmatpush2.bf16.msra.mxu0 0
        %1176 = vmatprep.subr.bf16.mxu0 0
        %1177 = vmatpush2.bf16.msra.mxu0 0
        %1178 = vmatprep.subr.bf16.mxu0 0
        %1179 = vmatpush2.bf16.msra.mxu0 0
        %1180 = vmatprep.subr.bf16.mxu0 0
        %1181 = vmatpush2.bf16.msra.mxu0 0
        %1182 = vmatprep.subr.bf16.mxu0 0
        %1183 = vmatpush2.bf16.msra.mxu0 0
        %1184 = vmatprep.mubr.bf16.mxu0 0
        %1185 = vmatmul.mubr.bf16.gmra.mxu0 %v1147
        %v1186 = vpop.f32.mrf.mxu0
        %v1187 = vadd.f32 0.0, %v1186
        %v1188 = vpop.f32.mrf.mxu0
        %v1189 = vpop.f32.mrf.mxu0
        %v1190 = vpop.f32.mrf.mxu0
        %1191 = vdwg.mxu0
        %v1192 = vpack.c.bf16 %v1187, %v1187
        %v1194 = vsel %vm966, %v1192, 0
        %vm1196 = vcmask 1043456
        %v1198 = vsel %vm1196, %v960, 0
        %1200 = vmatprep.subr.bf16.mxu0 0
        %1201 = vmatpush1.bf16.msra.mxu0 0
        %1202 = vmatprep.subr.bf16.mxu0 0
        %1203 = vmatpush1.bf16.msra.mxu0 0
        %1204 = vmatprep.subr.bf16.mxu0 0
        %1205 = vmatpush1.bf16.msra.mxu0 0
        %1206 = vmatprep.subr.bf16.mxu0 0
        %1207 = vmatpush1.bf16.msra.mxu0 0
        %1208 = vmatprep.subr.bf16.mxu0 0
        %1209 = vmatpush1.bf16.msra.mxu0 0
        %1210 = vmatprep.subr.bf16.mxu0 0
        %1211 = vmatpush1.bf16.msra.mxu0 0
        %1212 = vmatprep.subr.bf16.mxu0 0
        %1213 = vmatpush1.bf16.msra.mxu0 0
        %1214 = vmatprep.subr.bf16.mxu0 0
        %1215 = vmatpush1.bf16.msra.mxu0 %v1198
        %1216 = vmatprep.subr.bf16.mxu0 0
        %1217 = vmatpush2.bf16.msra.mxu0 0
        %1218 = vmatprep.subr.bf16.mxu0 0
        %1219 = vmatpush2.bf16.msra.mxu0 0
        %1220 = vmatprep.subr.bf16.mxu0 0
        %1221 = vmatpush2.bf16.msra.mxu0 0
        %1222 = vmatprep.subr.bf16.mxu0 0
        %1223 = vmatpush2.bf16.msra.mxu0 0
        %1224 = vmatprep.subr.bf16.mxu0 0
        %1225 = vmatpush2.bf16.msra.mxu0 0
        %1226 = vmatprep.subr.bf16.mxu0 0
        %1227 = vmatpush2.bf16.msra.mxu0 0
        %1228 = vmatprep.subr.bf16.mxu0 0
        %1229 = vmatpush2.bf16.msra.mxu0 0
        %1230 = vmatprep.subr.bf16.mxu0 0
        %1231 = vmatpush2.bf16.msra.mxu0 0
        %1232 = vmatprep.mubr.bf16.mxu0 0
        %1233 = vmatmul.mubr.bf16.gmra.mxu0 %v1194
        %v1234 = vpop.f32.mrf.mxu0
        %v1235 = vadd.f32 0.0, %v1234
        %v1236 = vpop.f32.mrf.mxu0
        %v1237 = vpop.f32.mrf.mxu0
        %v1238 = vpop.f32.mrf.mxu0
        %1239 = vdwg.mxu0
        %v1241 = vsel %vm966, %v1080, 0
        %v1244 = vsel %vm1196, %v959, 0
        %1246 = vmatprep.subr.bf16.mxu0 0
        %1247 = vmatpush1.bf16.msra.mxu0 0
        %1248 = vmatprep.subr.bf16.mxu0 0
        %1249 = vmatpush1.bf16.msra.mxu0 0
        %1250 = vmatprep.subr.bf16.mxu0 0
        %1251 = vmatpush1.bf16.msra.mxu0 0
        %1252 = vmatprep.subr.bf16.mxu0 0
        %1253 = vmatpush1.bf16.msra.mxu0 0
        %1254 = vmatprep.subr.bf16.mxu0 0
        %1255 = vmatpush1.bf16.msra.mxu0 0
        %1256 = vmatprep.subr.bf16.mxu0 0
        %1257 = vmatpush1.bf16.msra.mxu0 0
        %1258 = vmatprep.subr.bf16.mxu0 0
        %1259 = vmatpush1.bf16.msra.mxu0 0
        %1260 = vmatprep.subr.bf16.mxu0 0
        %1261 = vmatpush1.bf16.msra.mxu0 %v1244
        %1262 = vmatprep.subr.bf16.mxu0 0
        %1263 = vmatpush2.bf16.msra.mxu0 0
        %1264 = vmatprep.subr.bf16.mxu0 0
        %1265 = vmatpush2.bf16.msra.mxu0 0
        %1266 = vmatprep.subr.bf16.mxu0 0
        %1267 = vmatpush2.bf16.msra.mxu0 0
        %1268 = vmatprep.subr.bf16.mxu0 0
        %1269 = vmatpush2.bf16.msra.mxu0 0
        %1270 = vmatprep.subr.bf16.mxu0 0
        %1271 = vmatpush2.bf16.msra.mxu0 0
        %1272 = vmatprep.subr.bf16.mxu0 0
        %1273 = vmatpush2.bf16.msra.mxu0 0
        %1274 = vmatprep.subr.bf16.mxu0 0
        %1275 = vmatpush2.bf16.msra.mxu0 0
        %1276 = vmatprep.subr.bf16.mxu0 0
        %1277 = vmatpush2.bf16.msra.mxu0 0
        %1278 = vmatprep.mubr.bf16.mxu0 0
        %1279 = vmatmul.mubr.bf16.gmra.mxu0 %v1241
        %v1280 = vpop.f32.mrf.mxu0
        %v1281 = vadd.f32 %v1235, %v1280
        %v1282 = vpop.f32.mrf.mxu0
        %v1283 = vpop.f32.mrf.mxu0
        %v1284 = vpop.f32.mrf.mxu0
        %1285 = vdwg.mxu0
        %1286 = vrot.lane.b32.xlu0 %v958, 112
        %v1287 = vpop.permute.xlu0 %1286
        %1288 = vrot.lane.b32.xlu0 %v958, 80
        %v1289 = vpop.permute.xlu0 %1288
        %v1291 = vsel %vm966, %v1287, 0
        %v1294 = vsel %vm966, %v1289, 0
        %1296 = vmatprep.subr.bf16.mxu0 0
        %1297 = vmatpush1.bf16.xpose.msra.mxu0 0
        %1298 = vmatprep.subr.bf16.mxu0 0
        %1299 = vmatpush1.bf16.xpose.msra.mxu0 0
        %1300 = vmatprep.subr.bf16.mxu0 0
        %1301 = vmatpush1.bf16.xpose.msra.mxu0 0
        %1302 = vmatprep.subr.bf16.mxu0 0
        %1303 = vmatpush1.bf16.xpose.msra.mxu0 0
        %1304 = vmatprep.subr.bf16.mxu0 0
        %1305 = vmatpush1.bf16.xpose.msra.mxu0 0
        %1306 = vmatprep.subr.bf16.mxu0 0
        %1307 = vmatpush1.bf16.xpose.msra.mxu0 0
        %1308 = vmatprep.subr.bf16.mxu0 0
        %1309 = vmatpush1.bf16.xpose.msra.mxu0 0
        %1310 = vmatprep.subr.bf16.mxu0 0
        %1311 = vmatpush1.bf16.xpose.msra.mxu0 %v1294
        %1312 = vmatprep.subr.bf16.mxu0 0
        %1313 = vmatpush2.bf16.xpose.msra.mxu0 0
        %1314 = vmatprep.subr.bf16.mxu0 0
        %1315 = vmatpush2.bf16.xpose.msra.mxu0 0
        %1316 = vmatprep.subr.bf16.mxu0 0
        %1317 = vmatpush2.bf16.xpose.msra.mxu0 0
        %1318 = vmatprep.subr.bf16.mxu0 0
        %1319 = vmatpush2.bf16.xpose.msra.mxu0 0
        %1320 = vmatprep.subr.bf16.mxu0 0
        %1321 = vmatpush2.bf16.xpose.msra.mxu0 0
        %1322 = vmatprep.subr.bf16.mxu0 0
        %1323 = vmatpush2.bf16.xpose.msra.mxu0 0
        %1324 = vmatprep.subr.bf16.mxu0 0
        %1325 = vmatpush2.bf16.xpose.msra.mxu0 0
        %1326 = vmatprep.subr.bf16.mxu0 0
        %1327 = vmatpush2.bf16.xpose.msra.mxu0 0
        %1328 = vmatprep.mubr.bf16.mxu0 0
        %1329 = vmatmul.mubr.bf16.gmra.mxu0 %v1291
        %v1330 = vpop.f32.mrf.mxu0
        %v1331 = vadd.f32 0.0, %v1330
        %v1332 = vpop.f32.mrf.mxu0
        %v1333 = vpop.f32.mrf.mxu0
        %v1334 = vpop.f32.mrf.mxu0
        %1335 = vdwg.mxu0
        %v1336 = vmul.f32 %v1331, 0.35355338
        %v1337 = vsel %vm1014, %v1336, -inf
        %1338 = vmax.xlane.f32.xlu0 %v1337
        %v1339 = vpop.xlane.xlu0 %1338
        %v1340 = vsub.f32 %v1336, %v1339
        %v1341 = vmul.f32 %v1340, 1.442695
        %v1342 = vpow.pop %v1341
        %v1343 = vsel %vm1014, %v1342, 0.0
        %1344 = vadd.xlane.f32.xlu0 %v1343
        %v1345 = vpop.xlane.xlu0 %1344
        %v1346 = vrcp.pop %v1345
        %v1347 = vmul.f32 %v1342, %v1346
        %v1348 = vpack.c.bf16 %v1347, %v1347
        %1349 = vrot.lane.b32.xlu0 %v958, 48
        %v1350 = vpop.permute.xlu0 %1349
        %v1352 = vsel %vm1029, %v1348, 0
        %v1355 = vand.u32 %v1350, %v1036
        %1357 = vmatprep.subr.bf16.mxu0 0
        %1358 = vmatpush1.bf16.msra.mxu0 0
        %1359 = vmatprep.subr.bf16.mxu0 0
        %1360 = vmatpush1.bf16.msra.mxu0 0
        %1361 = vmatprep.subr.bf16.mxu0 0
        %1362 = vmatpush1.bf16.msra.mxu0 0
        %1363 = vmatprep.subr.bf16.mxu0 0
        %1364 = vmatpush1.bf16.msra.mxu0 0
        %1365 = vmatprep.subr.bf16.mxu0 0
        %1366 = vmatpush1.bf16.msra.mxu0 0
        %1367 = vmatprep.subr.bf16.mxu0 0
        %1368 = vmatpush1.bf16.msra.mxu0 0
        %1369 = vmatprep.subr.bf16.mxu0 0
        %1370 = vmatpush1.bf16.msra.mxu0 0
        %1371 = vmatprep.subr.bf16.mxu0 0
        %1372 = vmatpush1.bf16.msra.mxu0 %v1355
        %1373 = vmatprep.subr.bf16.mxu0 0
        %1374 = vmatpush2.bf16.msra.mxu0 0
        %1375 = vmatprep.subr.bf16.mxu0 0
        %1376 = vmatpush2.bf16.msra.mxu0 0
        %1377 = vmatprep.subr.bf16.mxu0 0
        %1378 = vmatpush2.bf16.msra.mxu0 0
        %1379 = vmatprep.subr.bf16.mxu0 0
        %1380 = vmatpush2.bf16.msra.mxu0 0
        %1381 = vmatprep.subr.bf16.mxu0 0
        %1382 = vmatpush2.bf16.msra.mxu0 0
        %1383 = vmatprep.subr.bf16.mxu0 0
        %1384 = vmatpush2.bf16.msra.mxu0 0
        %1385 = vmatprep.subr.bf16.mxu0 0
        %1386 = vmatpush2.bf16.msra.mxu0 0
        %1387 = vmatprep.subr.bf16.mxu0 0
        %1388 = vmatpush2.bf16.msra.mxu0 0
        %1389 = vmatprep.mubr.bf16.mxu0 0
        %1390 = vmatmul.mubr.bf16.gmra.mxu0 %v1352
        %v1391 = vpop.f32.mrf.mxu0
        %v1392 = vadd.f32 0.0, %v1391
        %v1393 = vpop.f32.mrf.mxu0
        %v1394 = vpop.f32.mrf.mxu0
        %v1395 = vpop.f32.mrf.mxu0
        %1396 = vdwg.mxu0
        %v1397 = vpack.c.bf16 %v1392, %v1392
        %v1399 = vsel %vm966, %v1397, 0
        %v1402 = vsel %vm1196, %v961, 0
        %1404 = vmatprep.subr.bf16.mxu0 0
        %1405 = vmatpush1.bf16.msra.mxu0 0
        %1406 = vmatprep.subr.bf16.mxu0 0
        %1407 = vmatpush1.bf16.msra.mxu0 0
        %1408 = vmatprep.subr.bf16.mxu0 0
        %1409 = vmatpush1.bf16.msra.mxu0 0
        %1410 = vmatprep.subr.bf16.mxu0 0
        %1411 = vmatpush1.bf16.msra.mxu0 0
        %1412 = vmatprep.subr.bf16.mxu0 0
        %1413 = vmatpush1.bf16.msra.mxu0 0
        %1414 = vmatprep.subr.bf16.mxu0 0
        %1415 = vmatpush1.bf16.msra.mxu0 0
        %1416 = vmatprep.subr.bf16.mxu0 0
        %1417 = vmatpush1.bf16.msra.mxu0 0
        %1418 = vmatprep.subr.bf16.mxu0 0
        %1419 = vmatpush1.bf16.msra.mxu0 %v1402
        %1420 = vmatprep.subr.bf16.mxu0 0
        %1421 = vmatpush2.bf16.msra.mxu0 0
        %1422 = vmatprep.subr.bf16.mxu0 0
        %1423 = vmatpush2.bf16.msra.mxu0 0
        %1424 = vmatprep.subr.bf16.mxu0 0
        %1425 = vmatpush2.bf16.msra.mxu0 0
        %1426 = vmatprep.subr.bf16.mxu0 0
        %1427 = vmatpush2.bf16.msra.mxu0 0
        %1428 = vmatprep.subr.bf16.mxu0 0
        %1429 = vmatpush2.bf16.msra.mxu0 0
        %1430 = vmatprep.subr.bf16.mxu0 0
        %1431 = vmatpush2.bf16.msra.mxu0 0
        %1432 = vmatprep.subr.bf16.mxu0 0
        %1433 = vmatpush2.bf16.msra.mxu0 0
        %1434 = vmatprep.subr.bf16.mxu0 0
        %1435 = vmatpush2.bf16.msra.mxu0 0
        %1436 = vmatprep.mubr.bf16.mxu0 0
        %1437 = vmatmul.mubr.bf16.gmra.mxu0 %v1399
        %v1438 = vpop.f32.mrf.mxu0
        %v1439 = vadd.f32 0.0, %v1438
        %v1440 = vpop.f32.mrf.mxu0
        %v1441 = vpop.f32.mrf.mxu0
        %v1442 = vpop.f32.mrf.mxu0
        %1443 = vdwg.mxu0
        %v1444 = vadd.f32 %v1281, %v1439
        %1445 = vrot.lane.b32.xlu0 %v958, 104
        %v1446 = vpop.permute.xlu0 %1445
        %1447 = vrot.lane.b32.xlu0 %v958, 72
        %v1448 = vpop.permute.xlu0 %1447
        %v1450 = vsel %vm966, %v1446, 0
        %v1453 = vsel %vm966, %v1448, 0
        %1455 = vmatprep.subr.bf16.mxu0 0
        %1456 = vmatpush1.bf16.xpose.msra.mxu0 0
        %1457 = vmatprep.subr.bf16.mxu0 0
        %1458 = vmatpush1.bf16.xpose.msra.mxu0 0
        %1459 = vmatprep.subr.bf16.mxu0 0
        %1460 = vmatpush1.bf16.xpose.msra.mxu0 0
        %1461 = vmatprep.subr.bf16.mxu0 0
        %1462 = vmatpush1.bf16.xpose.msra.mxu0 0
        %1463 = vmatprep.subr.bf16.mxu0 0
        %1464 = vmatpush1.bf16.xpose.msra.mxu0 0
        %1465 = vmatprep.subr.bf16.mxu0 0
        %1466 = vmatpush1.bf16.xpose.msra.mxu0 0
        %1467 = vmatprep.subr.bf16.mxu0 0
        %1468 = vmatpush1.bf16.xpose.msra.mxu0 0
        %1469 = vmatprep.subr.bf16.mxu0 0
        %1470 = vmatpush1.bf16.xpose.msra.mxu0 %v1453
        %1471 = vmatprep.subr.bf16.mxu0 0
        %1472 = vmatpush2.bf16.xpose.msra.mxu0 0
        %1473 = vmatprep.subr.bf16.mxu0 0
        %1474 = vmatpush2.bf16.xpose.msra.mxu0 0
        %1475 = vmatprep.subr.bf16.mxu0 0
        %1476 = vmatpush2.bf16.xpose.msra.mxu0 0
        %1477 = vmatprep.subr.bf16.mxu0 0
        %1478 = vmatpush2.bf16.xpose.msra.mxu0 0
        %1479 = vmatprep.subr.bf16.mxu0 0
        %1480 = vmatpush2.bf16.xpose.msra.mxu0 0
        %1481 = vmatprep.subr.bf16.mxu0 0
        %1482 = vmatpush2.bf16.xpose.msra.mxu0 0
        %1483 = vmatprep.subr.bf16.mxu0 0
        %1484 = vmatpush2.bf16.xpose.msra.mxu0 0
        %1485 = vmatprep.subr.bf16.mxu0 0
        %1486 = vmatpush2.bf16.xpose.msra.mxu0 0
        %1487 = vmatprep.mubr.bf16.mxu0 0
        %1488 = vmatmul.mubr.bf16.gmra.mxu0 %v1450
        %v1489 = vpop.f32.mrf.mxu0
        %v1490 = vadd.f32 0.0, %v1489
        %v1491 = vpop.f32.mrf.mxu0
        %v1492 = vpop.f32.mrf.mxu0
        %v1493 = vpop.f32.mrf.mxu0
        %1494 = vdwg.mxu0
        %v1495 = vmul.f32 %v1490, 0.35355338
        %v1496 = vsel %vm1014, %v1495, -inf
        %1497 = vmax.xlane.f32.xlu0 %v1496
        %v1498 = vpop.xlane.xlu0 %1497
        %v1499 = vsub.f32 %v1495, %v1498
        %v1500 = vmul.f32 %v1499, 1.442695
        %v1501 = vpow.pop %v1500
        %v1502 = vsel %vm1014, %v1501, 0.0
        %1503 = vadd.xlane.f32.xlu0 %v1502
        %v1504 = vpop.xlane.xlu0 %1503
        %v1505 = vrcp.pop %v1504
        %v1506 = vmul.f32 %v1501, %v1505
        %v1507 = vpack.c.bf16 %v1506, %v1506
        %1508 = vrot.lane.b32.xlu0 %v958, 40
        %v1509 = vpop.permute.xlu0 %1508
        %v1511 = vsel %vm1029, %v1507, 0
        %v1514 = vand.u32 %v1509, %v1036
        %1516 = vmatprep.subr.bf16.mxu0 0
        %1517 = vmatpush1.bf16.msra.mxu0 0
        %1518 = vmatprep.subr.bf16.mxu0 0
        %1519 = vmatpush1.bf16.msra.mxu0 0
        %1520 = vmatprep.subr.bf16.mxu0 0
        %1521 = vmatpush1.bf16.msra.mxu0 0
        %1522 = vmatprep.subr.bf16.mxu0 0
        %1523 = vmatpush1.bf16.msra.mxu0 0
        %1524 = vmatprep.subr.bf16.mxu0 0
        %1525 = vmatpush1.bf16.msra.mxu0 0
        %1526 = vmatprep.subr.bf16.mxu0 0
        %1527 = vmatpush1.bf16.msra.mxu0 0
        %1528 = vmatprep.subr.bf16.mxu0 0
        %1529 = vmatpush1.bf16.msra.mxu0 0
        %1530 = vmatprep.subr.bf16.mxu0 0
        %1531 = vmatpush1.bf16.msra.mxu0 %v1514
        %1532 = vmatprep.subr.bf16.mxu0 0
        %1533 = vmatpush2.bf16.msra.mxu0 0
        %1534 = vmatprep.subr.bf16.mxu0 0
        %1535 = vmatpush2.bf16.msra.mxu0 0
        %1536 = vmatprep.subr.bf16.mxu0 0
        %1537 = vmatpush2.bf16.msra.mxu0 0
        %1538 = vmatprep.subr.bf16.mxu0 0
        %1539 = vmatpush2.bf16.msra.mxu0 0
        %1540 = vmatprep.subr.bf16.mxu0 0
        %1541 = vmatpush2.bf16.msra.mxu0 0
        %1542 = vmatprep.subr.bf16.mxu0 0
        %1543 = vmatpush2.bf16.msra.mxu0 0
        %1544 = vmatprep.subr.bf16.mxu0 0
        %1545 = vmatpush2.bf16.msra.mxu0 0
        %1546 = vmatprep.subr.bf16.mxu0 0
        %1547 = vmatpush2.bf16.msra.mxu0 0
        %1548 = vmatprep.mubr.bf16.mxu0 0
        %1549 = vmatmul.mubr.bf16.gmra.mxu0 %v1511
        %v1550 = vpop.f32.mrf.mxu0
        %v1551 = vadd.f32 0.0, %v1550
        %v1552 = vpop.f32.mrf.mxu0
        %v1553 = vpop.f32.mrf.mxu0
        %v1554 = vpop.f32.mrf.mxu0
        %1555 = vdwg.mxu0
        %v1556 = vpack.c.bf16 %v1551, %v1551
        %v1558 = vsel %vm966, %v1556, 0
        %v1561 = vsel %vm1196, %v962, 0
        %1563 = vmatprep.subr.bf16.mxu0 0
        %1564 = vmatpush1.bf16.msra.mxu0 0
        %1565 = vmatprep.subr.bf16.mxu0 0
        %1566 = vmatpush1.bf16.msra.mxu0 0
        %1567 = vmatprep.subr.bf16.mxu0 0
        %1568 = vmatpush1.bf16.msra.mxu0 0
        %1569 = vmatprep.subr.bf16.mxu0 0
        %1570 = vmatpush1.bf16.msra.mxu0 0
        %1571 = vmatprep.subr.bf16.mxu0 0
        %1572 = vmatpush1.bf16.msra.mxu0 0
        %1573 = vmatprep.subr.bf16.mxu0 0
        %1574 = vmatpush1.bf16.msra.mxu0 0
        %1575 = vmatprep.subr.bf16.mxu0 0
        %1576 = vmatpush1.bf16.msra.mxu0 0
        %1577 = vmatprep.subr.bf16.mxu0 0
        %1578 = vmatpush1.bf16.msra.mxu0 %v1561
        %1579 = vmatprep.subr.bf16.mxu0 0
        %1580 = vmatpush2.bf16.msra.mxu0 0
        %1581 = vmatprep.subr.bf16.mxu0 0
        %1582 = vmatpush2.bf16.msra.mxu0 0
        %1583 = vmatprep.subr.bf16.mxu0 0
        %1584 = vmatpush2.bf16.msra.mxu0 0
        %1585 = vmatprep.subr.bf16.mxu0 0
        %1586 = vmatpush2.bf16.msra.mxu0 0
        %1587 = vmatprep.subr.bf16.mxu0 0
        %1588 = vmatpush2.bf16.msra.mxu0 0
        %1589 = vmatprep.subr.bf16.mxu0 0
        %1590 = vmatpush2.bf16.msra.mxu0 0
        %1591 = vmatprep.subr.bf16.mxu0 0
        %1592 = vmatpush2.bf16.msra.mxu0 0
        %1593 = vmatprep.subr.bf16.mxu0 0
        %1594 = vmatpush2.bf16.msra.mxu0 0
        %1595 = vmatprep.mubr.bf16.mxu0 0
        %1596 = vmatmul.mubr.bf16.gmra.mxu0 %v1558
        %v1597 = vpop.f32.mrf.mxu0
        %v1598 = vadd.f32 0.0, %v1597
        %v1599 = vpop.f32.mrf.mxu0
        %v1600 = vpop.f32.mrf.mxu0
        %v1601 = vpop.f32.mrf.mxu0
        %1602 = vdwg.mxu0
        %v1603 = vadd.f32 %v1444, %v1598
        %v1604 = vadd.f32 %v860, %v1603
        %v1605 = vld [vmem:[%s10] sm:$0x1]
        %v1607 = vlaneseq
        %v1608 = vshrl.u32 %v1607, 7
        %v1609 = vsub.s32 0, %v1608
        %v1610 = vrot.slane %v1605, %v1609
        %v1612 = vadd.f32 %v1604, %v1610
        %v1613 = vld [vmem:[%s11] sm:$0x1]
        %v1614 = vld [vmem:[%s12] sm:$0x1]
        %v1615 = vsel %vm832, %v1612, 0.0
        %1616 = vadd.xlane.f32.xlu0 %v1615
        %v1617 = vpop.xlane.xlu0 %1616
        %v1618 = vmul.f32 %v1617, %v836
        %v1619 = vsub.f32 %v1612, %v1618
        %v1620 = vmul.f32 %v1619, %v1619
        %v1621 = vsel %vm832, %v1620, 0.0
        %1622 = vadd.xlane.f32.xlu0 %v1621
        %v1623 = vpop.xlane.xlu0 %1622
        %v1624 = vmul.f32 %v1623, %v836
        %v1625 = vadd.f32 %v1624, 1e-05
        %v1626 = vrsqrt.pop %v1625
        %v1627 = vmul.f32 %v1619, %v1626
        %v1629 = vlaneseq
        %v1630 = vshrl.u32 %v1629, 7
        %v1631 = vsub.s32 0, %v1630
        %v1632 = vrot.slane %v1613, %v1631
        %v1634 = vmul.f32 %v1627, %v1632
        %v1636 = vlaneseq
        %v1637 = vshrl.u32 %v1636, 7
        %v1638 = vsub.s32 0, %v1637
        %v1639 = vrot.slane %v1614, %v1638
        %v1641 = vadd.f32 %v1634, %v1639
        %v1642 = vpack.c.bf16 %v1641, %v1641
        %v1643 = vld [vmem:[%s13] sm:$0xf]
        %v1644 = vld [vmem:[%s13 + $0x4] sm:$0xf]
        %v1645 = vld [vmem:[%s13 + $0x8] sm:$0xf]
        %v1646 = vld [vmem:[%s13 + $0xc] sm:$0xf]
        %v1647 = vld [vmem:[%s14] sm:$0x1]
        %v1649 = vlaneseq
        %v1650 = vshrl.u32 %v1649, 7
        %v1651 = vsub.s32 0, %v1650
        %v1652 = vrot.slane %v1647, %v1651
        %v1658 = vunpack.c.l.b16 %v1643
        %v1659 = vunpack.c.l.b16 %v1644
        %v1660 = vunpack.c.l.b16 %v1645
        %v1661 = vunpack.c.l.b16 %v1646
        %v1662 = vpack.c.b16 %v1659, %v1658
        %v1663 = vpack.c.b16 %v1661, %v1660
        %v1667 = vsel %vm914, %v1642, 0
        %1669 = vmatprep.subr.bf16.mxu0 0
        %1670 = vmatpush1.bf16.msra.mxu0 0
        %1671 = vmatprep.subr.bf16.mxu0 0
        %1672 = vmatpush1.bf16.msra.mxu0 0
        %1673 = vmatprep.subr.bf16.mxu0 0
        %1674 = vmatpush1.bf16.msra.mxu0 0
        %1675 = vmatprep.subr.bf16.mxu0 0
        %1676 = vmatpush1.bf16.msra.mxu0 0
        %1677 = vmatprep.subr.bf16.mxu0 0
        %1678 = vmatpush1.bf16.msra.mxu0 0
        %1679 = vmatprep.subr.bf16.mxu0 0
        %1680 = vmatpush1.bf16.msra.mxu0 0
        %1681 = vmatprep.subr.bf16.mxu0 0
        %1682 = vmatpush1.bf16.msra.mxu0 %v1663
        %1683 = vmatprep.subr.bf16.mxu0 0
        %1684 = vmatpush1.bf16.msra.mxu0 %v1662
        %1685 = vmatprep.subr.bf16.mxu0 0
        %1686 = vmatpush2.bf16.msra.mxu0 0
        %1687 = vmatprep.subr.bf16.mxu0 0
        %1688 = vmatpush2.bf16.msra.mxu0 0
        %1689 = vmatprep.subr.bf16.mxu0 0
        %1690 = vmatpush2.bf16.msra.mxu0 0
        %1691 = vmatprep.subr.bf16.mxu0 0
        %1692 = vmatpush2.bf16.msra.mxu0 0
        %1693 = vmatprep.subr.bf16.mxu0 0
        %1694 = vmatpush2.bf16.msra.mxu0 0
        %1695 = vmatprep.subr.bf16.mxu0 0
        %1696 = vmatpush2.bf16.msra.mxu0 0
        %1697 = vmatprep.subr.bf16.mxu0 0
        %1698 = vmatpush2.bf16.msra.mxu0 0
        %1699 = vmatprep.subr.bf16.mxu0 0
        %1700 = vmatpush2.bf16.msra.mxu0 0
        %1701 = vmatprep.mubr.bf16.mxu0 0
        %1702 = vmatmul.mubr.bf16.gmra.mxu0 %v1667
        %v1703 = vpop.f32.mrf.mxu0
        %v1704 = vadd.f32 %v1652, %v1703
        %v1705 = vpop.f32.mrf.mxu0
        %v1706 = vpop.f32.mrf.mxu0
        %v1707 = vpop.f32.mrf.mxu0
        %1708 = vdwg.mxu0
        %v1709 = vmul.f32 %v1704, 1.702
        %v1710 = vxor.u32 %v1709, 2147483648
        %v1711 = vmul.f32 %v1710, 1.442695
        %v1712 = vpow.pop %v1711
        %v1713 = vadd.f32 %v1712, 1.0
        %v1714 = vrcp.pop %v1713
        %v1715 = vmul.f32 1.0, %v1714
        %v1716 = vmul.f32 %v1704, %v1715
        %v1717 = vpack.c.bf16 %v1716, %v1716
        %v1718 = vld [vmem:[%s15] sm:$0xf]
        %v1719 = vld [vmem:[%s15 + $0x4] sm:$0xf]
        %v1720 = vld [vmem:[%s15 + $0x8] sm:$0xf]
        %v1721 = vld [vmem:[%s15 + $0xc] sm:$0xf]
        %v1722 = vld [vmem:[%s15 + $0x10] sm:$0xf]
        %v1723 = vld [vmem:[%s15 + $0x14] sm:$0xf]
        %v1724 = vld [vmem:[%s15 + $0x18] sm:$0xf]
        %v1725 = vld [vmem:[%s15 + $0x1c] sm:$0xf]
        %v1726 = vld [vmem:[%s15 + $0x20] sm:$0xf]
        %v1727 = vld [vmem:[%s15 + $0x24] sm:$0xf]
        %v1728 = vld [vmem:[%s15 + $0x28] sm:$0xf]
        %v1729 = vld [vmem:[%s15 + $0x2c] sm:$0xf]
        %v1730 = vld [vmem:[%s15 + $0x30] sm:$0xf]
        %v1731 = vld [vmem:[%s15 + $0x34] sm:$0xf]
        %v1732 = vld [vmem:[%s15 + $0x38] sm:$0xf]
        %v1733 = vld [vmem:[%s15 + $0x3c] sm:$0xf]
        %v1734 = vld [vmem:[%s16] sm:$0x1]
        %v1736 = vlaneseq
        %v1737 = vshrl.u32 %v1736, 7
        %v1738 = vsub.s32 0, %v1737
        %v1739 = vrot.slane %v1734, %v1738
        %v1757 = vunpack.c.l.b16 %v1718
        %v1758 = vunpack.c.l.b16 %v1719
        %v1759 = vunpack.c.l.b16 %v1720
        %v1760 = vunpack.c.l.b16 %v1721
        %v1761 = vunpack.c.l.b16 %v1722
        %v1762 = vunpack.c.l.b16 %v1723
        %v1763 = vunpack.c.l.b16 %v1724
        %v1764 = vunpack.c.l.b16 %v1725
        %v1765 = vunpack.c.l.b16 %v1726
        %v1766 = vunpack.c.l.b16 %v1727
        %v1767 = vunpack.c.l.b16 %v1728
        %v1768 = vunpack.c.l.b16 %v1729
        %v1769 = vunpack.c.l.b16 %v1730
        %v1770 = vunpack.c.l.b16 %v1731
        %v1771 = vunpack.c.l.b16 %v1732
        %v1772 = vunpack.c.l.b16 %v1733
        %v1773 = vpack.c.b16 %v1758, %v1757
        %v1774 = vpack.c.b16 %v1760, %v1759
        %v1775 = vpack.c.b16 %v1762, %v1761
        %v1776 = vpack.c.b16 %v1764, %v1763
        %v1777 = vpack.c.b16 %v1766, %v1765
        %v1778 = vpack.c.b16 %v1768, %v1767
        %v1779 = vpack.c.b16 %v1770, %v1769
        %v1780 = vpack.c.b16 %v1772, %v1771
        %1789 = vmatprep.subr.bf16.mxu0 0
        %1790 = vmatpush1.bf16.msra.mxu0 %v1780
        %1791 = vmatprep.subr.bf16.mxu0 0
        %1792 = vmatpush1.bf16.msra.mxu0 %v1779
        %1793 = vmatprep.subr.bf16.mxu0 0
        %1794 = vmatpush1.bf16.msra.mxu0 %v1778
        %1795 = vmatprep.subr.bf16.mxu0 0
        %1796 = vmatpush1.bf16.msra.mxu0 %v1777
        %1797 = vmatprep.subr.bf16.mxu0 0
        %1798 = vmatpush1.bf16.msra.mxu0 %v1776
        %1799 = vmatprep.subr.bf16.mxu0 0
        %1800 = vmatpush1.bf16.msra.mxu0 %v1775
        %1801 = vmatprep.subr.bf16.mxu0 0
        %1802 = vmatpush1.bf16.msra.mxu0 %v1774
        %1803 = vmatprep.subr.bf16.mxu0 0
        %1804 = vmatpush1.bf16.msra.mxu0 %v1773
        %1805 = vmatprep.subr.bf16.mxu0 0
        %1806 = vmatpush2.bf16.msra.mxu0 0
        %1807 = vmatprep.subr.bf16.mxu0 0
        %1808 = vmatpush2.bf16.msra.mxu0 0
        %1809 = vmatprep.subr.bf16.mxu0 0
        %1810 = vmatpush2.bf16.msra.mxu0 0
        %1811 = vmatprep.subr.bf16.mxu0 0
        %1812 = vmatpush2.bf16.msra.mxu0 0
        %1813 = vmatprep.subr.bf16.mxu0 0
        %1814 = vmatpush2.bf16.msra.mxu0 0
        %1815 = vmatprep.subr.bf16.mxu0 0
        %1816 = vmatpush2.bf16.msra.mxu0 0
        %1817 = vmatprep.subr.bf16.mxu0 0
        %1818 = vmatpush2.bf16.msra.mxu0 0
        %1819 = vmatprep.subr.bf16.mxu0 0
        %1820 = vmatpush2.bf16.msra.mxu0 0
        %1821 = vmatprep.mubr.bf16.mxu0 0
        %1822 = vmatmul.mubr.bf16.gmra.mxu0 %v1717
        %v1823 = vpop.f32.mrf.mxu0
        %v1824 = vadd.f32 %v1739, %v1823
        %v1825 = vpop.f32.mrf.mxu0
        %v1826 = vpop.f32.mrf.mxu0
        %v1827 = vpop.f32.mrf.mxu0
        %1828 = vdwg.mxu0
        %v1829 = vadd.f32 %v1612, %v1824
        %s1830 = scalar_lea.vmem %s5, 1
        %v1831 = vld [vmem:[%s1830] sm:$0x1]
        %s1832 = scalar_lea.vmem %s6, 1
        %v1833 = vld [vmem:[%s1832] sm:$0x1]
        %v1834 = vsel %vm832, %v1829, 0.0
        %1835 = vadd.xlane.f32.xlu0 %v1834
        %v1836 = vpop.xlane.xlu0 %1835
        %v1837 = vmul.f32 %v1836, %v836
        %v1838 = vsub.f32 %v1829, %v1837
        %v1839 = vmul.f32 %v1838, %v1838
        %v1840 = vsel %vm832, %v1839, 0.0
        %1841 = vadd.xlane.f32.xlu0 %v1840
        %v1842 = vpop.xlane.xlu0 %1841
        %v1843 = vmul.f32 %v1842, %v836
        %v1844 = vadd.f32 %v1843, 1e-05
        %v1845 = vrsqrt.pop %v1844
        %v1846 = vmul.f32 %v1838, %v1845
        %v1848 = vlaneseq
        %v1849 = vshrl.u32 %v1848, 7
        %v1850 = vsub.s32 0, %v1849
        %v1851 = vrot.slane %v1831, %v1850
        %v1853 = vmul.f32 %v1846, %v1851
        %v1855 = vlaneseq
        %v1856 = vshrl.u32 %v1855, 7
        %v1857 = vsub.s32 0, %v1856
        %v1858 = vrot.slane %v1833, %v1857
        %v1860 = vadd.f32 %v1853, %v1858
        %v1861 = vpack.c.bf16 %v1860, %v1860
        %s1862 = scalar_lea.vmem %s7, 16
        %v1863 = vld [vmem:[%s1862] sm:$0xf]
        %v1864 = vld [vmem:[%s1862 + $0x4] sm:$0xf]
        %v1865 = vld [vmem:[%s1862 + $0x8] sm:$0xf]
        %v1866 = vld [vmem:[%s1862 + $0xc] sm:$0xf]
        %s1867 = scalar_lea.vmem %s8, 1
        %v1868 = vld [vmem:[%s1867] sm:$0x1]
        %v1870 = vlaneseq
        %v1871 = vshrl.u32 %v1870, 7
        %v1872 = vsub.s32 0, %v1871
        %v1873 = vrot.slane %v1868, %v1872
        %v1879 = vunpack.c.l.b16 %v1863
        %v1880 = vunpack.c.l.b16 %v1864
        %v1881 = vunpack.c.l.b16 %v1865
        %v1882 = vunpack.c.l.b16 %v1866
        %v1883 = vpack.c.b16 %v1880, %v1879
        %v1884 = vpack.c.b16 %v1882, %v1881
        %v1888 = vsel %vm914, %v1861, 0
        %1890 = vmatprep.subr.bf16.mxu0 0
        %1891 = vmatpush1.bf16.msra.mxu0 0
        %1892 = vmatprep.subr.bf16.mxu0 0
        %1893 = vmatpush1.bf16.msra.mxu0 0
        %1894 = vmatprep.subr.bf16.mxu0 0
        %1895 = vmatpush1.bf16.msra.mxu0 0
        %1896 = vmatprep.subr.bf16.mxu0 0
        %1897 = vmatpush1.bf16.msra.mxu0 0
        %1898 = vmatprep.subr.bf16.mxu0 0
        %1899 = vmatpush1.bf16.msra.mxu0 0
        %1900 = vmatprep.subr.bf16.mxu0 0
        %1901 = vmatpush1.bf16.msra.mxu0 0
        %1902 = vmatprep.subr.bf16.mxu0 0
        %1903 = vmatpush1.bf16.msra.mxu0 %v1884
        %1904 = vmatprep.subr.bf16.mxu0 0
        %1905 = vmatpush1.bf16.msra.mxu0 %v1883
        %1906 = vmatprep.subr.bf16.mxu0 0
        %1907 = vmatpush2.bf16.msra.mxu0 0
        %1908 = vmatprep.subr.bf16.mxu0 0
        %1909 = vmatpush2.bf16.msra.mxu0 0
        %1910 = vmatprep.subr.bf16.mxu0 0
        %1911 = vmatpush2.bf16.msra.mxu0 0
        %1912 = vmatprep.subr.bf16.mxu0 0
        %1913 = vmatpush2.bf16.msra.mxu0 0
        %1914 = vmatprep.subr.bf16.mxu0 0
        %1915 = vmatpush2.bf16.msra.mxu0 0
        %1916 = vmatprep.subr.bf16.mxu0 0
        %1917 = vmatpush2.bf16.msra.mxu0 0
        %1918 = vmatprep.subr.bf16.mxu0 0
        %1919 = vmatpush2.bf16.msra.mxu0 0
        %1920 = vmatprep.subr.bf16.mxu0 0
        %1921 = vmatpush2.bf16.msra.mxu0 0
        %1922 = vmatprep.mubr.bf16.mxu0 0
        %1923 = vmatmul.mubr.bf16.gmra.mxu0 %v1888
        %v1924 = vpop.f32.mrf.mxu0
        %v1925 = vadd.f32 %v1873, %v1924
        %v1926 = vpop.f32.mrf.mxu0
        %v1927 = vpop.f32.mrf.mxu0
        %v1928 = vpop.f32.mrf.mxu0
        %1929 = vdwg.mxu0
        %v1930 = vpack.c.bf16 %v1925, %v1925
        %s1931 = scalar_lea.vmem %s9, 16
        %v1932 = vld [vmem:[%s1931] sm:$0xf]
        %v1933 = vld [vmem:[%s1931 + $0x4] sm:$0xf]
        %v1934 = vld [vmem:[%s1931 + $0x8] sm:$0xf]
        %v1935 = vld [vmem:[%s1931 + $0xc] sm:$0xf]
        %1937 = vrot.lane.b32.xlu0 %v1930, 96
        %v1938 = vpop.permute.xlu0 %1937
        %v1940 = vsel %vm966, %v1930, 0
        %v1943 = vsel %vm966, %v1938, 0
        %1945 = vmatprep.subr.bf16.mxu0 0
        %1946 = vmatpush1.bf16.xpose.msra.mxu0 0
        %1947 = vmatprep.subr.bf16.mxu0 0
        %1948 = vmatpush1.bf16.xpose.msra.mxu0 0
        %1949 = vmatprep.subr.bf16.mxu0 0
        %1950 = vmatpush1.bf16.xpose.msra.mxu0 0
        %1951 = vmatprep.subr.bf16.mxu0 0
        %1952 = vmatpush1.bf16.xpose.msra.mxu0 0
        %1953 = vmatprep.subr.bf16.mxu0 0
        %1954 = vmatpush1.bf16.xpose.msra.mxu0 0
        %1955 = vmatprep.subr.bf16.mxu0 0
        %1956 = vmatpush1.bf16.xpose.msra.mxu0 0
        %1957 = vmatprep.subr.bf16.mxu0 0
        %1958 = vmatpush1.bf16.xpose.msra.mxu0 0
        %1959 = vmatprep.subr.bf16.mxu0 0
        %1960 = vmatpush1.bf16.xpose.msra.mxu0 %v1943
        %1961 = vmatprep.subr.bf16.mxu0 0
        %1962 = vmatpush2.bf16.xpose.msra.mxu0 0
        %1963 = vmatprep.subr.bf16.mxu0 0
        %1964 = vmatpush2.bf16.xpose.msra.mxu0 0
        %1965 = vmatprep.subr.bf16.mxu0 0
        %1966 = vmatpush2.bf16.xpose.msra.mxu0 0
        %1967 = vmatprep.subr.bf16.mxu0 0
        %1968 = vmatpush2.bf16.xpose.msra.mxu0 0
        %1969 = vmatprep.subr.bf16.mxu0 0
        %1970 = vmatpush2.bf16.xpose.msra.mxu0 0
        %1971 = vmatprep.subr.bf16.mxu0 0
        %1972 = vmatpush2.bf16.xpose.msra.mxu0 0
        %1973 = vmatprep.subr.bf16.mxu0 0
        %1974 = vmatpush2.bf16.xpose.msra.mxu0 0
        %1975 = vmatprep.subr.bf16.mxu0 0
        %1976 = vmatpush2.bf16.xpose.msra.mxu0 0
        %1977 = vmatprep.mubr.bf16.mxu0 0
        %1978 = vmatmul.mubr.bf16.gmra.mxu0 %v1940
        %v1979 = vpop.f32.mrf.mxu0
        %v1980 = vadd.f32 0.0, %v1979
        %v1981 = vpop.f32.mrf.mxu0
        %v1982 = vpop.f32.mrf.mxu0
        %v1983 = vpop.f32.mrf.mxu0
        %1984 = vdwg.mxu0
        %v1985 = vmul.f32 %v1980, 0.35355338
        %v1986 = vsel %vm1014, %v1985, -inf
        %1987 = vmax.xlane.f32.xlu0 %v1986
        %v1988 = vpop.xlane.xlu0 %1987
        %v1989 = vsub.f32 %v1985, %v1988
        %v1990 = vmul.f32 %v1989, 1.442695
        %v1991 = vpow.pop %v1990
        %v1992 = vsel %vm1014, %v1991, 0.0
        %1993 = vadd.xlane.f32.xlu0 %v1992
        %v1994 = vpop.xlane.xlu0 %1993
        %v1995 = vrcp.pop %v1994
        %v1996 = vmul.f32 %v1991, %v1995
        %v1997 = vpack.c.bf16 %v1996, %v1996
        %1998 = vrot.lane.b32.xlu0 %v1930, 64
        %v1999 = vpop.permute.xlu0 %1998
        %v2001 = vsel %vm1029, %v1997, 0
        %v2004 = vand.u32 %v1999, %v1036
        %2006 = vmatprep.subr.bf16.mxu0 0
        %2007 = vmatpush1.bf16.msra.mxu0 0
        %2008 = vmatprep.subr.bf16.mxu0 0
        %2009 = vmatpush1.bf16.msra.mxu0 0
        %2010 = vmatprep.subr.bf16.mxu0 0
        %2011 = vmatpush1.bf16.msra.mxu0 0
        %2012 = vmatprep.subr.bf16.mxu0 0
        %2013 = vmatpush1.bf16.msra.mxu0 0
        %2014 = vmatprep.subr.bf16.mxu0 0
        %2015 = vmatpush1.bf16.msra.mxu0 0
        %2016 = vmatprep.subr.bf16.mxu0 0
        %2017 = vmatpush1.bf16.msra.mxu0 0
        %2018 = vmatprep.subr.bf16.mxu0 0
        %2019 = vmatpush1.bf16.msra.mxu0 0
        %2020 = vmatprep.subr.bf16.mxu0 0
        %2021 = vmatpush1.bf16.msra.mxu0 %v2004
        %2022 = vmatprep.subr.bf16.mxu0 0
        %2023 = vmatpush2.bf16.msra.mxu0 0
        %2024 = vmatprep.subr.bf16.mxu0 0
        %2025 = vmatpush2.bf16.msra.mxu0 0
        %2026 = vmatprep.subr.bf16.mxu0 0
        %2027 = vmatpush2.bf16.msra.mxu0 0
        %2028 = vmatprep.subr.bf16.mxu0 0
        %2029 = vmatpush2.bf16.msra.mxu0 0
        %2030 = vmatprep.subr.bf16.mxu0 0
        %2031 = vmatpush2.bf16.msra.mxu0 0
        %2032 = vmatprep.subr.bf16.mxu0 0
        %2033 = vmatpush2.bf16.msra.mxu0 0
        %2034 = vmatprep.subr.bf16.mxu0 0
        %2035 = vmatpush2.bf16.msra.mxu0 0
        %2036 = vmatprep.subr.bf16.mxu0 0
        %2037 = vmatpush2.bf16.msra.mxu0 0
        %2038 = vmatprep.mubr.bf16.mxu0 0
        %2039 = vmatmul.mubr.bf16.gmra.mxu0 %v2001
        %v2040 = vpop.f32.mrf.mxu0
        %v2041 = vadd.f32 0.0, %v2040
        %v2042 = vpop.f32.mrf.mxu0
        %v2043 = vpop.f32.mrf.mxu0
        %v2044 = vpop.f32.mrf.mxu0
        %2045 = vdwg.mxu0
        %v2046 = vpack.c.bf16 %v2041, %v2041
        %2047 = vrot.lane.b32.xlu0 %v1930, 120
        %v2048 = vpop.permute.xlu0 %2047
        %2049 = vrot.lane.b32.xlu0 %v1930, 88
        %v2050 = vpop.permute.xlu0 %2049
        %v2052 = vsel %vm966, %v2048, 0
        %v2055 = vsel %vm966, %v2050, 0
        %2057 = vmatprep.subr.bf16.mxu0 0
        %2058 = vmatpush1.bf16.xpose.msra.mxu0 0
        %2059 = vmatprep.subr.bf16.mxu0 0
        %2060 = vmatpush1.bf16.xpose.msra.mxu0 0
        %2061 = vmatprep.subr.bf16.mxu0 0
        %2062 = vmatpush1.bf16.xpose.msra.mxu0 0
        %2063 = vmatprep.subr.bf16.mxu0 0
        %2064 = vmatpush1.bf16.xpose.msra.mxu0 0
        %2065 = vmatprep.subr.bf16.mxu0 0
        %2066 = vmatpush1.bf16.xpose.msra.mxu0 0
        %2067 = vmatprep.subr.bf16.mxu0 0
        %2068 = vmatpush1.bf16.xpose.msra.mxu0 0
        %2069 = vmatprep.subr.bf16.mxu0 0
        %2070 = vmatpush1.bf16.xpose.msra.mxu0 0
        %2071 = vmatprep.subr.bf16.mxu0 0
        %2072 = vmatpush1.bf16.xpose.msra.mxu0 %v2055
        %2073 = vmatprep.subr.bf16.mxu0 0
        %2074 = vmatpush2.bf16.xpose.msra.mxu0 0
        %2075 = vmatprep.subr.bf16.mxu0 0
        %2076 = vmatpush2.bf16.xpose.msra.mxu0 0
        %2077 = vmatprep.subr.bf16.mxu0 0
        %2078 = vmatpush2.bf16.xpose.msra.mxu0 0
        %2079 = vmatprep.subr.bf16.mxu0 0
        %2080 = vmatpush2.bf16.xpose.msra.mxu0 0
        %2081 = vmatprep.subr.bf16.mxu0 0
        %2082 = vmatpush2.bf16.xpose.msra.mxu0 0
        %2083 = vmatprep.subr.bf16.mxu0 0
        %2084 = vmatpush2.bf16.xpose.msra.mxu0 0
        %2085 = vmatprep.subr.bf16.mxu0 0
        %2086 = vmatpush2.bf16.xpose.msra.mxu0 0
        %2087 = vmatprep.subr.bf16.mxu0 0
        %2088 = vmatpush2.bf16.xpose.msra.mxu0 0
        %2089 = vmatprep.mubr.bf16.mxu0 0
        %2090 = vmatmul.mubr.bf16.gmra.mxu0 %v2052
        %v2091 = vpop.f32.mrf.mxu0
        %v2092 = vadd.f32 0.0, %v2091
        %v2093 = vpop.f32.mrf.mxu0
        %v2094 = vpop.f32.mrf.mxu0
        %v2095 = vpop.f32.mrf.mxu0
        %2096 = vdwg.mxu0
        %v2097 = vmul.f32 %v2092, 0.35355338
        %v2098 = vsel %vm1014, %v2097, -inf
        %2099 = vmax.xlane.f32.xlu0 %v2098
        %v2100 = vpop.xlane.xlu0 %2099
        %v2101 = vsub.f32 %v2097, %v2100
        %v2102 = vmul.f32 %v2101, 1.442695
        %v2103 = vpow.pop %v2102
        %v2104 = vsel %vm1014, %v2103, 0.0
        %2105 = vadd.xlane.f32.xlu0 %v2104
        %v2106 = vpop.xlane.xlu0 %2105
        %v2107 = vrcp.pop %v2106
        %v2108 = vmul.f32 %v2103, %v2107
        %v2109 = vpack.c.bf16 %v2108, %v2108
        %2110 = vrot.lane.b32.xlu0 %v1930, 56
        %v2111 = vpop.permute.xlu0 %2110
        %v2113 = vsel %vm1029, %v2109, 0
        %v2116 = vand.u32 %v2111, %v1036
        %2118 = vmatprep.subr.bf16.mxu0 0
        %2119 = vmatpush1.bf16.msra.mxu0 0
        %2120 = vmatprep.subr.bf16.mxu0 0
        %2121 = vmatpush1.bf16.msra.mxu0 0
        %2122 = vmatprep.subr.bf16.mxu0 0
        %2123 = vmatpush1.bf16.msra.mxu0 0
        %2124 = vmatprep.subr.bf16.mxu0 0
        %2125 = vmatpush1.bf16.msra.mxu0 0
        %2126 = vmatprep.subr.bf16.mxu0 0
        %2127 = vmatpush1.bf16.msra.mxu0 0
        %2128 = vmatprep.subr.bf16.mxu0 0
        %2129 = vmatpush1.bf16.msra.mxu0 0
        %2130 = vmatprep.subr.bf16.mxu0 0
        %2131 = vmatpush1.bf16.msra.mxu0 0
        %2132 = vmatprep.subr.bf16.mxu0 0
        %2133 = vmatpush1.bf16.msra.mxu0 %v2116
        %2134 = vmatprep.subr.bf16.mxu0 0
        %2135 = vmatpush2.bf16.msra.mxu0 0
        %2136 = vmatprep.subr.bf16.mxu0 0
        %2137 = vmatpush2.bf16.msra.mxu0 0
        %2138 = vmatprep.subr.bf16.mxu0 0
        %2139 = vmatpush2.bf16.msra.mxu0 0
        %2140 = vmatprep.subr.bf16.mxu0 0
        %2141 = vmatpush2.bf16.msra.mxu0 0
        %2142 = vmatprep.subr.bf16.mxu0 0
        %2143 = vmatpush2.bf16.msra.mxu0 0
        %2144 = vmatprep.subr.bf16.mxu0 0
        %2145 = vmatpush2.bf16.msra.mxu0 0
        %2146 = vmatprep.subr.bf16.mxu0 0
        %2147 = vmatpush2.bf16.msra.mxu0 0
        %2148 = vmatprep.subr.bf16.mxu0 0
        %2149 = vmatpush2.bf16.msra.mxu0 0
        %2150 = vmatprep.mubr.bf16.mxu0 0
        %2151 = vmatmul.mubr.bf16.gmra.mxu0 %v2113
        %v2152 = vpop.f32.mrf.mxu0
        %v2153 = vadd.f32 0.0, %v2152
        %v2154 = vpop.f32.mrf.mxu0
        %v2155 = vpop.f32.mrf.mxu0
        %v2156 = vpop.f32.mrf.mxu0
        %2157 = vdwg.mxu0
        %v2158 = vpack.c.bf16 %v2153, %v2153
        %v2160 = vsel %vm966, %v2158, 0
        %v2163 = vsel %vm1196, %v1933, 0
        %2165 = vmatprep.subr.bf16.mxu0 0
        %2166 = vmatpush1.bf16.msra.mxu0 0
        %2167 = vmatprep.subr.bf16.mxu0 0
        %2168 = vmatpush1.bf16.msra.mxu0 0
        %2169 = vmatprep.subr.bf16.mxu0 0
        %2170 = vmatpush1.bf16.msra.mxu0 0
        %2171 = vmatprep.subr.bf16.mxu0 0
        %2172 = vmatpush1.bf16.msra.mxu0 0
        %2173 = vmatprep.subr.bf16.mxu0 0
        %2174 = vmatpush1.bf16.msra.mxu0 0
        %2175 = vmatprep.subr.bf16.mxu0 0
        %2176 = vmatpush1.bf16.msra.mxu0 0
        %2177 = vmatprep.subr.bf16.mxu0 0
        %2178 = vmatpush1.bf16.msra.mxu0 0
        %2179 = vmatprep.subr.bf16.mxu0 0
        %2180 = vmatpush1.bf16.msra.mxu0 %v2163
        %2181 = vmatprep.subr.bf16.mxu0 0
        %2182 = vmatpush2.bf16.msra.mxu0 0
        %2183 = vmatprep.subr.bf16.mxu0 0
        %2184 = vmatpush2.bf16.msra.mxu0 0
        %2185 = vmatprep.subr.bf16.mxu0 0
        %2186 = vmatpush2.bf16.msra.mxu0 0
        %2187 = vmatprep.subr.bf16.mxu0 0
        %2188 = vmatpush2.bf16.msra.mxu0 0
        %2189 = vmatprep.subr.bf16.mxu0 0
        %2190 = vmatpush2.bf16.msra.mxu0 0
        %2191 = vmatprep.subr.bf16.mxu0 0
        %2192 = vmatpush2.bf16.msra.mxu0 0
        %2193 = vmatprep.subr.bf16.mxu0 0
        %2194 = vmatpush2.bf16.msra.mxu0 0
        %2195 = vmatprep.subr.bf16.mxu0 0
        %2196 = vmatpush2.bf16.msra.mxu0 0
        %2197 = vmatprep.mubr.bf16.mxu0 0
        %2198 = vmatmul.mubr.bf16.gmra.mxu0 %v2160
        %v2199 = vpop.f32.mrf.mxu0
        %v2200 = vadd.f32 0.0, %v2199
        %v2201 = vpop.f32.mrf.mxu0
        %v2202 = vpop.f32.mrf.mxu0
        %v2203 = vpop.f32.mrf.mxu0
        %2204 = vdwg.mxu0
        %v2206 = vsel %vm966, %v2046, 0
        %v2209 = vsel %vm1196, %v1932, 0
        %2211 = vmatprep.subr.bf16.mxu0 0
        %2212 = vmatpush1.bf16.msra.mxu0 0
        %2213 = vmatprep.subr.bf16.mxu0 0
        %2214 = vmatpush1.bf16.msra.mxu0 0
        %2215 = vmatprep.subr.bf16.mxu0 0
        %2216 = vmatpush1.bf16.msra.mxu0 0
        %2217 = vmatprep.subr.bf16.mxu0 0
        %2218 = vmatpush1.bf16.msra.mxu0 0
        %2219 = vmatprep.subr.bf16.mxu0 0
        %2220 = vmatpush1.bf16.msra.mxu0 0
        %2221 = vmatprep.subr.bf16.mxu0 0
        %2222 = vmatpush1.bf16.msra.mxu0 0
        %2223 = vmatprep.subr.bf16.mxu0 0
        %2224 = vmatpush1.bf16.msra.mxu0 0
        %2225 = vmatprep.subr.bf16.mxu0 0
        %2226 = vmatpush1.bf16.msra.mxu0 %v2209
        %2227 = vmatprep.subr.bf16.mxu0 0
        %2228 = vmatpush2.bf16.msra.mxu0 0
        %2229 = vmatprep.subr.bf16.mxu0 0
        %2230 = vmatpush2.bf16.msra.mxu0 0
        %2231 = vmatprep.subr.bf16.mxu0 0
        %2232 = vmatpush2.bf16.msra.mxu0 0
        %2233 = vmatprep.subr.bf16.mxu0 0
        %2234 = vmatpush2.bf16.msra.mxu0 0
        %2235 = vmatprep.subr.bf16.mxu0 0
        %2236 = vmatpush2.bf16.msra.mxu0 0
        %2237 = vmatprep.subr.bf16.mxu0 0
        %2238 = vmatpush2.bf16.msra.mxu0 0
        %2239 = vmatprep.subr.bf16.mxu0 0
        %2240 = vmatpush2.bf16.msra.mxu0 0
        %2241 = vmatprep.subr.bf16.mxu0 0
        %2242 = vmatpush2.bf16.msra.mxu0 0
        %2243 = vmatprep.mubr.bf16.mxu0 0
        %2244 = vmatmul.mubr.bf16.gmra.mxu0 %v2206
        %v2245 = vpop.f32.mrf.mxu0
        %v2246 = vadd.f32 %v2200, %v2245
        %v2247 = vpop.f32.mrf.mxu0
        %v2248 = vpop.f32.mrf.mxu0
        %v2249 = vpop.f32.mrf.mxu0
        %2250 = vdwg.mxu0
        %2251 = vrot.lane.b32.xlu0 %v1930, 112
        %v2252 = vpop.permute.xlu0 %2251
        %2253 = vrot.lane.b32.xlu0 %v1930, 80
        %v2254 = vpop.permute.xlu0 %2253
        %v2256 = vsel %vm966, %v2252, 0
        %v2259 = vsel %vm966, %v2254, 0
        %2261 = vmatprep.subr.bf16.mxu0 0
        %2262 = vmatpush1.bf16.xpose.msra.mxu0 0
        %2263 = vmatprep.subr.bf16.mxu0 0
        %2264 = vmatpush1.bf16.xpose.msra.mxu0 0
        %2265 = vmatprep.subr.bf16.mxu0 0
        %2266 = vmatpush1.bf16.xpose.msra.mxu0 0
        %2267 = vmatprep.subr.bf16.mxu0 0
        %2268 = vmatpush1.bf16.xpose.msra.mxu0 0
        %2269 = vmatprep.subr.bf16.mxu0 0
        %2270 = vmatpush1.bf16.xpose.msra.mxu0 0
        %2271 = vmatprep.subr.bf16.mxu0 0
        %2272 = vmatpush1.bf16.xpose.msra.mxu0 0
        %2273 = vmatprep.subr.bf16.mxu0 0
        %2274 = vmatpush1.bf16.xpose.msra.mxu0 0
        %2275 = vmatprep.subr.bf16.mxu0 0
        %2276 = vmatpush1.bf16.xpose.msra.mxu0 %v2259
        %2277 = vmatprep.subr.bf16.mxu0 0
        %2278 = vmatpush2.bf16.xpose.msra.mxu0 0
        %2279 = vmatprep.subr.bf16.mxu0 0
        %2280 = vmatpush2.bf16.xpose.msra.mxu0 0
        %2281 = vmatprep.subr.bf16.mxu0 0
        %2282 = vmatpush2.bf16.xpose.msra.mxu0 0
        %2283 = vmatprep.subr.bf16.mxu0 0
        %2284 = vmatpush2.bf16.xpose.msra.mxu0 0
        %2285 = vmatprep.subr.bf16.mxu0 0
        %2286 = vmatpush2.bf16.xpose.msra.mxu0 0
        %2287 = vmatprep.subr.bf16.mxu0 0
        %2288 = vmatpush2.bf16.xpose.msra.mxu0 0
        %2289 = vmatprep.subr.bf16.mxu0 0
        %2290 = vmatpush2.bf16.xpose.msra.mxu0 0
        %2291 = vmatprep.subr.bf16.mxu0 0
        %2292 = vmatpush2.bf16.xpose.msra.mxu0 0
        %2293 = vmatprep.mubr.bf16.mxu0 0
        %2294 = vmatmul.mubr.bf16.gmra.mxu0 %v2256
        %v2295 = vpop.f32.mrf.mxu0
        %v2296 = vadd.f32 0.0, %v2295
        %v2297 = vpop.f32.mrf.mxu0
        %v2298 = vpop.f32.mrf.mxu0
        %v2299 = vpop.f32.mrf.mxu0
        %2300 = vdwg.mxu0
        %v2301 = vmul.f32 %v2296, 0.35355338
        %v2302 = vsel %vm1014, %v2301, -inf
        %2303 = vmax.xlane.f32.xlu0 %v2302
        %v2304 = vpop.xlane.xlu0 %2303
        %v2305 = vsub.f32 %v2301, %v2304
        %v2306 = vmul.f32 %v2305, 1.442695
        %v2307 = vpow.pop %v2306
        %v2308 = vsel %vm1014, %v2307, 0.0
        %2309 = vadd.xlane.f32.xlu0 %v2308
        %v2310 = vpop.xlane.xlu0 %2309
        %v2311 = vrcp.pop %v2310
        %v2312 = vmul.f32 %v2307, %v2311
        %v2313 = vpack.c.bf16 %v2312, %v2312
        %2314 = vrot.lane.b32.xlu0 %v1930, 48
        %v2315 = vpop.permute.xlu0 %2314
        %v2317 = vsel %vm1029, %v2313, 0
        %v2320 = vand.u32 %v2315, %v1036
        %2322 = vmatprep.subr.bf16.mxu0 0
        %2323 = vmatpush1.bf16.msra.mxu0 0
        %2324 = vmatprep.subr.bf16.mxu0 0
        %2325 = vmatpush1.bf16.msra.mxu0 0
        %2326 = vmatprep.subr.bf16.mxu0 0
        %2327 = vmatpush1.bf16.msra.mxu0 0
        %2328 = vmatprep.subr.bf16.mxu0 0
        %2329 = vmatpush1.bf16.msra.mxu0 0
        %2330 = vmatprep.subr.bf16.mxu0 0
        %2331 = vmatpush1.bf16.msra.mxu0 0
        %2332 = vmatprep.subr.bf16.mxu0 0
        %2333 = vmatpush1.bf16.msra.mxu0 0
        %2334 = vmatprep.subr.bf16.mxu0 0
        %2335 = vmatpush1.bf16.msra.mxu0 0
        %2336 = vmatprep.subr.bf16.mxu0 0
        %2337 = vmatpush1.bf16.msra.mxu0 %v2320
        %2338 = vmatprep.subr.bf16.mxu0 0
        %2339 = vmatpush2.bf16.msra.mxu0 0
        %2340 = vmatprep.subr.bf16.mxu0 0
        %2341 = vmatpush2.bf16.msra.mxu0 0
        %2342 = vmatprep.subr.bf16.mxu0 0
        %2343 = vmatpush2.bf16.msra.mxu0 0
        %2344 = vmatprep.subr.bf16.mxu0 0
        %2345 = vmatpush2.bf16.msra.mxu0 0
        %2346 = vmatprep.subr.bf16.mxu0 0
        %2347 = vmatpush2.bf16.msra.mxu0 0
        %2348 = vmatprep.subr.bf16.mxu0 0
        %2349 = vmatpush2.bf16.msra.mxu0 0
        %2350 = vmatprep.subr.bf16.mxu0 0
        %2351 = vmatpush2.bf16.msra.mxu0 0
        %2352 = vmatprep.subr.bf16.mxu0 0
        %2353 = vmatpush2.bf16.msra.mxu0 0
        %2354 = vmatprep.mubr.bf16.mxu0 0
        %2355 = vmatmul.mubr.bf16.gmra.mxu0 %v2317
        %v2356 = vpop.f32.mrf.mxu0
        %v2357 = vadd.f32 0.0, %v2356
        %v2358 = vpop.f32.mrf.mxu0
        %v2359 = vpop.f32.mrf.mxu0
        %v2360 = vpop.f32.mrf.mxu0
        %2361 = vdwg.mxu0
        %v2362 = vpack.c.bf16 %v2357, %v2357
        %v2364 = vsel %vm966, %v2362, 0
        %v2367 = vsel %vm1196, %v1934, 0
        %2369 = vmatprep.subr.bf16.mxu0 0
        %2370 = vmatpush1.bf16.msra.mxu0 0
        %2371 = vmatprep.subr.bf16.mxu0 0
        %2372 = vmatpush1.bf16.msra.mxu0 0
        %2373 = vmatprep.subr.bf16.mxu0 0
        %2374 = vmatpush1.bf16.msra.mxu0 0
        %2375 = vmatprep.subr.bf16.mxu0 0
        %2376 = vmatpush1.bf16.msra.mxu0 0
        %2377 = vmatprep.subr.bf16.mxu0 0
        %2378 = vmatpush1.bf16.msra.mxu0 0
        %2379 = vmatprep.subr.bf16.mxu0 0
        %2380 = vmatpush1.bf16.msra.mxu0 0
        %2381 = vmatprep.subr.bf16.mxu0 0
        %2382 = vmatpush1.bf16.msra.mxu0 0
        %2383 = vmatprep.subr.bf16.mxu0 0
        %2384 = vmatpush1.bf16.msra.mxu0 %v2367
        %2385 = vmatprep.subr.bf16.mxu0 0
        %2386 = vmatpush2.bf16.msra.mxu0 0
        %2387 = vmatprep.subr.bf16.mxu0 0
        %2388 = vmatpush2.bf16.msra.mxu0 0
        %2389 = vmatprep.subr.bf16.mxu0 0
        %2390 = vmatpush2.bf16.msra.mxu0 0
        %2391 = vmatprep.subr.bf16.mxu0 0
        %2392 = vmatpush2.bf16.msra.mxu0 0
        %2393 = vmatprep.subr.bf16.mxu0 0
        %2394 = vmatpush2.bf16.msra.mxu0 0
        %2395 = vmatprep.subr.bf16.mxu0 0
        %2396 = vmatpush2.bf16.msra.mxu0 0
        %2397 = vmatprep.subr.bf16.mxu0 0
        %2398 = vmatpush2.bf16.msra.mxu0 0
        %2399 = vmatprep.subr.bf16.mxu0 0
        %2400 = vmatpush2.bf16.msra.mxu0 0
        %2401 = vmatprep.mubr.bf16.mxu0 0
        %2402 = vmatmul.mubr.bf16.gmra.mxu0 %v2364
        %v2403 = vpop.f32.mrf.mxu0
        %v2404 = vadd.f32 0.0, %v2403
        %v2405 = vpop.f32.mrf.mxu0
        %v2406 = vpop.f32.mrf.mxu0
        %v2407 = vpop.f32.mrf.mxu0
        %2408 = vdwg.mxu0
        %v2409 = vadd.f32 %v2246, %v2404
        %2410 = vrot.lane.b32.xlu0 %v1930, 104
        %v2411 = vpop.permute.xlu0 %2410
        %2412 = vrot.lane.b32.xlu0 %v1930, 72
        %v2413 = vpop.permute.xlu0 %2412
        %v2415 = vsel %vm966, %v2411, 0
        %v2418 = vsel %vm966, %v2413, 0
        %2420 = vmatprep.subr.bf16.mxu0 0
        %2421 = vmatpush1.bf16.xpose.msra.mxu0 0
        %2422 = vmatprep.subr.bf16.mxu0 0
        %2423 = vmatpush1.bf16.xpose.msra.mxu0 0
        %2424 = vmatprep.subr.bf16.mxu0 0
        %2425 = vmatpush1.bf16.xpose.msra.mxu0 0
        %2426 = vmatprep.subr.bf16.mxu0 0
        %2427 = vmatpush1.bf16.xpose.msra.mxu0 0
        %2428 = vmatprep.subr.bf16.mxu0 0
        %2429 = vmatpush1.bf16.xpose.msra.mxu0 0
        %2430 = vmatprep.subr.bf16.mxu0 0
        %2431 = vmatpush1.bf16.xpose.msra.mxu0 0
        %2432 = vmatprep.subr.bf16.mxu0 0
        %2433 = vmatpush1.bf16.xpose.msra.mxu0 0
        %2434 = vmatprep.subr.bf16.mxu0 0
        %2435 = vmatpush1.bf16.xpose.msra.mxu0 %v2418
        %2436 = vmatprep.subr.bf16.mxu0 0
        %2437 = vmatpush2.bf16.xpose.msra.mxu0 0
        %2438 = vmatprep.subr.bf16.mxu0 0
        %2439 = vmatpush2.bf16.xpose.msra.mxu0 0
        %2440 = vmatprep.subr.bf16.mxu0 0
        %2441 = vmatpush2.bf16.xpose.msra.mxu0 0
        %2442 = vmatprep.subr.bf16.mxu0 0
        %2443 = vmatpush2.bf16.xpose.msra.mxu0 0
        %2444 = vmatprep.subr.bf16.mxu0 0
        %2445 = vmatpush2.bf16.xpose.msra.mxu0 0
        %2446 = vmatprep.subr.bf16.mxu0 0
        %2447 = vmatpush2.bf16.xpose.msra.mxu0 0
        %2448 = vmatprep.subr.bf16.mxu0 0
        %2449 = vmatpush2.bf16.xpose.msra.mxu0 0
        %2450 = vmatprep.subr.bf16.mxu0 0
        %2451 = vmatpush2.bf16.xpose.msra.mxu0 0
        %2452 = vmatprep.mubr.bf16.mxu0 0
        %2453 = vmatmul.mubr.bf16.gmra.mxu0 %v2415
        %v2454 = vpop.f32.mrf.mxu0
        %v2455 = vadd.f32 0.0, %v2454
        %v2456 = vpop.f32.mrf.mxu0
        %v2457 = vpop.f32.mrf.mxu0
        %v2458 = vpop.f32.mrf.mxu0
        %2459 = vdwg.mxu0
        %v2460 = vmul.f32 %v2455, 0.35355338
        %v2461 = vsel %vm1014, %v2460, -inf
        %2462 = vmax.xlane.f32.xlu0 %v2461
        %v2463 = vpop.xlane.xlu0 %2462
        %v2464 = vsub.f32 %v2460, %v2463
        %v2465 = vmul.f32 %v2464, 1.442695
        %v2466 = vpow.pop %v2465
        %v2467 = vsel %vm1014, %v2466, 0.0
        %2468 = vadd.xlane.f32.xlu0 %v2467
        %v2469 = vpop.xlane.xlu0 %2468
        %v2470 = vrcp.pop %v2469
        %v2471 = vmul.f32 %v2466, %v2470
        %v2472 = vpack.c.bf16 %v2471, %v2471
        %2473 = vrot.lane.b32.xlu0 %v1930, 40
        %v2474 = vpop.permute.xlu0 %2473
        %v2476 = vsel %vm1029, %v2472, 0
        %v2479 = vand.u32 %v2474, %v1036
        %2481 = vmatprep.subr.bf16.mxu0 0
        %2482 = vmatpush1.bf16.msra.mxu0 0
        %2483 = vmatprep.subr.bf16.mxu0 0
        %2484 = vmatpush1.bf16.msra.mxu0 0
        %2485 = vmatprep.subr.bf16.mxu0 0
        %2486 = vmatpush1.bf16.msra.mxu0 0
        %2487 = vmatprep.subr.bf16.mxu0 0
        %2488 = vmatpush1.bf16.msra.mxu0 0
        %2489 = vmatprep.subr.bf16.mxu0 0
        %2490 = vmatpush1.bf16.msra.mxu0 0
        %2491 = vmatprep.subr.bf16.mxu0 0
        %2492 = vmatpush1.bf16.msra.mxu0 0
        %2493 = vmatprep.subr.bf16.mxu0 0
        %2494 = vmatpush1.bf16.msra.mxu0 0
        %2495 = vmatprep.subr.bf16.mxu0 0
        %2496 = vmatpush1.bf16.msra.mxu0 %v2479
        %2497 = vmatprep.subr.bf16.mxu0 0
        %2498 = vmatpush2.bf16.msra.mxu0 0
        %2499 = vmatprep.subr.bf16.mxu0 0
        %2500 = vmatpush2.bf16.msra.mxu0 0
        %2501 = vmatprep.subr.bf16.mxu0 0
        %2502 = vmatpush2.bf16.msra.mxu0 0
        %2503 = vmatprep.subr.bf16.mxu0 0
        %2504 = vmatpush2.bf16.msra.mxu0 0
        %2505 = vmatprep.subr.bf16.mxu0 0
        %2506 = vmatpush2.bf16.msra.mxu0 0
        %2507 = vmatprep.subr.bf16.mxu0 0
        %2508 = vmatpush2.bf16.msra.mxu0 0
        %2509 = vmatprep.subr.bf16.mxu0 0
        %2510 = vmatpush2.bf16.msra.mxu0 0
        %2511 = vmatprep.subr.bf16.mxu0 0
        %2512 = vmatpush2.bf16.msra.mxu0 0
        %2513 = vmatprep.mubr.bf16.mxu0 0
        %2514 = vmatmul.mubr.bf16.gmra.mxu0 %v2476
        %v2515 = vpop.f32.mrf.mxu0
        %v2516 = vadd.f32 0.0, %v2515
        %v2517 = vpop.f32.mrf.mxu0
        %v2518 = vpop.f32.mrf.mxu0
        %v2519 = vpop.f32.mrf.mxu0
        %2520 = vdwg.mxu0
        %v2521 = vpack.c.bf16 %v2516, %v2516
        %v2523 = vsel %vm966, %v2521, 0
        %v2526 = vsel %vm1196, %v1935, 0
        %2528 = vmatprep.subr.bf16.mxu0 0
        %2529 = vmatpush1.bf16.msra.mxu0 0
        %2530 = vmatprep.subr.bf16.mxu0 0
        %2531 = vmatpush1.bf16.msra.mxu0 0
        %2532 = vmatprep.subr.bf16.mxu0 0
        %2533 = vmatpush1.bf16.msra.mxu0 0
        %2534 = vmatprep.subr.bf16.mxu0 0
        %2535 = vmatpush1.bf16.msra.mxu0 0
        %2536 = vmatprep.subr.bf16.mxu0 0
        %2537 = vmatpush1.bf16.msra.mxu0 0
        %2538 = vmatprep.subr.bf16.mxu0 0
        %2539 = vmatpush1.bf16.msra.mxu0 0
        %2540 = vmatprep.subr.bf16.mxu0 0
        %2541 = vmatpush1.bf16.msra.mxu0 0
        %2542 = vmatprep.subr.bf16.mxu0 0
        %2543 = vmatpush1.bf16.msra.mxu0 %v2526
        %2544 = vmatprep.subr.bf16.mxu0 0
        %2545 = vmatpush2.bf16.msra.mxu0 0
        %2546 = vmatprep.subr.bf16.mxu0 0
        %2547 = vmatpush2.bf16.msra.mxu0 0
        %2548 = vmatprep.subr.bf16.mxu0 0
        %2549 = vmatpush2.bf16.msra.mxu0 0
        %2550 = vmatprep.subr.bf16.mxu0 0
        %2551 = vmatpush2.bf16.msra.mxu0 0
        %2552 = vmatprep.subr.bf16.mxu0 0
        %2553 = vmatpush2.bf16.msra.mxu0 0
        %2554 = vmatprep.subr.bf16.mxu0 0
        %2555 = vmatpush2.bf16.msra.mxu0 0
        %2556 = vmatprep.subr.bf16.mxu0 0
        %2557 = vmatpush2.bf16.msra.mxu0 0
        %2558 = vmatprep.subr.bf16.mxu0 0
        %2559 = vmatpush2.bf16.msra.mxu0 0
        %2560 = vmatprep.mubr.bf16.mxu0 0
        %2561 = vmatmul.mubr.bf16.gmra.mxu0 %v2523
        %v2562 = vpop.f32.mrf.mxu0
        %v2563 = vadd.f32 0.0, %v2562
        %v2564 = vpop.f32.mrf.mxu0
        %v2565 = vpop.f32.mrf.mxu0
        %v2566 = vpop.f32.mrf.mxu0
        %2567 = vdwg.mxu0
        %v2568 = vadd.f32 %v2409, %v2563
        %v2569 = vadd.f32 %v1829, %v2568
        %s2570 = scalar_lea.vmem %s10, 1
        %v2571 = vld [vmem:[%s2570] sm:$0x1]
        %v2573 = vlaneseq
        %v2574 = vshrl.u32 %v2573, 7
        %v2575 = vsub.s32 0, %v2574
        %v2576 = vrot.slane %v2571, %v2575
        %v2578 = vadd.f32 %v2569, %v2576
        %s2579 = scalar_lea.vmem %s11, 1
        %v2580 = vld [vmem:[%s2579] sm:$0x1]
        %s2581 = scalar_lea.vmem %s12, 1
        %v2582 = vld [vmem:[%s2581] sm:$0x1]
        %v2583 = vsel %vm832, %v2578, 0.0
        %2584 = vadd.xlane.f32.xlu0 %v2583
        %v2585 = vpop.xlane.xlu0 %2584
        %v2586 = vmul.f32 %v2585, %v836
        %v2587 = vsub.f32 %v2578, %v2586
        %v2588 = vmul.f32 %v2587, %v2587
        %v2589 = vsel %vm832, %v2588, 0.0
        %2590 = vadd.xlane.f32.xlu0 %v2589
        %v2591 = vpop.xlane.xlu0 %2590
        %v2592 = vmul.f32 %v2591, %v836
        %v2593 = vadd.f32 %v2592, 1e-05
        %v2594 = vrsqrt.pop %v2593
        %v2595 = vmul.f32 %v2587, %v2594
        %v2597 = vlaneseq
        %v2598 = vshrl.u32 %v2597, 7
        %v2599 = vsub.s32 0, %v2598
        %v2600 = vrot.slane %v2580, %v2599
        %v2602 = vmul.f32 %v2595, %v2600
        %v2604 = vlaneseq
        %v2605 = vshrl.u32 %v2604, 7
        %v2606 = vsub.s32 0, %v2605
        %v2607 = vrot.slane %v2582, %v2606
        %v2609 = vadd.f32 %v2602, %v2607
        %v2610 = vpack.c.bf16 %v2609, %v2609
        %s2611 = scalar_lea.vmem %s13, 16
        %v2612 = vld [vmem:[%s2611] sm:$0xf]
        %v2613 = vld [vmem:[%s2611 + $0x4] sm:$0xf]
        %v2614 = vld [vmem:[%s2611 + $0x8] sm:$0xf]
        %v2615 = vld [vmem:[%s2611 + $0xc] sm:$0xf]
        %s2616 = scalar_lea.vmem %s14, 1
        %v2617 = vld [vmem:[%s2616] sm:$0x1]
        %v2619 = vlaneseq
        %v2620 = vshrl.u32 %v2619, 7
        %v2621 = vsub.s32 0, %v2620
        %v2622 = vrot.slane %v2617, %v2621
        %v2628 = vunpack.c.l.b16 %v2612
        %v2629 = vunpack.c.l.b16 %v2613
        %v2630 = vunpack.c.l.b16 %v2614
        %v2631 = vunpack.c.l.b16 %v2615
        %v2632 = vpack.c.b16 %v2629, %v2628
        %v2633 = vpack.c.b16 %v2631, %v2630
        %v2637 = vsel %vm914, %v2610, 0
        %2639 = vmatprep.subr.bf16.mxu0 0
        %2640 = vmatpush1.bf16.msra.mxu0 0
        %2641 = vmatprep.subr.bf16.mxu0 0
        %2642 = vmatpush1.bf16.msra.mxu0 0
        %2643 = vmatprep.subr.bf16.mxu0 0
        %2644 = vmatpush1.bf16.msra.mxu0 0
        %2645 = vmatprep.subr.bf16.mxu0 0
        %2646 = vmatpush1.bf16.msra.mxu0 0
        %2647 = vmatprep.subr.bf16.mxu0 0
        %2648 = vmatpush1.bf16.msra.mxu0 0
        %2649 = vmatprep.subr.bf16.mxu0 0
        %2650 = vmatpush1.bf16.msra.mxu0 0
        %2651 = vmatprep.subr.bf16.mxu0 0
        %2652 = vmatpush1.bf16.msra.mxu0 %v2633
        %2653 = vmatprep.subr.bf16.mxu0 0
        %2654 = vmatpush1.bf16.msra.mxu0 %v2632
        %2655 = vmatprep.subr.bf16.mxu0 0
        %2656 = vmatpush2.bf16.msra.mxu0 0
        %2657 = vmatprep.subr.bf16.mxu0 0
        %2658 = vmatpush2.bf16.msra.mxu0 0
        %2659 = vmatprep.subr.bf16.mxu0 0
        %2660 = vmatpush2.bf16.msra.mxu0 0
        %2661 = vmatprep.subr.bf16.mxu0 0
        %2662 = vmatpush2.bf16.msra.mxu0 0
        %2663 = vmatprep.subr.bf16.mxu0 0
        %2664 = vmatpush2.bf16.msra.mxu0 0
        %2665 = vmatprep.subr.bf16.mxu0 0
        %2666 = vmatpush2.bf16.msra.mxu0 0
        %2667 = vmatprep.subr.bf16.mxu0 0
        %2668 = vmatpush2.bf16.msra.mxu0 0
        %2669 = vmatprep.subr.bf16.mxu0 0
        %2670 = vmatpush2.bf16.msra.mxu0 0
        %2671 = vmatprep.mubr.bf16.mxu0 0
        %2672 = vmatmul.mubr.bf16.gmra.mxu0 %v2637
        %v2673 = vpop.f32.mrf.mxu0
        %v2674 = vadd.f32 %v2622, %v2673
        %v2675 = vpop.f32.mrf.mxu0
        %v2676 = vpop.f32.mrf.mxu0
        %v2677 = vpop.f32.mrf.mxu0
        %2678 = vdwg.mxu0
        %v2679 = vmul.f32 %v2674, 1.702
        %v2680 = vxor.u32 %v2679, 2147483648
        %v2681 = vmul.f32 %v2680, 1.442695
        %v2682 = vpow.pop %v2681
        %v2683 = vadd.f32 %v2682, 1.0
        %v2684 = vrcp.pop %v2683
        %v2685 = vmul.f32 1.0, %v2684
        %v2686 = vmul.f32 %v2674, %v2685
        %v2687 = vpack.c.bf16 %v2686, %v2686
        %s2688 = scalar_lea.vmem %s15, 64
        %v2689 = vld [vmem:[%s2688] sm:$0xf]
        %v2690 = vld [vmem:[%s2688 + $0x4] sm:$0xf]
        %v2691 = vld [vmem:[%s2688 + $0x8] sm:$0xf]
        %v2692 = vld [vmem:[%s2688 + $0xc] sm:$0xf]
        %v2693 = vld [vmem:[%s2688 + $0x10] sm:$0xf]
        %v2694 = vld [vmem:[%s2688 + $0x14] sm:$0xf]
        %v2695 = vld [vmem:[%s2688 + $0x18] sm:$0xf]
        %v2696 = vld [vmem:[%s2688 + $0x1c] sm:$0xf]
        %v2697 = vld [vmem:[%s2688 + $0x20] sm:$0xf]
        %v2698 = vld [vmem:[%s2688 + $0x24] sm:$0xf]
        %v2699 = vld [vmem:[%s2688 + $0x28] sm:$0xf]
        %v2700 = vld [vmem:[%s2688 + $0x2c] sm:$0xf]
        %v2701 = vld [vmem:[%s2688 + $0x30] sm:$0xf]
        %v2702 = vld [vmem:[%s2688 + $0x34] sm:$0xf]
        %v2703 = vld [vmem:[%s2688 + $0x38] sm:$0xf]
        %v2704 = vld [vmem:[%s2688 + $0x3c] sm:$0xf]
        %s2705 = scalar_lea.vmem %s16, 1
        %v2706 = vld [vmem:[%s2705] sm:$0x1]
        %v2708 = vlaneseq
        %v2709 = vshrl.u32 %v2708, 7
        %v2710 = vsub.s32 0, %v2709
        %v2711 = vrot.slane %v2706, %v2710
        %v2729 = vunpack.c.l.b16 %v2689
        %v2730 = vunpack.c.l.b16 %v2690
        %v2731 = vunpack.c.l.b16 %v2691
        %v2732 = vunpack.c.l.b16 %v2692
        %v2733 = vunpack.c.l.b16 %v2693
        %v2734 = vunpack.c.l.b16 %v2694
        %v2735 = vunpack.c.l.b16 %v2695
        %v2736 = vunpack.c.l.b16 %v2696
        %v2737 = vunpack.c.l.b16 %v2697
        %v2738 = vunpack.c.l.b16 %v2698
        %v2739 = vunpack.c.l.b16 %v2699
        %v2740 = vunpack.c.l.b16 %v2700
        %v2741 = vunpack.c.l.b16 %v2701
        %v2742 = vunpack.c.l.b16 %v2702
        %v2743 = vunpack.c.l.b16 %v2703
        %v2744 = vunpack.c.l.b16 %v2704
        %v2745 = vpack.c.b16 %v2730, %v2729
        %v2746 = vpack.c.b16 %v2732, %v2731
        %v2747 = vpack.c.b16 %v2734, %v2733
        %v2748 = vpack.c.b16 %v2736, %v2735
        %v2749 = vpack.c.b16 %v2738, %v2737
        %v2750 = vpack.c.b16 %v2740, %v2739
        %v2751 = vpack.c.b16 %v2742, %v2741
        %v2752 = vpack.c.b16 %v2744, %v2743
        %2761 = vmatprep.subr.bf16.mxu0 0
        %2762 = vmatpush1.bf16.msra.mxu0 %v2752
        %2763 = vmatprep.subr.bf16.mxu0 0
        %2764 = vmatpush1.bf16.msra.mxu0 %v2751
        %2765 = vmatprep.subr.bf16.mxu0 0
        %2766 = vmatpush1.bf16.msra.mxu0 %v2750
        %2767 = vmatprep.subr.bf16.mxu0 0
        %2768 = vmatpush1.bf16.msra.mxu0 %v2749
        %2769 = vmatprep.subr.bf16.mxu0 0
        %2770 = vmatpush1.bf16.msra.mxu0 %v2748
        %2771 = vmatprep.subr.bf16.mxu0 0
        %2772 = vmatpush1.bf16.msra.mxu0 %v2747
        %2773 = vmatprep.subr.bf16.mxu0 0
        %2774 = vmatpush1.bf16.msra.mxu0 %v2746
        %2775 = vmatprep.subr.bf16.mxu0 0
        %2776 = vmatpush1.bf16.msra.mxu0 %v2745
        %2777 = vmatprep.subr.bf16.mxu0 0
        %2778 = vmatpush2.bf16.msra.mxu0 0
        %2779 = vmatprep.subr.bf16.mxu0 0
        %2780 = vmatpush2.bf16.msra.mxu0 0
        %2781 = vmatprep.subr.bf16.mxu0 0
        %2782 = vmatpush2.bf16.msra.mxu0 0
        %2783 = vmatprep.subr.bf16.mxu0 0
        %2784 = vmatpush2.bf16.msra.mxu0 0
        %2785 = vmatprep.subr.bf16.mxu0 0
        %2786 = vmatpush2.bf16.msra.mxu0 0
        %2787 = vmatprep.subr.bf16.mxu0 0
        %2788 = vmatpush2.bf16.msra.mxu0 0
        %2789 = vmatprep.subr.bf16.mxu0 0
        %2790 = vmatpush2.bf16.msra.mxu0 0
        %2791 = vmatprep.subr.bf16.mxu0 0
        %2792 = vmatpush2.bf16.msra.mxu0 0
        %2793 = vmatprep.mubr.bf16.mxu0 0
        %2794 = vmatmul.mubr.bf16.gmra.mxu0 %v2687
        %v2795 = vpop.f32.mrf.mxu0
        %v2796 = vadd.f32 %v2711, %v2795
        %v2797 = vpop.f32.mrf.mxu0
        %v2798 = vpop.f32.mrf.mxu0
        %v2799 = vpop.f32.mrf.mxu0
        %2800 = vdwg.mxu0
        %v2801 = vadd.f32 %v2578, %v2796
        %v2802 = vld [vmem:[%s17] sm:$0x1]
        %v2803 = vld [vmem:[%s18] sm:$0x1]
        %vm2804 = vcmask 253952
        %v2805 = vsel %vm2804, %v2801, 0.0
        %2806 = vadd.xlane.f32.xlu0 %v2805
        %v2807 = vpop.xlane.xlu0 %2806
        %v2808 = vmul.f32 %v2807, %v836
        %v2809 = vsub.f32 %v2801, %v2808
        %v2810 = vmul.f32 %v2809, %v2809
        %v2811 = vsel %vm2804, %v2810, 0.0
        %2812 = vadd.xlane.f32.xlu0 %v2811
        %v2813 = vpop.xlane.xlu0 %2812
        %v2814 = vmul.f32 %v2813, %v836
        %v2815 = vadd.f32 %v2814, 1e-05
        %v2816 = vrsqrt.pop %v2815
        %v2817 = vmul.f32 %v2809, %v2816
        %v2818 = vmul.f32 %v2817, %v2802
        %v2819 = vadd.f32 %v2818, %v2803
        %v2820 = vpack.c.bf16 %v2819, %v2819
        %v2821 = vld [vmem:[%s19] sm:$0xf]
        %v2822 = vld [vmem:[%s19 + $0x4] sm:$0xf]
        %v2823 = vld [vmem:[%s19 + $0x8] sm:$0xf]
        %v2824 = vld [vmem:[%s19 + $0xc] sm:$0xf]
        %v2829 = vunpack.c.l.b16 %v2821
        %v2830 = vunpack.c.l.b16 %v2822
        %v2831 = vunpack.c.l.b16 %v2823
        %v2832 = vunpack.c.l.b16 %v2824
        %v2833 = vpack.c.b16 %v2830, %v2829
        %v2834 = vpack.c.b16 %v2832, %v2831
        %v2838 = vsel %vm914, %v2820, 0
        %2840 = vmatprep.subr.bf16.mxu0 0
        %2841 = vmatpush1.bf16.msra.mxu0 0
        %2842 = vmatprep.subr.bf16.mxu0 0
        %2843 = vmatpush1.bf16.msra.mxu0 0
        %2844 = vmatprep.subr.bf16.mxu0 0
        %2845 = vmatpush1.bf16.msra.mxu0 0
        %2846 = vmatprep.subr.bf16.mxu0 0
        %2847 = vmatpush1.bf16.msra.mxu0 0
        %2848 = vmatprep.subr.bf16.mxu0 0
        %2849 = vmatpush1.bf16.msra.mxu0 0
        %2850 = vmatprep.subr.bf16.mxu0 0
        %2851 = vmatpush1.bf16.msra.mxu0 0
        %2852 = vmatprep.subr.bf16.mxu0 0
        %2853 = vmatpush1.bf16.msra.mxu0 %v2834
        %2854 = vmatprep.subr.bf16.mxu0 0
        %2855 = vmatpush1.bf16.msra.mxu0 %v2833
        %2856 = vmatprep.subr.bf16.mxu0 0
        %2857 = vmatpush2.bf16.msra.mxu0 0
        %2858 = vmatprep.subr.bf16.mxu0 0
        %2859 = vmatpush2.bf16.msra.mxu0 0
        %2860 = vmatprep.subr.bf16.mxu0 0
        %2861 = vmatpush2.bf16.msra.mxu0 0
        %2862 = vmatprep.subr.bf16.mxu0 0
        %2863 = vmatpush2.bf16.msra.mxu0 0
        %2864 = vmatprep.subr.bf16.mxu0 0
        %2865 = vmatpush2.bf16.msra.mxu0 0
        %2866 = vmatprep.subr.bf16.mxu0 0
        %2867 = vmatpush2.bf16.msra.mxu0 0
        %2868 = vmatprep.subr.bf16.mxu0 0
        %2869 = vmatpush2.bf16.msra.mxu0 0
        %2870 = vmatprep.subr.bf16.mxu0 0
        %2871 = vmatpush2.bf16.msra.mxu0 0
        %2872 = vmatprep.mubr.bf16.mxu0 0
        %2873 = vmatmul.mubr.bf16.gmra.mxu0 %v2838
        %v2874 = vpop.f32.mrf.mxu0
        %v2875 = vadd.f32 0.0, %v2874
        %v2876 = vpop.f32.mrf.mxu0
        %v2877 = vpop.f32.mrf.mxu0
        %v2878 = vpop.f32.mrf.mxu0
        %2879 = vdwg.mxu0
        %v2880 = vpack.c.bf16 %v2875, %v2875
        %v2881 = vld [vmem:[%s20] sm:$0xf]
        %v2882 = vld [vmem:[%s20 + $0x4] sm:$0xf]
        %v2883 = vld [vmem:[%s21] sm:$0x1]
        %v2886 = vunpack.c.l.b16 %v2881
        %v2887 = vunpack.c.l.b16 %v2882
        %v2888 = vpack.c.b16 %v2887, %v2886
        %vm2890 = vcmask 130048
        %v2892 = vsel %vm2890, %v2880, 0
        %2894 = vmatprep.subr.bf16.mxu0 0
        %2895 = vmatpush1.bf16.msra.mxu0 0
        %2896 = vmatprep.subr.bf16.mxu0 0
        %2897 = vmatpush1.bf16.msra.mxu0 0
        %2898 = vmatprep.subr.bf16.mxu0 0
        %2899 = vmatpush1.bf16.msra.mxu0 0
        %2900 = vmatprep.subr.bf16.mxu0 0
        %2901 = vmatpush1.bf16.msra.mxu0 0
        %2902 = vmatprep.subr.bf16.mxu0 0
        %2903 = vmatpush1.bf16.msra.mxu0 0
        %2904 = vmatprep.subr.bf16.mxu0 0
        %2905 = vmatpush1.bf16.msra.mxu0 0
        %2906 = vmatprep.subr.bf16.mxu0 0
        %2907 = vmatpush1.bf16.msra.mxu0 0
        %2908 = vmatprep.subr.bf16.mxu0 0
        %2909 = vmatpush1.bf16.msra.mxu0 %v2888
        %2910 = vmatprep.subr.bf16.mxu0 0
        %2911 = vmatpush2.bf16.msra.mxu0 0
        %2912 = vmatprep.subr.bf16.mxu0 0
        %2913 = vmatpush2.bf16.msra.mxu0 0
        %2914 = vmatprep.subr.bf16.mxu0 0
        %2915 = vmatpush2.bf16.msra.mxu0 0
        %2916 = vmatprep.subr.bf16.mxu0 0
        %2917 = vmatpush2.bf16.msra.mxu0 0
        %2918 = vmatprep.subr.bf16.mxu0 0
        %2919 = vmatpush2.bf16.msra.mxu0 0
        %2920 = vmatprep.subr.bf16.mxu0 0
        %2921 = vmatpush2.bf16.msra.mxu0 0
        %2922 = vmatprep.subr.bf16.mxu0 0
        %2923 = vmatpush2.bf16.msra.mxu0 0
        %2924 = vmatprep.subr.bf16.mxu0 0
        %2925 = vmatpush2.bf16.msra.mxu0 0
        %2926 = vmatprep.mubr.bf16.mxu0 0
        %2927 = vmatmul.mubr.bf16.gmra.mxu0 %v2892
        %v2928 = vpop.f32.mrf.mxu0
        %v2929 = vadd.f32 %v2883, %v2928
        %v2930 = vpop.f32.mrf.mxu0
        %v2931 = vpop.f32.mrf.mxu0
        %v2932 = vpop.f32.mrf.mxu0
        %2933 = vdwg.mxu0
        %vm2934 = vcmask 32768
        %2935 = vst.msk [vmem:[%s675] sm:$0x1] %vm2934, %v2929
        %s2936 = sand.u32 %s511, 1
        %s2937 = scalar_lea.sflag [#allocation3], %s2936
        %s2938 = sand.u32 %s511, 1
        %s2939 = scalar_lea.vmem [#allocation2], %s2938
        // Predicated region
        $region109: #{clip_finetuner_forward.1} parent=107 // pred_check
          %p2940 = pneg %p521
        $region110: #{clip_finetuner_forward.1} parent=107 // pred_check_branch
          %2942 = sbr.rel (%p2940) target = $region112
        $region111: #{clip_finetuner_forward.1} parent=107 // pred_region
          %s2944 = ssub.s32 16, 16
          %2945 = vsyncadd %s2937, %s2944
          %s2946 = smul.addr %s36, 16
          %s2947 = scalar_lea.hbm %s22, %s2946
          %s2949 = sshll.u32 %s2939, 4
          %s2950 = int_to_ptr.vmem [resolvable:$true] %s2949
          %2952 = dma.vmem_to_hbm [thread:$0]  %s2950, 16, %s2947, %s2937
        $region112: #{clip_finetuner_forward.1} parent=107 // pred_fallthru
          _
      $region108: #{clip_finetuner_forward.1} parent=5 // pred_fallthru
        _
      %p2953 = scmp.le.s32.totalorder 2, %s31
      // Predicated region
      $region113: #{clip_finetuner_forward.1} parent=5 // pred_check
        %p2954 = pneg %p2953
      $region114: #{clip_finetuner_forward.1} parent=5 // pred_check_branch
        %2956 = sbr.rel (%p2954) target = $region116
      $region115: #{clip_finetuner_forward.1} parent=5 // pred_region
        %s2957 = ssub.s32 %s31, 2
        // Predicated region
        $region117: #{clip_finetuner_forward.1} parent=115 // pred_check
          %p2958 = pneg %p527
        $region118: #{clip_finetuner_forward.1} parent=115 // pred_check_branch
          %2960 = sbr.rel (%p2958) target = $region120
        $region119: #{clip_finetuner_forward.1} parent=115 // pred_region
          %s2961 = sand.u32 %s512, 1
          %s2962 = scalar_lea.sflag [#allocation3], %s2961
          %s2963 = sand.u32 %s512, 1
          %s2964 = scalar_lea.vmem [#allocation2], %s2963
          %2965 = dma.done %s2962, 16
        $region120: #{clip_finetuner_forward.1} parent=115 // pred_fallthru
          _
      $region116: #{clip_finetuner_forward.1} parent=5 // pred_fallthru
        _
    $region6: #{clip_finetuner_forward.1} parent=1 // loop_footer
      %s35 = sadd.s32 1, %s31
    $region7: #{clip_finetuner_forward.1} parent=1 // loop_footer_branch
      %30 = sbr.rel target = $region3
    $region8: #{clip_finetuner_forward.1} parent=1 // loop_exit
      _
    %2966 = vsyncpa [#allocation3], 1
    %s2967 = scalar_lea.sflag [#allocation3], 1
    %2968 = vsyncpa %s2967, 1

</llo_original>
